<compile_context>
chip_gen: v6e
topology: v6e:2x2x1
jax: 0.10.0
libtpu: 0.0.40
codegen_flags: <defaults>
</compile_context>

<pallas_src>
import functools

import jax
import jax.numpy as jnp
from jax import lax
from jax.experimental import pallas as pl
from jax.experimental.pallas import tpu as pltpu


# ---------------------------------------------------------------------------
# In-kernel helpers
# ---------------------------------------------------------------------------

def _sigmoid(z):
    # exp -> EUP, approx reciprocal -> EUP; keeps the VALU path free.
    return pl.reciprocal(1.0 + jnp.exp(-z), approx=True)


def _conv3x3_rows(x_bf16, m_ref, mask_dn, mask_up):
    """3x3 conv (padding=1) on a batch-row-folded (B*H, W*Cin) slab.

    m_ref is a (3, W*Cin, W*Cout) stack of bf16 matrices, one per kernel row
    dy, with the dx taps, Cin->Cout contraction and W zero-padding folded in.
    The dy row shift (+/-1 with zero fill at every image boundary, including
    the seams between folded batch elements) is applied with pltpu.roll along
    the sublane axis plus a precomputed 0/1 boundary mask.
    """
    y0 = jnp.dot(x_bf16, m_ref[0], preferred_element_type=jnp.float32)  # needs rows h-1
    y1 = jnp.dot(x_bf16, m_ref[1], preferred_element_type=jnp.float32)  # center
    y2 = jnp.dot(x_bf16, m_ref[2], preferred_element_type=jnp.float32)  # needs rows h+1
    rows = y0.shape[0]
    down = pltpu.roll(y0, 1, 0) * mask_dn          # out[r] = y0[r-1], masked at r % H == 0
    up = pltpu.roll(y2, rows - 1, 0) * mask_up     # out[r] = y2[r+1], masked at r % H == H-1
    return y1 + down + up


# ---------------------------------------------------------------------------
# The fused kernel: whole info_block forward for B batch elements per step
# ---------------------------------------------------------------------------

def _info_block_kernel(x1_ref, x2_ref, g_ref,
                       mg_ref, gaff_ref, p_ref, rhg_ref, rwg_ref,
                       mr1_ref, mr2_ref, rh2_ref, rw2_ref,
                       mf_ref, brows_ref, maskg_ref, maskx_ref,
                       loc_ref, r1_ref, r2_ref):
    b, h, wc = x1_ref.shape
    _, h2, w2c = x2_ref.shape
    _, hg, wgc = g_ref.shape

    gaff = gaff_ref[...]        # (3, Wg*C): [bias, gamma, beta] tiled per lane (f32)
    brows = brows_ref[...]      # (3, W*C):  [b_r1, b_r2, b_fuse] tiled per lane (f32)
    mg_dn, mg_up = maskg_ref[0], maskg_ref[1]   # (B*Hg, Wg*C) boundary masks
    mx_dn, mx_up = maskx_ref[0], maskx_ref[1]   # (B*H,  W*C)  boundary masks

    # --- gconv: Conv3x3 + bias + GroupNorm + ReLU at glob resolution ---------
    g2 = g_ref[...].reshape(b * hg, wgc).astype(jnp.bfloat16)
    y = _conv3x3_rows(g2, mg_ref, mg_dn, mg_up) + gaff[0:1]          # f32 accum
    y3 = y.reshape(b, hg, wgc)
    # Per-batch-element statistics: one stacked dot against P (folds the
    # "sum lanes of same group / count" + broadcast back per lane).
    stats = jnp.concatenate(
        [jnp.sum(y3, axis=1), jnp.sum(y3 * y3, axis=1)], axis=0)     # (2B, Wg*C)
    stats = jnp.dot(stats, p_ref[...], preferred_element_type=jnp.float32)
    mean, msq = stats[:b], stats[b:]
    var = jnp.maximum(msq - mean * mean, 0.0)       # clamp: no NaN from cancellation
    scale = lax.rsqrt(var + 1e-5) * gaff[1:2]       # (B, Wg*C)
    shift = gaff[2:3] - mean * scale
    y3 = jnp.maximum(y3 * scale[:, None, :] + shift[:, None, :], 0.0)
    yb = y3.reshape(b * hg, wgc).astype(jnp.bfloat16)

    # --- bilinear resize glob -> x1 grid: two matmuls (rows via block-diag) ---
    t = jnp.dot(yb, rwg_ref[...], preferred_element_type=jnp.float32)          # (B*Hg, W*C)
    glob0 = jnp.dot(rhg_ref[...], t.astype(jnp.bfloat16),
                    preferred_element_type=jnp.float32)                        # (B*H, W*C)

    # --- branch 1: res_x1 = sigmoid(res_conv1(x1 - glob0)), gate -------------
    x1 = x1_ref[...].reshape(b * h, wc)
    r1 = _sigmoid(_conv3x3_rows((x1 - glob0).astype(jnp.bfloat16),
                                mr1_ref, mx_dn, mx_up) + brows[0:1])
    gated1 = x1 * r1
    r1_ref[...] = r1.reshape(b, h, wc)

    # --- branch 2: upsample x2, res_x2, gate ---------------------------------
    x2 = x2_ref[...].reshape(b * h2, w2c).astype(jnp.bfloat16)
    t2 = jnp.dot(x2, rw2_ref[...], preferred_element_type=jnp.float32)
    x2u = jnp.dot(rh2_ref[...], t2.astype(jnp.bfloat16),
                  preferred_element_type=jnp.float32)                          # (B*H, W*C)
    r2 = _sigmoid(_conv3x3_rows((x2u - glob0).astype(jnp.bfloat16),
                                mr2_ref, mx_dn, mx_up) + brows[1:2])
    gated2 = x2u * r2
    r2_ref[...] = r2.reshape(b, h, wc)

    # --- fuse conv over the channel-concat [gated1, gated2, glob0]:
    #     single K=3*W*C conv (3 matmuls + 2 rolls) ---------------------------
    cat = jnp.concatenate([gated1, gated2, glob0], axis=1).astype(jnp.bfloat16)
    loc = _conv3x3_rows(cat, mf_ref, mx_dn, mx_up) + brows[2:3]
    loc_ref[...] = loc.reshape(b, h, wc)


# ---------------------------------------------------------------------------
# pallas_call wrapper
# ---------------------------------------------------------------------------

def _full_spec(arr):
    nd = arr.ndim
    return pl.BlockSpec(arr.shape, lambda i: (0,) * nd)


def _info_block_pallas(x1f, x2f, gf, mats, batch_per_step):
    n_pad, h, wc = x1f.shape
    _, h2, w2c = x2f.shape
    _, hg, wgc = gf.shape
    b = batch_per_step
    num_steps = n_pad // b

    def per_step(rows, lanes):
        return pl.BlockSpec((b, rows, lanes), lambda i: (i, 0, 0))

    out_sd = jax.ShapeDtypeStruct((n_pad, h, wc), jnp.float32)
    out_spec = per_step(h, wc)

    weight_names = ["mg", "gaff", "p", "rhg", "rwg", "mr1", "mr2",
                    "rh2", "rw2", "mf", "brows", "maskg", "maskx"]
    weights = [mats[k] for k in weight_names]

    return pl.pallas_call(
        _info_block_kernel,
        out_shape=(out_sd, out_sd, out_sd),
        grid=(num_steps,),
        in_specs=[per_step(h, wc), per_step(h2, w2c), per_step(hg, wgc)]
        + [_full_spec(w) for w in weights],
        out_specs=(out_spec, out_spec, out_spec),
        compiler_params=pltpu.CompilerParams(
            dimension_semantics=("parallel",)),   # 2-long grid -> both v7x TCs
    )(x1f, x2f, gf, *weights)


# ---------------------------------------------------------------------------
# Host-side (one-time) weight preprocessing — pure layout algebra
# ---------------------------------------------------------------------------

def _conv_w_to_rowmats(w_oihw, width):
    """PyTorch (Cout,Cin,3,3) weight -> 3 matrices (width*Cin, width*Cout),
    one per kernel row dy, with dx taps and W zero-padding folded in."""
    cout, cin, _, _ = w_oihw.shape
    wt = jnp.transpose(w_oihw, (2, 3, 1, 0))                 # (3, 3, cin, cout)
    wp = jnp.arange(width)                                   # input column
    wo = jnp.arange(width)                                   # output column
    dx = wp[:, None] - wo[None, :] + 1                       # tap index
    valid = ((dx >= 0) & (dx <= 2)).astype(jnp.float32)
    m = wt[:, jnp.clip(dx, 0, 2), :, :]                      # (3, Win, Wout, cin, cout)
    m = m * valid[None, :, :, None, None]
    m = jnp.transpose(m, (0, 1, 3, 2, 4))                    # (3, Win, cin, Wout, cout)
    return m.reshape(3, width * cin, width * cout)


def _bilinear_matrix(out_size, in_size):
    """(out, in) weights of F.interpolate(mode='bilinear', align_corners=False)."""
    scale = in_size / out_size
    src = (jnp.arange(out_size, dtype=jnp.float32) + 0.5) * scale - 0.5
    src = jnp.maximum(src, 0.0)
    i0 = jnp.minimum(jnp.floor(src).astype(jnp.int32), in_size - 1)
    i1 = jnp.minimum(i0 + 1, in_size - 1)
    frac = jnp.clip(src - i0.astype(jnp.float32), 0.0, 1.0)
    cols = jnp.arange(in_size)
    w0 = (cols[None, :] == i0[:, None]).astype(jnp.float32) * (1.0 - frac)[:, None]
    w1 = (cols[None, :] == i1[:, None]).astype(jnp.float32) * frac[:, None]
    return w0 + w1


def _shift_masks(b, h, lanes):
    """(2, b*h, lanes) 0/1 masks zeroing shifted rows at every image boundary."""
    r = jnp.arange(b * h)
    dn = (r % h != 0).astype(jnp.float32)          # invalid rows for the down-shift
    up = (r % h != (h - 1)).astype(jnp.float32)    # invalid rows for the up-shift
    return jnp.stack([jnp.tile(dn[:, None], (1, lanes)),
                      jnp.tile(up[:, None], (1, lanes))], axis=0)


def prepare_info_block(params, h, w, hg, wg, h2, w2, batch_per_step):
    """One-time per-parameter-set preprocessing (hoisted out of the call path)."""
    c = params["b_g"].shape[0]
    groups = c // 2
    gs = c // groups
    b = batch_per_step
    bf = jnp.bfloat16
    eye_c = jnp.eye(c, dtype=jnp.float32)
    eye_b = jnp.eye(b, dtype=jnp.float32)

    mats = {}
    # gconv (at glob resolution)
    mats["mg"] = _conv_w_to_rowmats(params["w_g"], wg).astype(bf)
    mats["gaff"] = jnp.stack([jnp.tile(params["b_g"], wg),
                              jnp.tile(params["gamma"], wg),
                              jnp.tile(params["beta"], wg)], axis=0)
    cidx = jnp.arange(c)
    same_group = (cidx[:, None] // gs == cidx[None, :] // gs).astype(jnp.float32)
    mats["p"] = jnp.kron(jnp.ones((wg, wg), jnp.float32), same_group) / float(hg * wg * gs)
    # bilinear resize matrices; row-resize is block-diagonal over folded batch
    mats["rhg"] = jnp.kron(eye_b, _bilinear_matrix(h, hg)).astype(bf)
    mats["rwg"] = jnp.kron(_bilinear_matrix(w, wg).T, eye_c).astype(bf)
    mats["rh2"] = jnp.kron(eye_b, _bilinear_matrix(h, h2)).astype(bf)
    mats["rw2"] = jnp.kron(_bilinear_matrix(w, w2).T, eye_c).astype(bf)
    # res convs (at x1 resolution)
    mats["mr1"] = _conv_w_to_rowmats(params["w_r1"], w).astype(bf)
    mats["mr2"] = _conv_w_to_rowmats(params["w_r2"], w).astype(bf)
    # fuse conv: merged along K for the lane-concat [gated1 | gated2 | glob0]
    wf = params["w_f"]
    mats["mf"] = jnp.concatenate(
        [_conv_w_to_rowmats(wf[:, i * c:(i + 1) * c], w) for i in range(3)],
        axis=1).astype(bf)                                    # (3, 3*W*C, W*C)
    mats["brows"] = jnp.stack([jnp.tile(params["b_r1"], w),
                               jnp.tile(params["b_r2"], w),
                               jnp.tile(params["b_f"], w)], axis=0)
    # boundary masks for the roll-based row shifts (batch-fold aware)
    mats["maskg"] = _shift_masks(b, hg, wg * c)
    mats["maskx"] = _shift_masks(b, h, w * c)
    return mats


# ---------------------------------------------------------------------------
# Public forward (NCHW in / NCHW out, like the PyTorch module)
# ---------------------------------------------------------------------------

def info_block_forward(xs, glob_x, mats, batch_per_step):
    x1 = jnp.transpose(xs[0], (0, 2, 3, 1)).astype(jnp.float32)   # NHWC
    x2 = jnp.transpose(xs[1], (0, 2, 3, 1)).astype(jnp.float32)
    g = jnp.transpose(glob_x, (0, 2, 3, 1)).astype(jnp.float32)
    n, h, w, c = x1.shape
    _, h2, w2, _ = x2.shape
    _, hg, wg, _ = g.shape

    b = batch_per_step
    num_steps = -(-n // b)
    n_pad = num_steps * b

    def slab(t, hh, ww):
        t = t.reshape(t.shape[0], hh, ww * c)
        if n_pad != n:
            t = jnp.pad(t, ((0, n_pad - n), (0, 0), (0, 0)))
        return t

    loc_f, r1_f, r2_f = _info_block_pallas(
        slab(x1, h, w), slab(x2, h2, w2), slab(g, hg, wg), mats, b)

    to_nchw = lambda t: jnp.transpose(t[:n].reshape(n, h, w, c), (0, 3, 1, 2))
    return to_nchw(loc_f), to_nchw(r1_f), to_nchw(r2_f)


# ---------------------------------------------------------------------------
# Deterministic parameters (PyTorch layouts) + pure-JAX reference
# ---------------------------------------------------------------------------

def make_params(tar_feat, key):
    c = tar_feat
    ks = jax.random.split(key, 10)
    return {
        "w_g": 0.1 * jax.random.normal(ks[0], (c, c, 3, 3), jnp.float32),
        "b_g": 0.05 * jax.random.normal(ks[1], (c,), jnp.float32),
        "gamma": 1.0 + 0.1 * jax.random.normal(ks[2], (c,), jnp.float32),
        "beta": 0.05 * jax.random.normal(ks[3], (c,), jnp.float32),
        "w_r1": 0.1 * jax.random.normal(ks[4], (c, c, 3, 3), jnp.float32),
        "b_r1": 0.05 * jax.random.normal(ks[5], (c,), jnp.float32),
        "w_r2": 0.1 * jax.random.normal(ks[6], (c, c, 3, 3), jnp.float32),
        "b_r2": 0.05 * jax.random.normal(ks[7], (c,), jnp.float32),
        "w_f": 0.1 * jax.random.normal(ks[8], (c, 3 * c, 3, 3), jnp.float32),
        "b_f": 0.05 * jax.random.normal(ks[9], (c,), jnp.float32),
    }


def _reference_forward(xs, glob_x, params):
    x1, x2 = xs

    def conv(x, w, b):
        y = lax.conv_general_dilated(
            x, w, window_strides=(1, 1), padding=((1, 1), (1, 1)),
            dimension_numbers=("NCHW", "OIHW", "NCHW"),
            precision=lax.Precision.HIGHEST)
        return y + b[None, :, None, None]

    def group_norm(x, gamma, beta, groups, eps=1e-5):
        n, c, h, w = x.shape
        xg = x.reshape(n, groups, c // groups, h, w)
        mean = xg.mean(axis=(2, 3, 4), keepdims=True)
        var = ((xg - mean) ** 2).mean(axis=(2, 3, 4), keepdims=True)
        xg = (xg - mean) / jnp.sqrt(var + eps)
        return xg.reshape(n, c, h, w) * gamma[None, :, None, None] + beta[None, :, None, None]

    def resize(x, ho, wo):
        _, _, hi, wi = x.shape

        def coords(o, i):
            src = jnp.maximum((jnp.arange(o, dtype=jnp.float32) + 0.5) * (i / o) - 0.5, 0.0)
            i0 = jnp.minimum(jnp.floor(src).astype(jnp.int32), i - 1)
            i1 = jnp.minimum(i0 + 1, i - 1)
            f = jnp.clip(src - i0.astype(jnp.float32), 0.0, 1.0)
            return i0, i1, f

        h0, h1, fh = coords(ho, hi)
        w0, w1, fw = coords(wo, wi)
        xh = (x[:, :, h0, :] * (1 - fh)[None, None, :, None]
              + x[:, :, h1, :] * fh[None, None, :, None])
        return (xh[:, :, :, w0] * (1 - fw)[None, None, None, :]
                + xh[:, :, :, w1] * fw[None, None, None, :])

    c = params["b_g"].shape[0]
    h, w = x1.shape[2], x1.shape[3]
    gy = jax.nn.relu(group_norm(conv(glob_x, params["w_g"], params["b_g"]),
                                params["gamma"], params["beta"], c // 2))
    glob0 = resize(gy, h, w)
    r1 = jax.nn.sigmoid(conv(x1 - glob0, params["w_r1"], params["b_r1"]))
    x2u = resize(x2, h, w)
    r2 = jax.nn.sigmoid(conv(x2u - glob0, params["w_r2"], params["b_r2"]))
    loc = conv(jnp.concatenate([x1 * r1, x2u * r2, glob0], axis=1),
               params["w_f"], params["b_f"])
    return loc, r1, r2


if __name__ == "__main__":
    key = jax.random.PRNGKey(0)
    k_in, k_par = jax.random.split(key)
    k1, k2, k3 = jax.random.split(k_in, 3)

    N, C = 4, 8          # tar_feat = 8 -> W*C = 128 (lane-dense)
    H1, W1 = 16, 16      # xs[0] spatial
    H2, W2 = 8, 8        # xs[1] spatial
    Hg, Wg = 8, 8        # glob_x spatial

    x1 = jax.random.normal(k1, (N, C, H1, W1), jnp.float32)
    x2 = jax.random.normal(k2, (N, C, H2, W2), jnp.float32)
    glob_x = jax.random.normal(k3, (N, C, Hg, Wg), jnp.float32)
    params = make_params(C, k_par)

    # Grid choice: 2 parallel steps keeps both v7x TensorCores busy; the rest
    # of the batch is folded into the sublane dimension of each step.
    NUM_STEPS = 2 if N >= 2 else 1
    B = -(-N // NUM_STEPS)          # batch elements folded per grid step

    # One-time weight preprocessing (hoisted out of the per-call path).
    mats = prepare_info_block(params, H1, W1, Hg, Wg, H2, W2, B)

    fwd = jax.jit(functools.partial(info_block_forward, batch_per_step=B))
    loc_x, res_x1, res_x2 = fwd((x1, x2), glob_x, mats)
    jax.block_until_ready((loc_x, res_x1, res_x2))

    assert loc_x.shape == (N, C, H1, W1)
    assert res_x1.shape == (N, C, H1, W1)
    assert res_x2.shape == (N, C, H1, W1)

    # Pure-JAX f32 reference check. Tolerances account for bf16 MXU operands
    # (f32 accumulation) and the approx-reciprocal sigmoid.
    ref_loc, ref_r1, ref_r2 = _reference_forward((x1, x2), glob_x, params)
    for got, ref, tol in ((loc_x, ref_loc, 8e-2),
                          (res_x1, ref_r1, 2e-2),
                          (res_x2, ref_r2, 2e-2)):
        err = float(jnp.max(jnp.abs(got - ref)))
        assert err < tol, f"mismatch vs reference: max abs err {err} (tol {tol})"

    print("KERNEL_OK")
</pallas_src>

<mosaic_0001>
module attributes {stable_mosaic.version = 11 : i64} {
  func.func @_info_block_kernel(%arg0: i32, %arg1: memref<2x16x128xf32, #tpu.memory_space<vmem>>, %arg2: memref<2x8x64xf32, #tpu.memory_space<vmem>>, %arg3: memref<2x8x64xf32, #tpu.memory_space<vmem>>, %arg4: memref<3x64x64xbf16, #tpu.memory_space<vmem>>, %arg5: memref<3x64xf32, #tpu.memory_space<vmem>>, %arg6: memref<64x64xf32, #tpu.memory_space<vmem>>, %arg7: memref<32x16xbf16, #tpu.memory_space<vmem>>, %arg8: memref<64x128xbf16, #tpu.memory_space<vmem>>, %arg9: memref<3x128x128xbf16, #tpu.memory_space<vmem>>, %arg10: memref<3x128x128xbf16, #tpu.memory_space<vmem>>, %arg11: memref<32x16xbf16, #tpu.memory_space<vmem>>, %arg12: memref<64x128xbf16, #tpu.memory_space<vmem>>, %arg13: memref<3x384x128xbf16, #tpu.memory_space<vmem>>, %arg14: memref<3x128xf32, #tpu.memory_space<vmem>>, %arg15: memref<2x16x64xf32, #tpu.memory_space<vmem>>, %arg16: memref<2x32x128xf32, #tpu.memory_space<vmem>>, %arg17: memref<2x16x128xf32, #tpu.memory_space<vmem>>, %arg18: memref<2x16x128xf32, #tpu.memory_space<vmem>>, %arg19: memref<2x16x128xf32, #tpu.memory_space<vmem>>) attributes {dimension_semantics = [#tpu.dimension_semantics<parallel>], iteration_bounds = array<i64: 2>, scalar_prefetch = 0 : i64, scratch_operands = 0 : i64, tpu.core_type = #tpu.core_type<tc>, window_params = [{transform_indices = @transform_0, window_bounds = array<i64: 2, 16, 128>}, {transform_indices = @transform_1, window_bounds = array<i64: 2, 8, 64>}, {transform_indices = @transform_2, window_bounds = array<i64: 2, 8, 64>}, {pipeline_mode = #tpu.pipeline_mode<synchronous>, transform_indices = @transform_3, window_bounds = array<i64: 3, 64, 64>}, {pipeline_mode = #tpu.pipeline_mode<synchronous>, transform_indices = @transform_4, window_bounds = array<i64: 3, 64>}, {pipeline_mode = #tpu.pipeline_mode<synchronous>, transform_indices = @transform_5, window_bounds = array<i64: 64, 64>}, {pipeline_mode = #tpu.pipeline_mode<synchronous>, transform_indices = @transform_6, window_bounds = array<i64: 32, 16>}, {pipeline_mode = #tpu.pipeline_mode<synchronous>, transform_indices = @transform_7, window_bounds = array<i64: 64, 128>}, {pipeline_mode = #tpu.pipeline_mode<synchronous>, transform_indices = @transform_8, window_bounds = array<i64: 3, 128, 128>}, {pipeline_mode = #tpu.pipeline_mode<synchronous>, transform_indices = @transform_9, window_bounds = array<i64: 3, 128, 128>}, {pipeline_mode = #tpu.pipeline_mode<synchronous>, transform_indices = @transform_10, window_bounds = array<i64: 32, 16>}, {pipeline_mode = #tpu.pipeline_mode<synchronous>, transform_indices = @transform_11, window_bounds = array<i64: 64, 128>}, {pipeline_mode = #tpu.pipeline_mode<synchronous>, transform_indices = @transform_12, window_bounds = array<i64: 3, 384, 128>}, {pipeline_mode = #tpu.pipeline_mode<synchronous>, transform_indices = @transform_13, window_bounds = array<i64: 3, 128>}, {pipeline_mode = #tpu.pipeline_mode<synchronous>, transform_indices = @transform_14, window_bounds = array<i64: 2, 16, 64>}, {pipeline_mode = #tpu.pipeline_mode<synchronous>, transform_indices = @transform_15, window_bounds = array<i64: 2, 32, 128>}, {transform_indices = @transform_16, window_bounds = array<i64: 2, 16, 128>}, {transform_indices = @transform_17, window_bounds = array<i64: 2, 16, 128>}, {transform_indices = @transform_18, window_bounds = array<i64: 2, 16, 128>}]} {
    %c0 = arith.constant 0 : index
    %c0_0 = arith.constant 0 : index
    %0 = vector.load %arg5[%c0, %c0_0] : memref<3x64xf32, #tpu.memory_space<vmem>>, vector<3x64xf32>
    %c0_1 = arith.constant 0 : index
    %c0_2 = arith.constant 0 : index
    %1 = vector.load %arg14[%c0_1, %c0_2] : memref<3x128xf32, #tpu.memory_space<vmem>>, vector<3x128xf32>
    %c0_3 = arith.constant 0 : index
    %c0_4 = arith.constant 0 : index
    %c0_5 = arith.constant 0 : index
    %2 = vector.load %arg15[%c0_3, %c0_4, %c0_5] : memref<2x16x64xf32, #tpu.memory_space<vmem>>, vector<1x16x64xf32>
    %3 = vector.shape_cast %2 : vector<1x16x64xf32> to vector<16x64xf32>
    %c1 = arith.constant 1 : index
    %c0_6 = arith.constant 0 : index
    %c0_7 = arith.constant 0 : index
    %4 = vector.load %arg15[%c1, %c0_6, %c0_7] : memref<2x16x64xf32, #tpu.memory_space<vmem>>, vector<1x16x64xf32>
    %5 = vector.shape_cast %4 : vector<1x16x64xf32> to vector<16x64xf32>
    %c0_8 = arith.constant 0 : index
    %c0_9 = arith.constant 0 : index
    %c0_10 = arith.constant 0 : index
    %6 = vector.load %arg16[%c0_8, %c0_9, %c0_10] : memref<2x32x128xf32, #tpu.memory_space<vmem>>, vector<1x32x128xf32>
    %7 = vector.shape_cast %6 : vector<1x32x128xf32> to vector<32x128xf32>
    %c1_11 = arith.constant 1 : index
    %c0_12 = arith.constant 0 : index
    %c0_13 = arith.constant 0 : index
    %8 = vector.load %arg16[%c1_11, %c0_12, %c0_13] : memref<2x32x128xf32, #tpu.memory_space<vmem>>, vector<1x32x128xf32>
    %9 = vector.shape_cast %8 : vector<1x32x128xf32> to vector<32x128xf32>
    %c0_14 = arith.constant 0 : index
    %c0_15 = arith.constant 0 : index
    %c0_16 = arith.constant 0 : index
    %10 = vector.load %arg3[%c0_14, %c0_15, %c0_16] : memref<2x8x64xf32, #tpu.memory_space<vmem>>, vector<2x8x64xf32>
    %11 = vector.shape_cast %10 : vector<2x8x64xf32> to vector<16x64xf32>
    %12 = arith.truncf %11 : vector<16x64xf32> to vector<16x64xbf16>
    %c0_17 = arith.constant 0 : index
    %c0_18 = arith.constant 0 : index
    %c0_19 = arith.constant 0 : index
    %13 = vector.load %arg4[%c0_17, %c0_18, %c0_19] : memref<3x64x64xbf16, #tpu.memory_space<vmem>>, vector<1x64x64xbf16>
    %14 = vector.shape_cast %13 : vector<1x64x64xbf16> to vector<64x64xbf16>
    %cst = arith.constant dense<0.000000e+00> : vector<16x64xf32>
    %15 = tpu.matmul %12, %14, %cst {dimension_numbers = #tpu.dot_dimension_numbers<[1], [0], [0], [1], [0, 0, 1, 1], [], []>} : vector<16x64xbf16>, vector<64x64xbf16>, vector<16x64xf32> -> vector<16x64xf32>
    %c1_20 = arith.constant 1 : index
    %c0_21 = arith.constant 0 : index
    %c0_22 = arith.constant 0 : index
    %16 = vector.load %arg4[%c1_20, %c0_21, %c0_22] : memref<3x64x64xbf16, #tpu.memory_space<vmem>>, vector<1x64x64xbf16>
    %17 = vector.shape_cast %16 : vector<1x64x64xbf16> to vector<64x64xbf16>
    %cst_23 = arith.constant dense<0.000000e+00> : vector<16x64xf32>
    %18 = tpu.matmul %12, %17, %cst_23 {dimension_numbers = #tpu.dot_dimension_numbers<[1], [0], [0], [1], [0, 0, 1, 1], [], []>} : vector<16x64xbf16>, vector<64x64xbf16>, vector<16x64xf32> -> vector<16x64xf32>
    %c2 = arith.constant 2 : index
    %c0_24 = arith.constant 0 : index
    %c0_25 = arith.constant 0 : index
    %19 = vector.load %arg4[%c2, %c0_24, %c0_25] : memref<3x64x64xbf16, #tpu.memory_space<vmem>>, vector<1x64x64xbf16>
    %20 = vector.shape_cast %19 : vector<1x64x64xbf16> to vector<64x64xbf16>
    %cst_26 = arith.constant dense<0.000000e+00> : vector<16x64xf32>
    %21 = tpu.matmul %12, %20, %cst_26 {dimension_numbers = #tpu.dot_dimension_numbers<[1], [0], [0], [1], [0, 0, 1, 1], [], []>} : vector<16x64xbf16>, vector<64x64xbf16>, vector<16x64xf32> -> vector<16x64xf32>
    %c1_i32 = arith.constant 1 : i32
    %22 = tpu.dynamic_rotate %15 by %c1_i32 dim 0 : vector<16x64xf32>, i32 -> vector<16x64xf32>
    %23 = arith.mulf %22, %3 : vector<16x64xf32>
    %c15_i32 = arith.constant 15 : i32
    %24 = tpu.dynamic_rotate %21 by %c15_i32 dim 0 : vector<16x64xf32>, i32 -> vector<16x64xf32>
    %25 = arith.mulf %24, %5 : vector<16x64xf32>
    %26 = arith.addf %18, %23 : vector<16x64xf32>
    %27 = arith.addf %26, %25 : vector<16x64xf32>
    %28 = vector.extract_strided_slice %0 {offsets = [0, 0], sizes = [1, 64], strides = [1, 1]} : vector<3x64xf32> to vector<1x64xf32>
    %29 = vector.broadcast %28 : vector<1x64xf32> to vector<16x64xf32>
    %30 = arith.addf %27, %29 : vector<16x64xf32>
    %31 = vector.shape_cast %30 : vector<16x64xf32> to vector<2x8x64xf32>
    %cst_27 = arith.constant dense<0.000000e+00> : vector<2x64xf32>
    %32 = vector.multi_reduction <add>, %31, %cst_27 [1] : vector<2x8x64xf32> to vector<2x64xf32>
    %33 = arith.mulf %31, %31 : vector<2x8x64xf32>
    %cst_28 = arith.constant dense<0.000000e+00> : vector<2x64xf32>
    %34 = vector.multi_reduction <add>, %33, %cst_28 [1] : vector<2x8x64xf32> to vector<2x64xf32>
    %35 = tpu.concatenate %32, %34 in 0 : vector<2x64xf32>, vector<2x64xf32> -> vector<4x64xf32>
    %c0_29 = arith.constant 0 : index
    %c0_30 = arith.constant 0 : index
    %36 = vector.load %arg6[%c0_29, %c0_30] : memref<64x64xf32, #tpu.memory_space<vmem>>, vector<64x64xf32>
    %cst_31 = arith.constant dense<0.000000e+00> : vector<4x64xf32>
    %37 = tpu.matmul %35, %36, %cst_31 {dimension_numbers = #tpu.dot_dimension_numbers<[1], [0], [0], [1], [0, 0, 1, 1], [], []>} : vector<4x64xf32>, vector<64x64xf32>, vector<4x64xf32> -> vector<4x64xf32>
    %38 = vector.extract_strided_slice %37 {offsets = [0, 0], sizes = [2, 64], strides = [1, 1]} : vector<4x64xf32> to vector<2x64xf32>
    %39 = vector.extract_strided_slice %37 {offsets = [2, 0], sizes = [2, 64], strides = [1, 1]} : vector<4x64xf32> to vector<2x64xf32>
    %40 = arith.mulf %38, %38 : vector<2x64xf32>
    %41 = arith.subf %39, %40 : vector<2x64xf32>
    %cst_32 = arith.constant 0.000000e+00 : f32
    %42 = vector.broadcast %cst_32 : f32 to vector<2x64xf32>
    %43 = arith.maximumf %41, %42 : vector<2x64xf32>
    %cst_33 = arith.constant 9.99999974E-6 : f32
    %44 = vector.broadcast %cst_33 : f32 to vector<2x64xf32>
    %45 = arith.addf %43, %44 : vector<2x64xf32>
    %46 = math.rsqrt %45 : vector<2x64xf32>
    %47 = vector.extract_strided_slice %0 {offsets = [1, 0], sizes = [1, 64], strides = [1, 1]} : vector<3x64xf32> to vector<1x64xf32>
    %48 = vector.broadcast %47 : vector<1x64xf32> to vector<2x64xf32>
    %49 = arith.mulf %46, %48 : vector<2x64xf32>
    %50 = vector.extract_strided_slice %0 {offsets = [2, 0], sizes = [1, 64], strides = [1, 1]} : vector<3x64xf32> to vector<1x64xf32>
    %51 = arith.mulf %38, %49 : vector<2x64xf32>
    %52 = vector.broadcast %50 : vector<1x64xf32> to vector<2x64xf32>
    %53 = arith.subf %52, %51 : vector<2x64xf32>
    %54 = vector.shape_cast %49 : vector<2x64xf32> to vector<2x1x64xf32>
    %55 = vector.broadcast %54 : vector<2x1x64xf32> to vector<2x8x64xf32>
    %56 = arith.mulf %31, %55 : vector<2x8x64xf32>
    %57 = vector.shape_cast %53 : vector<2x64xf32> to vector<2x1x64xf32>
    %58 = vector.broadcast %57 : vector<2x1x64xf32> to vector<2x8x64xf32>
    %59 = arith.addf %56, %58 : vector<2x8x64xf32>
    %cst_34 = arith.constant 0.000000e+00 : f32
    %60 = vector.broadcast %cst_34 : f32 to vector<2x8x64xf32>
    %61 = arith.maximumf %59, %60 : vector<2x8x64xf32>
    %62 = vector.shape_cast %61 : vector<2x8x64xf32> to vector<16x64xf32>
    %63 = arith.truncf %62 : vector<16x64xf32> to vector<16x64xbf16>
    %c0_35 = arith.constant 0 : index
    %c0_36 = arith.constant 0 : index
    %64 = vector.load %arg8[%c0_35, %c0_36] : memref<64x128xbf16, #tpu.memory_space<vmem>>, vector<64x128xbf16>
    %cst_37 = arith.constant dense<0.000000e+00> : vector<16x128xf32>
    %65 = tpu.matmul %63, %64, %cst_37 {dimension_numbers = #tpu.dot_dimension_numbers<[1], [0], [0], [1], [0, 0, 1, 1], [], []>} : vector<16x64xbf16>, vector<64x128xbf16>, vector<16x128xf32> -> vector<16x128xf32>
    %c0_38 = arith.constant 0 : index
    %c0_39 = arith.constant 0 : index
    %66 = vector.load %arg7[%c0_38, %c0_39] : memref<32x16xbf16, #tpu.memory_space<vmem>>, vector<32x16xbf16>
    %67 = arith.truncf %65 : vector<16x128xf32> to vector<16x128xbf16>
    %cst_40 = arith.constant dense<0.000000e+00> : vector<32x128xf32>
    %68 = tpu.matmul %66, %67, %cst_40 {dimension_numbers = #tpu.dot_dimension_numbers<[1], [0], [0], [1], [0, 0, 1, 1], [], []>} : vector<32x16xbf16>, vector<16x128xbf16>, vector<32x128xf32> -> vector<32x128xf32>
    %c0_41 = arith.constant 0 : index
    %c0_42 = arith.constant 0 : index
    %c0_43 = arith.constant 0 : index
    %69 = vector.load %arg1[%c0_41, %c0_42, %c0_43] : memref<2x16x128xf32, #tpu.memory_space<vmem>>, vector<2x16x128xf32>
    %70 = vector.shape_cast %69 : vector<2x16x128xf32> to vector<32x128xf32>
    %71 = arith.subf %70, %68 : vector<32x128xf32>
    %72 = arith.truncf %71 : vector<32x128xf32> to vector<32x128xbf16>
    %c0_44 = arith.constant 0 : index
    %c0_45 = arith.constant 0 : index
    %c0_46 = arith.constant 0 : index
    %73 = vector.load %arg9[%c0_44, %c0_45, %c0_46] : memref<3x128x128xbf16, #tpu.memory_space<vmem>>, vector<1x128x128xbf16>
    %74 = vector.shape_cast %73 : vector<1x128x128xbf16> to vector<128x128xbf16>
    %cst_47 = arith.constant dense<0.000000e+00> : vector<32x128xf32>
    %75 = tpu.matmul %72, %74, %cst_47 {dimension_numbers = #tpu.dot_dimension_numbers<[1], [0], [0], [1], [0, 0, 1, 1], [], []>} : vector<32x128xbf16>, vector<128x128xbf16>, vector<32x128xf32> -> vector<32x128xf32>
    %c1_48 = arith.constant 1 : index
    %c0_49 = arith.constant 0 : index
    %c0_50 = arith.constant 0 : index
    %76 = vector.load %arg9[%c1_48, %c0_49, %c0_50] : memref<3x128x128xbf16, #tpu.memory_space<vmem>>, vector<1x128x128xbf16>
    %77 = vector.shape_cast %76 : vector<1x128x128xbf16> to vector<128x128xbf16>
    %cst_51 = arith.constant dense<0.000000e+00> : vector<32x128xf32>
    %78 = tpu.matmul %72, %77, %cst_51 {dimension_numbers = #tpu.dot_dimension_numbers<[1], [0], [0], [1], [0, 0, 1, 1], [], []>} : vector<32x128xbf16>, vector<128x128xbf16>, vector<32x128xf32> -> vector<32x128xf32>
    %c2_52 = arith.constant 2 : index
    %c0_53 = arith.constant 0 : index
    %c0_54 = arith.constant 0 : index
    %79 = vector.load %arg9[%c2_52, %c0_53, %c0_54] : memref<3x128x128xbf16, #tpu.memory_space<vmem>>, vector<1x128x128xbf16>
    %80 = vector.shape_cast %79 : vector<1x128x128xbf16> to vector<128x128xbf16>
    %cst_55 = arith.constant dense<0.000000e+00> : vector<32x128xf32>
    %81 = tpu.matmul %72, %80, %cst_55 {dimension_numbers = #tpu.dot_dimension_numbers<[1], [0], [0], [1], [0, 0, 1, 1], [], []>} : vector<32x128xbf16>, vector<128x128xbf16>, vector<32x128xf32> -> vector<32x128xf32>
    %c1_i32_56 = arith.constant 1 : i32
    %82 = tpu.dynamic_rotate %75 by %c1_i32_56 dim 0 : vector<32x128xf32>, i32 -> vector<32x128xf32>
    %83 = arith.mulf %82, %7 : vector<32x128xf32>
    %c31_i32 = arith.constant 31 : i32
    %84 = tpu.dynamic_rotate %81 by %c31_i32 dim 0 : vector<32x128xf32>, i32 -> vector<32x128xf32>
    %85 = arith.mulf %84, %9 : vector<32x128xf32>
    %86 = arith.addf %78, %83 : vector<32x128xf32>
    %87 = arith.addf %86, %85 : vector<32x128xf32>
    %88 = vector.extract_strided_slice %1 {offsets = [0, 0], sizes = [1, 128], strides = [1, 1]} : vector<3x128xf32> to vector<1x128xf32>
    %89 = vector.broadcast %88 : vector<1x128xf32> to vector<32x128xf32>
    %90 = arith.addf %87, %89 : vector<32x128xf32>
    %cst_57 = arith.constant 0.000000e+00 : f32
    %91 = vector.broadcast %cst_57 : f32 to vector<32x128xf32>
    %92 = arith.subf %91, %90 : vector<32x128xf32>
    %93 = math.exp %92 : vector<32x128xf32>
    %cst_58 = arith.constant 1.000000e+00 : f32
    %94 = vector.broadcast %cst_58 : f32 to vector<32x128xf32>
    %95 = arith.addf %94, %93 : vector<32x128xf32>
    %96 = tpu.reciprocal %95 {approx = true} : vector<32x128xf32> -> vector<32x128xf32>
    %97 = arith.mulf %70, %96 : vector<32x128xf32>
    %98 = vector.shape_cast %96 : vector<32x128xf32> to vector<2x16x128xf32>
    %c0_59 = arith.constant 0 : index
    %c0_60 = arith.constant 0 : index
    %c0_61 = arith.constant 0 : index
    %99 = vector.load %arg18[%c0_59, %c0_60, %c0_61] : memref<2x16x128xf32, #tpu.memory_space<vmem>>, vector<2x16x128xf32>
    tpu.vector_store %arg18[%c0_59, %c0_60, %c0_61], %98 {strides = array<i32>} : memref<2x16x128xf32, #tpu.memory_space<vmem>>, vector<2x16x128xf32>,
    %c0_62 = arith.constant 0 : index
    %c0_63 = arith.constant 0 : index
    %c0_64 = arith.constant 0 : index
    %100 = vector.load %arg2[%c0_62, %c0_63, %c0_64] : memref<2x8x64xf32, #tpu.memory_space<vmem>>, vector<2x8x64xf32>
    %101 = vector.shape_cast %100 : vector<2x8x64xf32> to vector<16x64xf32>
    %102 = arith.truncf %101 : vector<16x64xf32> to vector<16x64xbf16>
    %c0_65 = arith.constant 0 : index
    %c0_66 = arith.constant 0 : index
    %103 = vector.load %arg12[%c0_65, %c0_66] : memref<64x128xbf16, #tpu.memory_space<vmem>>, vector<64x128xbf16>
    %cst_67 = arith.constant dense<0.000000e+00> : vector<16x128xf32>
    %104 = tpu.matmul %102, %103, %cst_67 {dimension_numbers = #tpu.dot_dimension_numbers<[1], [0], [0], [1], [0, 0, 1, 1], [], []>} : vector<16x64xbf16>, vector<64x128xbf16>, vector<16x128xf32> -> vector<16x128xf32>
    %c0_68 = arith.constant 0 : index
    %c0_69 = arith.constant 0 : index
    %105 = vector.load %arg11[%c0_68, %c0_69] : memref<32x16xbf16, #tpu.memory_space<vmem>>, vector<32x16xbf16>
    %106 = arith.truncf %104 : vector<16x128xf32> to vector<16x128xbf16>
    %cst_70 = arith.constant dense<0.000000e+00> : vector<32x128xf32>
    %107 = tpu.matmul %105, %106, %cst_70 {dimension_numbers = #tpu.dot_dimension_numbers<[1], [0], [0], [1], [0, 0, 1, 1], [], []>} : vector<32x16xbf16>, vector<16x128xbf16>, vector<32x128xf32> -> vector<32x128xf32>
    %108 = arith.subf %107, %68 : vector<32x128xf32>
    %109 = arith.truncf %108 : vector<32x128xf32> to vector<32x128xbf16>
    %c0_71 = arith.constant 0 : index
    %c0_72 = arith.constant 0 : index
    %c0_73 = arith.constant 0 : index
    %110 = vector.load %arg10[%c0_71, %c0_72, %c0_73] : memref<3x128x128xbf16, #tpu.memory_space<vmem>>, vector<1x128x128xbf16>
    %111 = vector.shape_cast %110 : vector<1x128x128xbf16> to vector<128x128xbf16>
    %cst_74 = arith.constant dense<0.000000e+00> : vector<32x128xf32>
    %112 = tpu.matmul %109, %111, %cst_74 {dimension_numbers = #tpu.dot_dimension_numbers<[1], [0], [0], [1], [0, 0, 1, 1], [], []>} : vector<32x128xbf16>, vector<128x128xbf16>, vector<32x128xf32> -> vector<32x128xf32>
    %c1_75 = arith.constant 1 : index
    %c0_76 = arith.constant 0 : index
    %c0_77 = arith.constant 0 : index
    %113 = vector.load %arg10[%c1_75, %c0_76, %c0_77] : memref<3x128x128xbf16, #tpu.memory_space<vmem>>, vector<1x128x128xbf16>
    %114 = vector.shape_cast %113 : vector<1x128x128xbf16> to vector<128x128xbf16>
    %cst_78 = arith.constant dense<0.000000e+00> : vector<32x128xf32>
    %115 = tpu.matmul %109, %114, %cst_78 {dimension_numbers = #tpu.dot_dimension_numbers<[1], [0], [0], [1], [0, 0, 1, 1], [], []>} : vector<32x128xbf16>, vector<128x128xbf16>, vector<32x128xf32> -> vector<32x128xf32>
    %c2_79 = arith.constant 2 : index
    %c0_80 = arith.constant 0 : index
    %c0_81 = arith.constant 0 : index
    %116 = vector.load %arg10[%c2_79, %c0_80, %c0_81] : memref<3x128x128xbf16, #tpu.memory_space<vmem>>, vector<1x128x128xbf16>
    %117 = vector.shape_cast %116 : vector<1x128x128xbf16> to vector<128x128xbf16>
    %cst_82 = arith.constant dense<0.000000e+00> : vector<32x128xf32>
    %118 = tpu.matmul %109, %117, %cst_82 {dimension_numbers = #tpu.dot_dimension_numbers<[1], [0], [0], [1], [0, 0, 1, 1], [], []>} : vector<32x128xbf16>, vector<128x128xbf16>, vector<32x128xf32> -> vector<32x128xf32>
    %c1_i32_83 = arith.constant 1 : i32
    %119 = tpu.dynamic_rotate %112 by %c1_i32_83 dim 0 : vector<32x128xf32>, i32 -> vector<32x128xf32>
    %120 = arith.mulf %119, %7 : vector<32x128xf32>
    %c31_i32_84 = arith.constant 31 : i32
    %121 = tpu.dynamic_rotate %118 by %c31_i32_84 dim 0 : vector<32x128xf32>, i32 -> vector<32x128xf32>
    %122 = arith.mulf %121, %9 : vector<32x128xf32>
    %123 = arith.addf %115, %120 : vector<32x128xf32>
    %124 = arith.addf %123, %122 : vector<32x128xf32>
    %125 = vector.extract_strided_slice %1 {offsets = [1, 0], sizes = [1, 128], strides = [1, 1]} : vector<3x128xf32> to vector<1x128xf32>
    %126 = vector.broadcast %125 : vector<1x128xf32> to vector<32x128xf32>
    %127 = arith.addf %124, %126 : vector<32x128xf32>
    %cst_85 = arith.constant 0.000000e+00 : f32
    %128 = vector.broadcast %cst_85 : f32 to vector<32x128xf32>
    %129 = arith.subf %128, %127 : vector<32x128xf32>
    %130 = math.exp %129 : vector<32x128xf32>
    %cst_86 = arith.constant 1.000000e+00 : f32
    %131 = vector.broadcast %cst_86 : f32 to vector<32x128xf32>
    %132 = arith.addf %131, %130 : vector<32x128xf32>
    %133 = tpu.reciprocal %132 {approx = true} : vector<32x128xf32> -> vector<32x128xf32>
    %134 = arith.mulf %107, %133 : vector<32x128xf32>
    %135 = vector.shape_cast %133 : vector<32x128xf32> to vector<2x16x128xf32>
    %c0_87 = arith.constant 0 : index
    %c0_88 = arith.constant 0 : index
    %c0_89 = arith.constant 0 : index
    %136 = vector.load %arg19[%c0_87, %c0_88, %c0_89] : memref<2x16x128xf32, #tpu.memory_space<vmem>>, vector<2x16x128xf32>
    tpu.vector_store %arg19[%c0_87, %c0_88, %c0_89], %135 {strides = array<i32>} : memref<2x16x128xf32, #tpu.memory_space<vmem>>, vector<2x16x128xf32>,
    %137 = tpu.concatenate %97, %134, %68 in 1 : vector<32x128xf32>, vector<32x128xf32>, vector<32x128xf32> -> vector<32x384xf32>
    %138 = arith.truncf %137 : vector<32x384xf32> to vector<32x384xbf16>
    %c0_90 = arith.constant 0 : index
    %c0_91 = arith.constant 0 : index
    %c0_92 = arith.constant 0 : index
    %139 = vector.load %arg13[%c0_90, %c0_91, %c0_92] : memref<3x384x128xbf16, #tpu.memory_space<vmem>>, vector<1x384x128xbf16>
    %140 = vector.shape_cast %139 : vector<1x384x128xbf16> to vector<384x128xbf16>
    %cst_93 = arith.constant dense<0.000000e+00> : vector<32x128xf32>
    %141 = tpu.matmul %138, %140, %cst_93 {dimension_numbers = #tpu.dot_dimension_numbers<[1], [0], [0], [1], [0, 0, 1, 1], [], []>} : vector<32x384xbf16>, vector<384x128xbf16>, vector<32x128xf32> -> vector<32x128xf32>
    %c1_94 = arith.constant 1 : index
    %c0_95 = arith.constant 0 : index
    %c0_96 = arith.constant 0 : index
    %142 = vector.load %arg13[%c1_94, %c0_95, %c0_96] : memref<3x384x128xbf16, #tpu.memory_space<vmem>>, vector<1x384x128xbf16>
    %143 = vector.shape_cast %142 : vector<1x384x128xbf16> to vector<384x128xbf16>
    %cst_97 = arith.constant dense<0.000000e+00> : vector<32x128xf32>
    %144 = tpu.matmul %138, %143, %cst_97 {dimension_numbers = #tpu.dot_dimension_numbers<[1], [0], [0], [1], [0, 0, 1, 1], [], []>} : vector<32x384xbf16>, vector<384x128xbf16>, vector<32x128xf32> -> vector<32x128xf32>
    %c2_98 = arith.constant 2 : index
    %c0_99 = arith.constant 0 : index
    %c0_100 = arith.constant 0 : index
    %145 = vector.load %arg13[%c2_98, %c0_99, %c0_100] : memref<3x384x128xbf16, #tpu.memory_space<vmem>>, vector<1x384x128xbf16>
    %146 = vector.shape_cast %145 : vector<1x384x128xbf16> to vector<384x128xbf16>
    %cst_101 = arith.constant dense<0.000000e+00> : vector<32x128xf32>
    %147 = tpu.matmul %138, %146, %cst_101 {dimension_numbers = #tpu.dot_dimension_numbers<[1], [0], [0], [1], [0, 0, 1, 1], [], []>} : vector<32x384xbf16>, vector<384x128xbf16>, vector<32x128xf32> -> vector<32x128xf32>
    %c1_i32_102 = arith.constant 1 : i32
    %148 = tpu.dynamic_rotate %141 by %c1_i32_102 dim 0 : vector<32x128xf32>, i32 -> vector<32x128xf32>
    %149 = arith.mulf %148, %7 : vector<32x128xf32>
    %c31_i32_103 = arith.constant 31 : i32
    %150 = tpu.dynamic_rotate %147 by %c31_i32_103 dim 0 : vector<32x128xf32>, i32 -> vector<32x128xf32>
    %151 = arith.mulf %150, %9 : vector<32x128xf32>
    %152 = arith.addf %144, %149 : vector<32x128xf32>
    %153 = arith.addf %152, %151 : vector<32x128xf32>
    %154 = vector.extract_strided_slice %1 {offsets = [2, 0], sizes = [1, 128], strides = [1, 1]} : vector<3x128xf32> to vector<1x128xf32>
    %155 = vector.broadcast %154 : vector<1x128xf32> to vector<32x128xf32>
    %156 = arith.addf %153, %155 : vector<32x128xf32>
    %157 = vector.shape_cast %156 : vector<32x128xf32> to vector<2x16x128xf32>
    %c0_104 = arith.constant 0 : index
    %c0_105 = arith.constant 0 : index
    %c0_106 = arith.constant 0 : index
    %158 = vector.load %arg17[%c0_104, %c0_105, %c0_106] : memref<2x16x128xf32, #tpu.memory_space<vmem>>, vector<2x16x128xf32>
    tpu.vector_store %arg17[%c0_104, %c0_105, %c0_106], %157 {strides = array<i32>} : memref<2x16x128xf32, #tpu.memory_space<vmem>>, vector<2x16x128xf32>,
    return
  }
  func.func @transform_0(%arg0: i32) -> (i32, i32, i32) {
    %c0_i32 = arith.constant 0 : i32
    %c0_i32_0 = arith.constant 0 : i32
    %c0_i32_1 = arith.constant 0 : i32
    return %arg0, %c0_i32, %c0_i32_0 : i32, i32, i32
  }
  func.func @transform_1(%arg0: i32) -> (i32, i32, i32) {
    %c0_i32 = arith.constant 0 : i32
    %c0_i32_0 = arith.constant 0 : i32
    %c0_i32_1 = arith.constant 0 : i32
    return %arg0, %c0_i32, %c0_i32_0 : i32, i32, i32
  }
  func.func @transform_2(%arg0: i32) -> (i32, i32, i32) {
    %c0_i32 = arith.constant 0 : i32
    %c0_i32_0 = arith.constant 0 : i32
    %c0_i32_1 = arith.constant 0 : i32
    return %arg0, %c0_i32, %c0_i32_0 : i32, i32, i32
  }
  func.func @transform_3(%arg0: i32) -> (i32, i32, i32) {
    %c0_i32 = arith.constant 0 : i32
    %c0_i32_0 = arith.constant 0 : i32
    %c0_i32_1 = arith.constant 0 : i32
    %c0_i32_2 = arith.constant 0 : i32
    return %c0_i32, %c0_i32_0, %c0_i32_1 : i32, i32, i32
  }
  func.func @transform_4(%arg0: i32) -> (i32, i32) {
    %c0_i32 = arith.constant 0 : i32
    %c0_i32_0 = arith.constant 0 : i32
    %c0_i32_1 = arith.constant 0 : i32
    return %c0_i32, %c0_i32_0 : i32, i32
  }
  func.func @transform_5(%arg0: i32) -> (i32, i32) {
    %c0_i32 = arith.constant 0 : i32
    %c0_i32_0 = arith.constant 0 : i32
    %c0_i32_1 = arith.constant 0 : i32
    return %c0_i32, %c0_i32_0 : i32, i32
  }
  func.func @transform_6(%arg0: i32) -> (i32, i32) {
    %c0_i32 = arith.constant 0 : i32
    %c0_i32_0 = arith.constant 0 : i32
    %c0_i32_1 = arith.constant 0 : i32
    return %c0_i32, %c0_i32_0 : i32, i32
  }
  func.func @transform_7(%arg0: i32) -> (i32, i32) {
    %c0_i32 = arith.constant 0 : i32
    %c0_i32_0 = arith.constant 0 : i32
    %c0_i32_1 = arith.constant 0 : i32
    return %c0_i32, %c0_i32_0 : i32, i32
  }
  func.func @transform_8(%arg0: i32) -> (i32, i32, i32) {
    %c0_i32 = arith.constant 0 : i32
    %c0_i32_0 = arith.constant 0 : i32
    %c0_i32_1 = arith.constant 0 : i32
    %c0_i32_2 = arith.constant 0 : i32
    return %c0_i32, %c0_i32_0, %c0_i32_1 : i32, i32, i32
  }
  func.func @transform_9(%arg0: i32) -> (i32, i32, i32) {
    %c0_i32 = arith.constant 0 : i32
    %c0_i32_0 = arith.constant 0 : i32
    %c0_i32_1 = arith.constant 0 : i32
    %c0_i32_2 = arith.constant 0 : i32
    return %c0_i32, %c0_i32_0, %c0_i32_1 : i32, i32, i32
  }
  func.func @transform_10(%arg0: i32) -> (i32, i32) {
    %c0_i32 = arith.constant 0 : i32
    %c0_i32_0 = arith.constant 0 : i32
    %c0_i32_1 = arith.constant 0 : i32
    return %c0_i32, %c0_i32_0 : i32, i32
  }
  func.func @transform_11(%arg0: i32) -> (i32, i32) {
    %c0_i32 = arith.constant 0 : i32
    %c0_i32_0 = arith.constant 0 : i32
    %c0_i32_1 = arith.constant 0 : i32
    return %c0_i32, %c0_i32_0 : i32, i32
  }
  func.func @transform_12(%arg0: i32) -> (i32, i32, i32) {
    %c0_i32 = arith.constant 0 : i32
    %c0_i32_0 = arith.constant 0 : i32
    %c0_i32_1 = arith.constant 0 : i32
    %c0_i32_2 = arith.constant 0 : i32
    return %c0_i32, %c0_i32_0, %c0_i32_1 : i32, i32, i32
  }
  func.func @transform_13(%arg0: i32) -> (i32, i32) {
    %c0_i32 = arith.constant 0 : i32
    %c0_i32_0 = arith.constant 0 : i32
    %c0_i32_1 = arith.constant 0 : i32
    return %c0_i32, %c0_i32_0 : i32, i32
  }
  func.func @transform_14(%arg0: i32) -> (i32, i32, i32) {
    %c0_i32 = arith.constant 0 : i32
    %c0_i32_0 = arith.constant 0 : i32
    %c0_i32_1 = arith.constant 0 : i32
    %c0_i32_2 = arith.constant 0 : i32
    return %c0_i32, %c0_i32_0, %c0_i32_1 : i32, i32, i32
  }
  func.func @transform_15(%arg0: i32) -> (i32, i32, i32) {
    %c0_i32 = arith.constant 0 : i32
    %c0_i32_0 = arith.constant 0 : i32
    %c0_i32_1 = arith.constant 0 : i32
    %c0_i32_2 = arith.constant 0 : i32
    return %c0_i32, %c0_i32_0, %c0_i32_1 : i32, i32, i32
  }
  func.func @transform_16(%arg0: i32) -> (i32, i32, i32) {
    %c0_i32 = arith.constant 0 : i32
    %c0_i32_0 = arith.constant 0 : i32
    %c0_i32_1 = arith.constant 0 : i32
    return %arg0, %c0_i32, %c0_i32_0 : i32, i32, i32
  }
  func.func @transform_17(%arg0: i32) -> (i32, i32, i32) {
    %c0_i32 = arith.constant 0 : i32
    %c0_i32_0 = arith.constant 0 : i32
    %c0_i32_1 = arith.constant 0 : i32
    return %arg0, %c0_i32, %c0_i32_0 : i32, i32, i32
  }
  func.func @transform_18(%arg0: i32) -> (i32, i32, i32) {
    %c0_i32 = arith.constant 0 : i32
    %c0_i32_0 = arith.constant 0 : i32
    %c0_i32_1 = arith.constant 0 : i32
    return %arg0, %c0_i32, %c0_i32_0 : i32, i32, i32
  }
}

</mosaic_0001>

<llo_original>
// kernel: info_block_forward.1
$region0: #{info_block_forward.1}
  #allocation0 [shape = 'u32[]', space=smem, size = 0x4, offset = 0x4, fixed_abs, tag = 'smem constant byte address 0x4 - core index']
  #allocation1 [shape = 'u32[144,128]{1,0:T(1,128)}', space=vmem, size = 0x12000, scoped, tag = 'internal scratch']
  %s0 = inlined_call_operand.vmem [shape: f32[4,16,128], index: 0, kind: input, shape index: {}]
  %s1 = inlined_call_operand.vmem [shape: f32[4,8,64], index: 1, kind: input, shape index: {}]
  %s2 = inlined_call_operand.vmem [shape: f32[4,8,64], index: 2, kind: input, shape index: {}]
  %s3 = inlined_call_operand.vmem [shape: bf16[3,64,64], index: 3, kind: input, shape index: {}]
  %s4 = inlined_call_operand.vmem [shape: f32[3,64], index: 4, kind: input, shape index: {}]
  %s5 = inlined_call_operand.vmem [shape: f32[64,64], index: 5, kind: input, shape index: {}]
  %s6 = inlined_call_operand.vmem [shape: bf16[32,16], index: 6, kind: input, shape index: {}]
  %s7 = inlined_call_operand.vmem [shape: bf16[64,128], index: 7, kind: input, shape index: {}]
  %s8 = inlined_call_operand.vmem [shape: bf16[3,128,128], index: 8, kind: input, shape index: {}]
  %s9 = inlined_call_operand.vmem [shape: bf16[3,128,128], index: 9, kind: input, shape index: {}]
  %s10 = inlined_call_operand.vmem [shape: bf16[32,16], index: 10, kind: input, shape index: {}]
  %s11 = inlined_call_operand.vmem [shape: bf16[64,128], index: 11, kind: input, shape index: {}]
  %s12 = inlined_call_operand.vmem [shape: bf16[3,384,128], index: 12, kind: input, shape index: {}]
  %s13 = inlined_call_operand.vmem [shape: f32[3,128], index: 13, kind: input, shape index: {}]
  %s14 = inlined_call_operand.vmem [shape: f32[2,16,64], index: 14, kind: input, shape index: {}]
  %s15 = inlined_call_operand.vmem [shape: f32[2,32,128], index: 15, kind: input, shape index: {}]
  %s16 = inlined_call_operand.vmem [shape: f32[4,16,128], index: 16, kind: output, shape index: {0}]
  %s17 = inlined_call_operand.vmem [shape: f32[4,16,128], index: 17, kind: output, shape index: {1}]
  %s18 = inlined_call_operand.vmem [shape: f32[4,16,128], index: 18, kind: output, shape index: {2}]
  %19 = xla_tuple %s16, %s17, %s18
  %s20 = sld [smem:[#allocation0]]
  $region113: #{info_block_forward.1} parent=0
    _
  %s22 = ssub.s32 1, %s20
  %s23 = scalar_select 0, %s22, %s20
  loop: start=0, step=1, limit=4
  $region2: #{info_block_forward.1} parent=0 // loop_pre_header
    _
  $region3: #{info_block_forward.1} parent=0 // loop_header
    %s25 = sphi 0, %s29
    %p26 = scmp.ge.s32.totalorder %s25, 4
    %s35 = sphi 0, %s37
    %s38 = sphi 0, %s35
    %s39 = sphi 0, %s38
    %s55 = sphi 0, %s39
    %s61 = sphi 0, %s63
    %s64 = sphi 0, %s61
    %s65 = sphi 0, %s64
    %s81 = sphi 0, %s65
    %s87 = sphi 0, %s89
    %s90 = sphi 0, %s87
    %s91 = sphi 0, %s90
    %s107 = sphi 0, %s91
    %s111 = sphi 0, %s111
    %s113 = sphi 0, %s111
    %s114 = sphi 0, %s113
    %s128 = sphi 0, %s114
    %s132 = sphi 0, %s132
    %s134 = sphi 0, %s132
    %s135 = sphi 0, %s134
    %s149 = sphi 0, %s135
    %s153 = sphi 0, %s153
    %s155 = sphi 0, %s153
    %s156 = sphi 0, %s155
    %s170 = sphi 0, %s156
    %s174 = sphi 0, %s174
    %s176 = sphi 0, %s174
    %s177 = sphi 0, %s176
    %s191 = sphi 0, %s177
    %s195 = sphi 0, %s195
    %s197 = sphi 0, %s195
    %s198 = sphi 0, %s197
    %s212 = sphi 0, %s198
    %s216 = sphi 0, %s216
    %s218 = sphi 0, %s216
    %s219 = sphi 0, %s218
    %s233 = sphi 0, %s219
    %s237 = sphi 0, %s237
    %s239 = sphi 0, %s237
    %s240 = sphi 0, %s239
    %s254 = sphi 0, %s240
    %s258 = sphi 0, %s258
    %s260 = sphi 0, %s258
    %s261 = sphi 0, %s260
    %s275 = sphi 0, %s261
    %s279 = sphi 0, %s279
    %s281 = sphi 0, %s279
    %s282 = sphi 0, %s281
    %s296 = sphi 0, %s282
    %s300 = sphi 0, %s300
    %s302 = sphi 0, %s300
    %s303 = sphi 0, %s302
    %s317 = sphi 0, %s303
    %s321 = sphi 0, %s321
    %s323 = sphi 0, %s321
    %s324 = sphi 0, %s323
    %s338 = sphi 0, %s324
    %s342 = sphi 0, %s342
    %s344 = sphi 0, %s342
    %s345 = sphi 0, %s344
    %s359 = sphi 0, %s345
    %s363 = sphi 0, %s363
    %s365 = sphi 0, %s363
    %s366 = sphi 0, %s365
    %s380 = sphi 0, %s366
    %s386 = sphi 0, %s388
    %s389 = sphi 0, %s386
    %s390 = sphi 0, %s389
    %s406 = sphi 0, %s390
    %s412 = sphi 0, %s414
    %s415 = sphi 0, %s412
    %s416 = sphi 0, %s415
    %s432 = sphi 0, %s416
    %s438 = sphi 0, %s440
    %s441 = sphi 0, %s438
    %s442 = sphi 0, %s441
    %s458 = sphi 0, %s442
  $region4: #{info_block_forward.1} parent=0 // loop_header_branch
    %28 = sbr.rel (%p26) target = $region8
  $region5: #{info_block_forward.1} parent=0 // loop_body
    %s30 = ssub.s32 %s25, 1
    %s31 = ssub.s32 %s25, 2
    %s32 = sadd.s32 %s25, 1
    %s33 = ssub.s32 %s25, %s32
    %p34 = scmp.eq.s32.totalorder %s33, 0
    %s36 = sadd.s32 %s35, 1
    %s37 = scalar_select %p34, %s35, %s36
    %p40 = pneg %p34
    %p41 = scmp.eq.s32.totalorder %s25, 1
    %p42 = por %p40, %p41
    %p43 = scmp.ne.s32.totalorder %s35, %s38
    %p44 = scmp.eq.s32.totalorder %s25, 0
    %p45 = por %p43, %p44
    %p46 = scmp.ne.s32.totalorder %s35, %s38
    %p47 = scmp.eq.s32.totalorder %s30, 1
    %p48 = por %p46, %p47
    %p49 = scmp.ne.s32.totalorder %s38, %s39
    %p50 = scmp.eq.s32.totalorder %s30, 0
    %p51 = por %p49, %p50
    %p52 = scmp.ne.s32.totalorder %s38, %s39
    %p53 = scmp.eq.s32.totalorder %s31, 1
    %p54 = por %p52, %p53
    %p56 = scmp.ne.s32.totalorder %s39, %s55
    %p57 = scmp.eq.s32.totalorder %s31, 0
    %p58 = por %p56, %p57
    %s59 = ssub.s32 %s25, %s32
    %p60 = scmp.eq.s32.totalorder %s59, 0
    %s62 = sadd.s32 %s61, 1
    %s63 = scalar_select %p60, %s61, %s62
    %p66 = pneg %p60
    %p67 = scmp.eq.s32.totalorder %s25, 1
    %p68 = por %p66, %p67
    %p69 = scmp.ne.s32.totalorder %s61, %s64
    %p70 = scmp.eq.s32.totalorder %s25, 0
    %p71 = por %p69, %p70
    %p72 = scmp.ne.s32.totalorder %s61, %s64
    %p73 = scmp.eq.s32.totalorder %s30, 1
    %p74 = por %p72, %p73
    %p75 = scmp.ne.s32.totalorder %s64, %s65
    %p76 = scmp.eq.s32.totalorder %s30, 0
    %p77 = por %p75, %p76
    %p78 = scmp.ne.s32.totalorder %s64, %s65
    %p79 = scmp.eq.s32.totalorder %s31, 1
    %p80 = por %p78, %p79
    %p82 = scmp.ne.s32.totalorder %s65, %s81
    %p83 = scmp.eq.s32.totalorder %s31, 0
    %p84 = por %p82, %p83
    %s85 = ssub.s32 %s25, %s32
    %p86 = scmp.eq.s32.totalorder %s85, 0
    %s88 = sadd.s32 %s87, 1
    %s89 = scalar_select %p86, %s87, %s88
    %p92 = pneg %p86
    %p93 = scmp.eq.s32.totalorder %s25, 1
    %p94 = por %p92, %p93
    %p95 = scmp.ne.s32.totalorder %s87, %s90
    %p96 = scmp.eq.s32.totalorder %s25, 0
    %p97 = por %p95, %p96
    %p98 = scmp.ne.s32.totalorder %s87, %s90
    %p99 = scmp.eq.s32.totalorder %s30, 1
    %p100 = por %p98, %p99
    %p101 = scmp.ne.s32.totalorder %s90, %s91
    %p102 = scmp.eq.s32.totalorder %s30, 0
    %p103 = por %p101, %p102
    %p104 = scmp.ne.s32.totalorder %s90, %s91
    %p105 = scmp.eq.s32.totalorder %s31, 1
    %p106 = por %p104, %p105
    %p108 = scmp.ne.s32.totalorder %s91, %s107
    %p109 = scmp.eq.s32.totalorder %s31, 0
    %p110 = por %p108, %p109
    %s112 = sadd.s32 %s111, 1
    %p115 = scmp.eq.s32.totalorder %s25, 1
    %p116 = scmp.ne.s32.totalorder %s111, %s113
    %p117 = scmp.eq.s32.totalorder %s25, 0
    %p118 = por %p116, %p117
    %p119 = scmp.ne.s32.totalorder %s111, %s113
    %p120 = scmp.eq.s32.totalorder %s30, 1
    %p121 = por %p119, %p120
    %p122 = scmp.ne.s32.totalorder %s113, %s114
    %p123 = scmp.eq.s32.totalorder %s30, 0
    %p124 = por %p122, %p123
    %p125 = scmp.ne.s32.totalorder %s113, %s114
    %p126 = scmp.eq.s32.totalorder %s31, 1
    %p127 = por %p125, %p126
    %p129 = scmp.ne.s32.totalorder %s114, %s128
    %p130 = scmp.eq.s32.totalorder %s31, 0
    %p131 = por %p129, %p130
    %s133 = sadd.s32 %s132, 1
    %p136 = scmp.eq.s32.totalorder %s25, 1
    %p137 = scmp.ne.s32.totalorder %s132, %s134
    %p138 = scmp.eq.s32.totalorder %s25, 0
    %p139 = por %p137, %p138
    %p140 = scmp.ne.s32.totalorder %s132, %s134
    %p141 = scmp.eq.s32.totalorder %s30, 1
    %p142 = por %p140, %p141
    %p143 = scmp.ne.s32.totalorder %s134, %s135
    %p144 = scmp.eq.s32.totalorder %s30, 0
    %p145 = por %p143, %p144
    %p146 = scmp.ne.s32.totalorder %s134, %s135
    %p147 = scmp.eq.s32.totalorder %s31, 1
    %p148 = por %p146, %p147
    %p150 = scmp.ne.s32.totalorder %s135, %s149
    %p151 = scmp.eq.s32.totalorder %s31, 0
    %p152 = por %p150, %p151
    %s154 = sadd.s32 %s153, 1
    %p157 = scmp.eq.s32.totalorder %s25, 1
    %p158 = scmp.ne.s32.totalorder %s153, %s155
    %p159 = scmp.eq.s32.totalorder %s25, 0
    %p160 = por %p158, %p159
    %p161 = scmp.ne.s32.totalorder %s153, %s155
    %p162 = scmp.eq.s32.totalorder %s30, 1
    %p163 = por %p161, %p162
    %p164 = scmp.ne.s32.totalorder %s155, %s156
    %p165 = scmp.eq.s32.totalorder %s30, 0
    %p166 = por %p164, %p165
    %p167 = scmp.ne.s32.totalorder %s155, %s156
    %p168 = scmp.eq.s32.totalorder %s31, 1
    %p169 = por %p167, %p168
    %p171 = scmp.ne.s32.totalorder %s156, %s170
    %p172 = scmp.eq.s32.totalorder %s31, 0
    %p173 = por %p171, %p172
    %s175 = sadd.s32 %s174, 1
    %p178 = scmp.eq.s32.totalorder %s25, 1
    %p179 = scmp.ne.s32.totalorder %s174, %s176
    %p180 = scmp.eq.s32.totalorder %s25, 0
    %p181 = por %p179, %p180
    %p182 = scmp.ne.s32.totalorder %s174, %s176
    %p183 = scmp.eq.s32.totalorder %s30, 1
    %p184 = por %p182, %p183
    %p185 = scmp.ne.s32.totalorder %s176, %s177
    %p186 = scmp.eq.s32.totalorder %s30, 0
    %p187 = por %p185, %p186
    %p188 = scmp.ne.s32.totalorder %s176, %s177
    %p189 = scmp.eq.s32.totalorder %s31, 1
    %p190 = por %p188, %p189
    %p192 = scmp.ne.s32.totalorder %s177, %s191
    %p193 = scmp.eq.s32.totalorder %s31, 0
    %p194 = por %p192, %p193
    %s196 = sadd.s32 %s195, 1
    %p199 = scmp.eq.s32.totalorder %s25, 1
    %p200 = scmp.ne.s32.totalorder %s195, %s197
    %p201 = scmp.eq.s32.totalorder %s25, 0
    %p202 = por %p200, %p201
    %p203 = scmp.ne.s32.totalorder %s195, %s197
    %p204 = scmp.eq.s32.totalorder %s30, 1
    %p205 = por %p203, %p204
    %p206 = scmp.ne.s32.totalorder %s197, %s198
    %p207 = scmp.eq.s32.totalorder %s30, 0
    %p208 = por %p206, %p207
    %p209 = scmp.ne.s32.totalorder %s197, %s198
    %p210 = scmp.eq.s32.totalorder %s31, 1
    %p211 = por %p209, %p210
    %p213 = scmp.ne.s32.totalorder %s198, %s212
    %p214 = scmp.eq.s32.totalorder %s31, 0
    %p215 = por %p213, %p214
    %s217 = sadd.s32 %s216, 1
    %p220 = scmp.eq.s32.totalorder %s25, 1
    %p221 = scmp.ne.s32.totalorder %s216, %s218
    %p222 = scmp.eq.s32.totalorder %s25, 0
    %p223 = por %p221, %p222
    %p224 = scmp.ne.s32.totalorder %s216, %s218
    %p225 = scmp.eq.s32.totalorder %s30, 1
    %p226 = por %p224, %p225
    %p227 = scmp.ne.s32.totalorder %s218, %s219
    %p228 = scmp.eq.s32.totalorder %s30, 0
    %p229 = por %p227, %p228
    %p230 = scmp.ne.s32.totalorder %s218, %s219
    %p231 = scmp.eq.s32.totalorder %s31, 1
    %p232 = por %p230, %p231
    %p234 = scmp.ne.s32.totalorder %s219, %s233
    %p235 = scmp.eq.s32.totalorder %s31, 0
    %p236 = por %p234, %p235
    %s238 = sadd.s32 %s237, 1
    %p241 = scmp.eq.s32.totalorder %s25, 1
    %p242 = scmp.ne.s32.totalorder %s237, %s239
    %p243 = scmp.eq.s32.totalorder %s25, 0
    %p244 = por %p242, %p243
    %p245 = scmp.ne.s32.totalorder %s237, %s239
    %p246 = scmp.eq.s32.totalorder %s30, 1
    %p247 = por %p245, %p246
    %p248 = scmp.ne.s32.totalorder %s239, %s240
    %p249 = scmp.eq.s32.totalorder %s30, 0
    %p250 = por %p248, %p249
    %p251 = scmp.ne.s32.totalorder %s239, %s240
    %p252 = scmp.eq.s32.totalorder %s31, 1
    %p253 = por %p251, %p252
    %p255 = scmp.ne.s32.totalorder %s240, %s254
    %p256 = scmp.eq.s32.totalorder %s31, 0
    %p257 = por %p255, %p256
    %s259 = sadd.s32 %s258, 1
    %p262 = scmp.eq.s32.totalorder %s25, 1
    %p263 = scmp.ne.s32.totalorder %s258, %s260
    %p264 = scmp.eq.s32.totalorder %s25, 0
    %p265 = por %p263, %p264
    %p266 = scmp.ne.s32.totalorder %s258, %s260
    %p267 = scmp.eq.s32.totalorder %s30, 1
    %p268 = por %p266, %p267
    %p269 = scmp.ne.s32.totalorder %s260, %s261
    %p270 = scmp.eq.s32.totalorder %s30, 0
    %p271 = por %p269, %p270
    %p272 = scmp.ne.s32.totalorder %s260, %s261
    %p273 = scmp.eq.s32.totalorder %s31, 1
    %p274 = por %p272, %p273
    %p276 = scmp.ne.s32.totalorder %s261, %s275
    %p277 = scmp.eq.s32.totalorder %s31, 0
    %p278 = por %p276, %p277
    %s280 = sadd.s32 %s279, 1
    %p283 = scmp.eq.s32.totalorder %s25, 1
    %p284 = scmp.ne.s32.totalorder %s279, %s281
    %p285 = scmp.eq.s32.totalorder %s25, 0
    %p286 = por %p284, %p285
    %p287 = scmp.ne.s32.totalorder %s279, %s281
    %p288 = scmp.eq.s32.totalorder %s30, 1
    %p289 = por %p287, %p288
    %p290 = scmp.ne.s32.totalorder %s281, %s282
    %p291 = scmp.eq.s32.totalorder %s30, 0
    %p292 = por %p290, %p291
    %p293 = scmp.ne.s32.totalorder %s281, %s282
    %p294 = scmp.eq.s32.totalorder %s31, 1
    %p295 = por %p293, %p294
    %p297 = scmp.ne.s32.totalorder %s282, %s296
    %p298 = scmp.eq.s32.totalorder %s31, 0
    %p299 = por %p297, %p298
    %s301 = sadd.s32 %s300, 1
    %p304 = scmp.eq.s32.totalorder %s25, 1
    %p305 = scmp.ne.s32.totalorder %s300, %s302
    %p306 = scmp.eq.s32.totalorder %s25, 0
    %p307 = por %p305, %p306
    %p308 = scmp.ne.s32.totalorder %s300, %s302
    %p309 = scmp.eq.s32.totalorder %s30, 1
    %p310 = por %p308, %p309
    %p311 = scmp.ne.s32.totalorder %s302, %s303
    %p312 = scmp.eq.s32.totalorder %s30, 0
    %p313 = por %p311, %p312
    %p314 = scmp.ne.s32.totalorder %s302, %s303
    %p315 = scmp.eq.s32.totalorder %s31, 1
    %p316 = por %p314, %p315
    %p318 = scmp.ne.s32.totalorder %s303, %s317
    %p319 = scmp.eq.s32.totalorder %s31, 0
    %p320 = por %p318, %p319
    %s322 = sadd.s32 %s321, 1
    %p325 = scmp.eq.s32.totalorder %s25, 1
    %p326 = scmp.ne.s32.totalorder %s321, %s323
    %p327 = scmp.eq.s32.totalorder %s25, 0
    %p328 = por %p326, %p327
    %p329 = scmp.ne.s32.totalorder %s321, %s323
    %p330 = scmp.eq.s32.totalorder %s30, 1
    %p331 = por %p329, %p330
    %p332 = scmp.ne.s32.totalorder %s323, %s324
    %p333 = scmp.eq.s32.totalorder %s30, 0
    %p334 = por %p332, %p333
    %p335 = scmp.ne.s32.totalorder %s323, %s324
    %p336 = scmp.eq.s32.totalorder %s31, 1
    %p337 = por %p335, %p336
    %p339 = scmp.ne.s32.totalorder %s324, %s338
    %p340 = scmp.eq.s32.totalorder %s31, 0
    %p341 = por %p339, %p340
    %s343 = sadd.s32 %s342, 1
    %p346 = scmp.eq.s32.totalorder %s25, 1
    %p347 = scmp.ne.s32.totalorder %s342, %s344
    %p348 = scmp.eq.s32.totalorder %s25, 0
    %p349 = por %p347, %p348
    %p350 = scmp.ne.s32.totalorder %s342, %s344
    %p351 = scmp.eq.s32.totalorder %s30, 1
    %p352 = por %p350, %p351
    %p353 = scmp.ne.s32.totalorder %s344, %s345
    %p354 = scmp.eq.s32.totalorder %s30, 0
    %p355 = por %p353, %p354
    %p356 = scmp.ne.s32.totalorder %s344, %s345
    %p357 = scmp.eq.s32.totalorder %s31, 1
    %p358 = por %p356, %p357
    %p360 = scmp.ne.s32.totalorder %s345, %s359
    %p361 = scmp.eq.s32.totalorder %s31, 0
    %p362 = por %p360, %p361
    %s364 = sadd.s32 %s363, 1
    %p367 = scmp.eq.s32.totalorder %s25, 1
    %p368 = scmp.ne.s32.totalorder %s363, %s365
    %p369 = scmp.eq.s32.totalorder %s25, 0
    %p370 = por %p368, %p369
    %p371 = scmp.ne.s32.totalorder %s363, %s365
    %p372 = scmp.eq.s32.totalorder %s30, 1
    %p373 = por %p371, %p372
    %p374 = scmp.ne.s32.totalorder %s365, %s366
    %p375 = scmp.eq.s32.totalorder %s30, 0
    %p376 = por %p374, %p375
    %p377 = scmp.ne.s32.totalorder %s365, %s366
    %p378 = scmp.eq.s32.totalorder %s31, 1
    %p379 = por %p377, %p378
    %p381 = scmp.ne.s32.totalorder %s366, %s380
    %p382 = scmp.eq.s32.totalorder %s31, 0
    %p383 = por %p381, %p382
    %s384 = ssub.s32 %s25, %s32
    %p385 = scmp.eq.s32.totalorder %s384, 0
    %s387 = sadd.s32 %s386, 1
    %s388 = scalar_select %p385, %s386, %s387
    %p391 = pneg %p385
    %p392 = scmp.eq.s32.totalorder %s25, 1
    %p393 = por %p391, %p392
    %p394 = scmp.ne.s32.totalorder %s386, %s389
    %p395 = scmp.eq.s32.totalorder %s25, 0
    %p396 = por %p394, %p395
    %p397 = scmp.ne.s32.totalorder %s386, %s389
    %p398 = scmp.eq.s32.totalorder %s30, 1
    %p399 = por %p397, %p398
    %p400 = scmp.ne.s32.totalorder %s389, %s390
    %p401 = scmp.eq.s32.totalorder %s30, 0
    %p402 = por %p400, %p401
    %p403 = scmp.ne.s32.totalorder %s389, %s390
    %p404 = scmp.eq.s32.totalorder %s31, 1
    %p405 = por %p403, %p404
    %p407 = scmp.ne.s32.totalorder %s390, %s406
    %p408 = scmp.eq.s32.totalorder %s31, 0
    %p409 = por %p407, %p408
    %s410 = ssub.s32 %s25, %s32
    %p411 = scmp.eq.s32.totalorder %s410, 0
    %s413 = sadd.s32 %s412, 1
    %s414 = scalar_select %p411, %s412, %s413
    %p417 = pneg %p411
    %p418 = scmp.eq.s32.totalorder %s25, 1
    %p419 = por %p417, %p418
    %p420 = scmp.ne.s32.totalorder %s412, %s415
    %p421 = scmp.eq.s32.totalorder %s25, 0
    %p422 = por %p420, %p421
    %p423 = scmp.ne.s32.totalorder %s412, %s415
    %p424 = scmp.eq.s32.totalorder %s30, 1
    %p425 = por %p423, %p424
    %p426 = scmp.ne.s32.totalorder %s415, %s416
    %p427 = scmp.eq.s32.totalorder %s30, 0
    %p428 = por %p426, %p427
    %p429 = scmp.ne.s32.totalorder %s415, %s416
    %p430 = scmp.eq.s32.totalorder %s31, 1
    %p431 = por %p429, %p430
    %p433 = scmp.ne.s32.totalorder %s416, %s432
    %p434 = scmp.eq.s32.totalorder %s31, 0
    %p435 = por %p433, %p434
    %s436 = ssub.s32 %s25, %s32
    %p437 = scmp.eq.s32.totalorder %s436, 0
    %s439 = sadd.s32 %s438, 1
    %s440 = scalar_select %p437, %s438, %s439
    %p443 = pneg %p437
    %p444 = scmp.eq.s32.totalorder %s25, 1
    %p445 = por %p443, %p444
    %p446 = scmp.ne.s32.totalorder %s438, %s441
    %p447 = scmp.eq.s32.totalorder %s25, 0
    %p448 = por %p446, %p447
    %p449 = scmp.ne.s32.totalorder %s438, %s441
    %p450 = scmp.eq.s32.totalorder %s30, 1
    %p451 = por %p449, %p450
    %p452 = scmp.ne.s32.totalorder %s441, %s442
    %p453 = scmp.eq.s32.totalorder %s30, 0
    %p454 = por %p452, %p453
    %p455 = scmp.ne.s32.totalorder %s441, %s442
    %p456 = scmp.eq.s32.totalorder %s31, 1
    %p457 = por %p455, %p456
    %p459 = scmp.ne.s32.totalorder %s442, %s458
    %p460 = scmp.eq.s32.totalorder %s31, 0
    %p461 = por %p459, %p460
    %p462 = scmp.le.s32.totalorder 1, %s25
    %p463 = scmp.lt.s32.totalorder %s25, 3
    %p464 = pnand %p462, %p463
    %p465 = pneg %p464
    // Predicated region
    $region9: #{info_block_forward.1} parent=5 // pred_check
      _
    $region10: #{info_block_forward.1} parent=5 // pred_check_branch
      %467 = sbr.rel (%p464) target = $region12
    $region11: #{info_block_forward.1} parent=5 // pred_region
      %s468 = ssub.s32 %s25, 1
      // Predicated region
      $region13: #{info_block_forward.1} parent=11 // pred_check
        %p469 = pneg %p124
      $region14: #{info_block_forward.1} parent=11 // pred_check_branch
        %471 = sbr.rel (%p469) target = $region16
      $region15: #{info_block_forward.1} parent=11 // pred_region
        _
      $region16: #{info_block_forward.1} parent=11 // pred_fallthru
        _
      // Predicated region
      $region17: #{info_block_forward.1} parent=11 // pred_check
        %p472 = pneg %p145
      $region18: #{info_block_forward.1} parent=11 // pred_check_branch
        %474 = sbr.rel (%p472) target = $region20
      $region19: #{info_block_forward.1} parent=11 // pred_region
        _
      $region20: #{info_block_forward.1} parent=11 // pred_fallthru
        _
      // Predicated region
      $region21: #{info_block_forward.1} parent=11 // pred_check
        %p475 = pneg %p166
      $region22: #{info_block_forward.1} parent=11 // pred_check_branch
        %477 = sbr.rel (%p475) target = $region24
      $region23: #{info_block_forward.1} parent=11 // pred_region
        _
      $region24: #{info_block_forward.1} parent=11 // pred_fallthru
        _
      // Predicated region
      $region25: #{info_block_forward.1} parent=11 // pred_check
        %p478 = pneg %p187
      $region26: #{info_block_forward.1} parent=11 // pred_check_branch
        %480 = sbr.rel (%p478) target = $region28
      $region27: #{info_block_forward.1} parent=11 // pred_region
        _
      $region28: #{info_block_forward.1} parent=11 // pred_fallthru
        _
      // Predicated region
      $region29: #{info_block_forward.1} parent=11 // pred_check
        %p481 = pneg %p208
      $region30: #{info_block_forward.1} parent=11 // pred_check_branch
        %483 = sbr.rel (%p481) target = $region32
      $region31: #{info_block_forward.1} parent=11 // pred_region
        _
      $region32: #{info_block_forward.1} parent=11 // pred_fallthru
        _
      // Predicated region
      $region33: #{info_block_forward.1} parent=11 // pred_check
        %p484 = pneg %p229
      $region34: #{info_block_forward.1} parent=11 // pred_check_branch
        %486 = sbr.rel (%p484) target = $region36
      $region35: #{info_block_forward.1} parent=11 // pred_region
        _
      $region36: #{info_block_forward.1} parent=11 // pred_fallthru
        _
      // Predicated region
      $region37: #{info_block_forward.1} parent=11 // pred_check
        %p487 = pneg %p250
      $region38: #{info_block_forward.1} parent=11 // pred_check_branch
        %489 = sbr.rel (%p487) target = $region40
      $region39: #{info_block_forward.1} parent=11 // pred_region
        _
      $region40: #{info_block_forward.1} parent=11 // pred_fallthru
        _
      // Predicated region
      $region41: #{info_block_forward.1} parent=11 // pred_check
        %p490 = pneg %p271
      $region42: #{info_block_forward.1} parent=11 // pred_check_branch
        %492 = sbr.rel (%p490) target = $region44
      $region43: #{info_block_forward.1} parent=11 // pred_region
        _
      $region44: #{info_block_forward.1} parent=11 // pred_fallthru
        _
      // Predicated region
      $region45: #{info_block_forward.1} parent=11 // pred_check
        %p493 = pneg %p292
      $region46: #{info_block_forward.1} parent=11 // pred_check_branch
        %495 = sbr.rel (%p493) target = $region48
      $region47: #{info_block_forward.1} parent=11 // pred_region
        _
      $region48: #{info_block_forward.1} parent=11 // pred_fallthru
        _
      // Predicated region
      $region49: #{info_block_forward.1} parent=11 // pred_check
        %p496 = pneg %p313
      $region50: #{info_block_forward.1} parent=11 // pred_check_branch
        %498 = sbr.rel (%p496) target = $region52
      $region51: #{info_block_forward.1} parent=11 // pred_region
        _
      $region52: #{info_block_forward.1} parent=11 // pred_fallthru
        _
      // Predicated region
      $region53: #{info_block_forward.1} parent=11 // pred_check
        %p499 = pneg %p334
      $region54: #{info_block_forward.1} parent=11 // pred_check_branch
        %501 = sbr.rel (%p499) target = $region56
      $region55: #{info_block_forward.1} parent=11 // pred_region
        _
      $region56: #{info_block_forward.1} parent=11 // pred_fallthru
        _
      // Predicated region
      $region57: #{info_block_forward.1} parent=11 // pred_check
        %p502 = pneg %p355
      $region58: #{info_block_forward.1} parent=11 // pred_check_branch
        %504 = sbr.rel (%p502) target = $region60
      $region59: #{info_block_forward.1} parent=11 // pred_region
        _
      $region60: #{info_block_forward.1} parent=11 // pred_fallthru
        _
      // Predicated region
      $region61: #{info_block_forward.1} parent=11 // pred_check
        %p505 = pneg %p376
      $region62: #{info_block_forward.1} parent=11 // pred_check_branch
        %507 = sbr.rel (%p505) target = $region64
      $region63: #{info_block_forward.1} parent=11 // pred_region
        _
      $region64: #{info_block_forward.1} parent=11 // pred_fallthru
        _
    $region12: #{info_block_forward.1} parent=5 // pred_fallthru
      _
    %p508 = scmp.lt.s32.totalorder %s25, 2
    // Predicated region
    $region65: #{info_block_forward.1} parent=5 // pred_check
      %p509 = pneg %p508
    $region66: #{info_block_forward.1} parent=5 // pred_check_branch
      %511 = sbr.rel (%p509) target = $region68
    $region67: #{info_block_forward.1} parent=5 // pred_region
      // Predicated region
      $region69: #{info_block_forward.1} parent=67 // pred_check
        %p512 = pneg %p45
      $region70: #{info_block_forward.1} parent=67 // pred_check_branch
        %514 = sbr.rel (%p512) target = $region72
      $region71: #{info_block_forward.1} parent=67 // pred_region
        %s515 = smul.u32 2, %s25
        %p516 = scmp.lt.s32.totalorder %s515, 3
        %s517 = scalar_select %p516, %s515, 3
        %s518 = smul.addr %s517, 2
        %s519 = smul.addr %s518, 8
        %s520 = scalar_lea.vmem %s0, %s519
        %s521 = smul.u32 2, %s25
      $region72: #{info_block_forward.1} parent=67 // pred_fallthru
        _
      // Predicated region
      $region73: #{info_block_forward.1} parent=67 // pred_check
        %p522 = pneg %p71
      $region74: #{info_block_forward.1} parent=67 // pred_check_branch
        %524 = sbr.rel (%p522) target = $region76
      $region75: #{info_block_forward.1} parent=67 // pred_region
        %s525 = smul.u32 2, %s25
        %p526 = scmp.lt.s32.totalorder %s525, 3
        %s527 = scalar_select %p526, %s525, 3
        %s528 = smul.addr %s527, 8
        %s529 = scalar_lea.vmem %s1, %s528
        %s530 = smul.u32 2, %s25
      $region76: #{info_block_forward.1} parent=67 // pred_fallthru
        _
      // Predicated region
      $region77: #{info_block_forward.1} parent=67 // pred_check
        %p531 = pneg %p97
      $region78: #{info_block_forward.1} parent=67 // pred_check_branch
        %533 = sbr.rel (%p531) target = $region80
      $region79: #{info_block_forward.1} parent=67 // pred_region
        %s534 = smul.u32 2, %s25
        %p535 = scmp.lt.s32.totalorder %s534, 3
        %s536 = scalar_select %p535, %s534, 3
        %s537 = smul.addr %s536, 8
        %s538 = scalar_lea.vmem %s2, %s537
        %s539 = smul.u32 2, %s25
      $region80: #{info_block_forward.1} parent=67 // pred_fallthru
        _
    $region68: #{info_block_forward.1} parent=5 // pred_fallthru
      _
    %p540 = scmp.le.s32.totalorder 1, %s25
    %p541 = scmp.lt.s32.totalorder %s25, 3
    %p542 = pnand %p540, %p541
    %p543 = pneg %p542
    // Predicated region
    $region81: #{info_block_forward.1} parent=5 // pred_check
      _
    $region82: #{info_block_forward.1} parent=5 // pred_check_branch
      %545 = sbr.rel (%p542) target = $region84
    $region83: #{info_block_forward.1} parent=5 // pred_region
      %s546 = ssub.s32 %s25, 1
      %s547 = smul.u32 2, %s30
      %p548 = scmp.lt.s32.totalorder %s547, 3
      %s549 = scalar_select %p548, %s547, 3
      %s550 = smul.addr %s549, 2
      %s551 = smul.addr %s550, 8
      %s552 = scalar_lea.vmem %s0, %s551
      %p553 = pneg %p51
      %p554 = pneg %p48
      %s555 = smul.u32 2, %s30
      %p556 = scmp.lt.s32.totalorder %s555, 3
      %s557 = scalar_select %p556, %s555, 3
      %s558 = smul.addr %s557, 8
      %s559 = scalar_lea.vmem %s1, %s558
      %p560 = pneg %p77
      %p561 = pneg %p74
      %s562 = smul.u32 2, %s30
      %p563 = scmp.lt.s32.totalorder %s562, 3
      %s564 = scalar_select %p563, %s562, 3
      %s565 = smul.addr %s564, 8
      %s566 = scalar_lea.vmem %s2, %s565
      %p567 = pneg %p103
      %p568 = pneg %p100
      %p569 = pneg %p124
      %p570 = pneg %p121
      %p571 = pneg %p145
      %p572 = pneg %p142
      %p573 = pneg %p166
      %p574 = pneg %p163
      %p575 = pneg %p187
      %p576 = pneg %p184
      %p577 = pneg %p208
      %p578 = pneg %p205
      %p579 = pneg %p229
      %p580 = pneg %p226
      %p581 = pneg %p250
      %p582 = pneg %p247
      %p583 = pneg %p271
      %p584 = pneg %p268
      %p585 = pneg %p292
      %p586 = pneg %p289
      %p587 = pneg %p313
      %p588 = pneg %p310
      %p589 = pneg %p334
      %p590 = pneg %p331
      %p591 = pneg %p355
      %p592 = pneg %p352
      %p593 = pneg %p376
      %p594 = pneg %p373
      %p595 = pneg %p402
      %p596 = pneg %p399
      %s597 = smul.u32 2, %s30
      %p598 = scmp.lt.s32.totalorder %s597, 3
      %s599 = scalar_select %p598, %s597, 3
      %s600 = smul.addr %s599, 2
      %s601 = smul.addr %s600, 8
      %s602 = scalar_lea.vmem %s16, %s601
      %p603 = pneg %p428
      %p604 = pneg %p425
      %s605 = smul.u32 2, %s30
      %p606 = scmp.lt.s32.totalorder %s605, 3
      %s607 = scalar_select %p606, %s605, 3
      %s608 = smul.addr %s607, 2
      %s609 = smul.addr %s608, 8
      %s610 = scalar_lea.vmem %s17, %s609
      %p611 = pneg %p454
      %p612 = pneg %p451
      %s613 = smul.u32 2, %s30
      %p614 = scmp.lt.s32.totalorder %s613, 3
      %s615 = scalar_select %p614, %s613, 3
      %s616 = smul.addr %s615, 2
      %s617 = smul.addr %s616, 8
      %s618 = scalar_lea.vmem %s18, %s617
      %s619 = smul.u32 2, %s30
      %p620 = scmp.lt.s32.totalorder %s619, 3
      %s621 = scalar_select %p620, %s619, 3
      %s622 = smul.addr %s621, 2
      %s623 = smul.addr %s622, 8
      %s624 = scalar_lea.vmem %s0, %s623
      %s625 = smul.u32 2, %s30
      %s626 = smul.u32 2, %s30
      %p627 = scmp.lt.s32.totalorder %s626, 3
      %s628 = scalar_select %p627, %s626, 3
      %s629 = smul.addr %s628, 8
      %s630 = scalar_lea.vmem %s1, %s629
      %s631 = smul.u32 2, %s30
      %s632 = smul.u32 2, %s30
      %p633 = scmp.lt.s32.totalorder %s632, 3
      %s634 = scalar_select %p633, %s632, 3
      %s635 = smul.addr %s634, 8
      %s636 = scalar_lea.vmem %s2, %s635
      %s637 = smul.u32 2, %s30
      %s638 = smul.u32 2, %s30
      %p639 = scmp.lt.s32.totalorder %s638, 3
      %s640 = scalar_select %p639, %s638, 3
      %s641 = smul.addr %s640, 2
      %s642 = smul.addr %s641, 8
      %s643 = scalar_lea.vmem %s16, %s642
      %s644 = smul.u32 2, %s30
      %s645 = smul.u32 2, %s30
      %p646 = scmp.lt.s32.totalorder %s645, 3
      %s647 = scalar_select %p646, %s645, 3
      %s648 = smul.addr %s647, 2
      %s649 = smul.addr %s648, 8
      %s650 = scalar_lea.vmem %s17, %s649
      %s651 = smul.u32 2, %s30
      %s652 = smul.u32 2, %s30
      %p653 = scmp.lt.s32.totalorder %s652, 3
      %s654 = scalar_select %p653, %s652, 3
      %s655 = smul.addr %s654, 2
      %s656 = smul.addr %s655, 8
      %s657 = scalar_lea.vmem %s18, %s656
      %s658 = smul.u32 2, %s30
      %v660 = vld [vmem:[%s4] sm:$0x7]
      %v661 = vld [vmem:[%s13] sm:$0x7]
      %v662 = vld [vmem:[%s14] sm:$0xff]
      %v663 = vld [vmem:[%s14 + $0x8] sm:$0xff]
      %s664 = scalar_lea.vmem %s14, 16
      %v665 = vld [vmem:[%s664] sm:$0xff]
      %v666 = vld [vmem:[%s664 + $0x8] sm:$0xff]
      %v667 = vld [vmem:[%s15] sm:$0xff]
      %v668 = vld [vmem:[%s15 + $0x8] sm:$0xff]
      %v669 = vld [vmem:[%s15 + $0x10] sm:$0xff]
      %v670 = vld [vmem:[%s15 + $0x18] sm:$0xff]
      %s671 = scalar_lea.vmem %s15, 32
      %v672 = vld [vmem:[%s671] sm:$0xff]
      %v673 = vld [vmem:[%s671 + $0x8] sm:$0xff]
      %v674 = vld [vmem:[%s671 + $0x10] sm:$0xff]
      %v675 = vld [vmem:[%s671 + $0x18] sm:$0xff]
      %v676 = vld [vmem:[%s636] sm:$0xff]
      %v677 = vld [vmem:[%s636 + $0x8] sm:$0xff]
      %v678 = vpack.c.bf16 %v677, %v676
      %v679 = vld [vmem:[%s3] sm:$0xf]
      %v680 = vld [vmem:[%s3 + $0x4] sm:$0xf]
      %v681 = vld [vmem:[%s3 + $0x8] sm:$0xf]
      %v682 = vld [vmem:[%s3 + $0xc] sm:$0xf]
      %v683 = vld [vmem:[%s3 + $0x10] sm:$0xf]
      %v684 = vld [vmem:[%s3 + $0x14] sm:$0xf]
      %v685 = vld [vmem:[%s3 + $0x18] sm:$0xf]
      %v686 = vld [vmem:[%s3 + $0x1c] sm:$0xf]
      %v695 = vunpack.c.l.b16 %v679
      %v696 = vunpack.c.l.b16 %v680
      %v697 = vunpack.c.l.b16 %v681
      %v698 = vunpack.c.l.b16 %v682
      %v699 = vunpack.c.l.b16 %v683
      %v700 = vunpack.c.l.b16 %v684
      %v701 = vunpack.c.l.b16 %v685
      %v702 = vunpack.c.l.b16 %v686
      %v703 = vpack.c.b16 %v696, %v695
      %v704 = vpack.c.b16 %v698, %v697
      %v705 = vpack.c.b16 %v700, %v699
      %v706 = vpack.c.b16 %v702, %v701
      %vm711 = vcmask 523264
      %v713 = vsel %vm711, %v678, 0
      %715 = vmatprep.subr.bf16.mxu0 0
      %716 = vmatpush1.bf16.msra.mxu0 0
      %717 = vmatprep.subr.bf16.mxu0 0
      %718 = vmatpush1.bf16.msra.mxu0 0
      %719 = vmatprep.subr.bf16.mxu0 0
      %720 = vmatpush1.bf16.msra.mxu0 0
      %721 = vmatprep.subr.bf16.mxu0 0
      %722 = vmatpush1.bf16.msra.mxu0 0
      %723 = vmatprep.subr.bf16.mxu0 0
      %724 = vmatpush1.bf16.msra.mxu0 %v706
      %725 = vmatprep.subr.bf16.mxu0 0
      %726 = vmatpush1.bf16.msra.mxu0 %v705
      %727 = vmatprep.subr.bf16.mxu0 0
      %728 = vmatpush1.bf16.msra.mxu0 %v704
      %729 = vmatprep.subr.bf16.mxu0 0
      %730 = vmatpush1.bf16.msra.mxu0 %v703
      %731 = vmatprep.subr.bf16.mxu0 0
      %732 = vmatpush2.bf16.msra.mxu0 0
      %733 = vmatprep.subr.bf16.mxu0 0
      %734 = vmatpush2.bf16.msra.mxu0 0
      %735 = vmatprep.subr.bf16.mxu0 0
      %736 = vmatpush2.bf16.msra.mxu0 0
      %737 = vmatprep.subr.bf16.mxu0 0
      %738 = vmatpush2.bf16.msra.mxu0 0
      %739 = vmatprep.subr.bf16.mxu0 0
      %740 = vmatpush2.bf16.msra.mxu0 0
      %741 = vmatprep.subr.bf16.mxu0 0
      %742 = vmatpush2.bf16.msra.mxu0 0
      %743 = vmatprep.subr.bf16.mxu0 0
      %744 = vmatpush2.bf16.msra.mxu0 0
      %745 = vmatprep.subr.bf16.mxu0 0
      %746 = vmatpush2.bf16.msra.mxu0 0
      %747 = vmatprep.mubr.bf16.mxu0 0
      %748 = vmatmul.mubr.bf16.gmra.mxu0 %v713
      %v749 = vpop.f32.mrf.mxu0
      %v750 = vadd.f32 0.0, %v749
      %v751 = vpop.f32.mrf.mxu0
      %v752 = vpop.f32.mrf.mxu0
      %v753 = vadd.f32 0.0, %v752
      %v754 = vpop.f32.mrf.mxu0
      %755 = vdwg.mxu0
      %s756 = scalar_lea.vmem %s3, 32
      %v757 = vld [vmem:[%s756] sm:$0xf]
      %v758 = vld [vmem:[%s756 + $0x4] sm:$0xf]
      %v759 = vld [vmem:[%s756 + $0x8] sm:$0xf]
      %v760 = vld [vmem:[%s756 + $0xc] sm:$0xf]
      %v761 = vld [vmem:[%s756 + $0x10] sm:$0xf]
      %v762 = vld [vmem:[%s756 + $0x14] sm:$0xf]
      %v763 = vld [vmem:[%s756 + $0x18] sm:$0xf]
      %v764 = vld [vmem:[%s756 + $0x1c] sm:$0xf]
      %s765 = scalar_lea.vmem %s3, 64
      %v766 = vld [vmem:[%s765] sm:$0xf]
      %v767 = vld [vmem:[%s765 + $0x4] sm:$0xf]
      %v768 = vld [vmem:[%s765 + $0x8] sm:$0xf]
      %v769 = vld [vmem:[%s765 + $0xc] sm:$0xf]
      %v770 = vld [vmem:[%s765 + $0x10] sm:$0xf]
      %v771 = vld [vmem:[%s765 + $0x14] sm:$0xf]
      %v772 = vld [vmem:[%s765 + $0x18] sm:$0xf]
      %v773 = vld [vmem:[%s765 + $0x1c] sm:$0xf]
      %v782 = vunpack.c.l.b16 %v766
      %v783 = vunpack.c.l.b16 %v767
      %v784 = vunpack.c.l.b16 %v768
      %v785 = vunpack.c.l.b16 %v769
      %v786 = vunpack.c.l.b16 %v770
      %v787 = vunpack.c.l.b16 %v771
      %v788 = vunpack.c.l.b16 %v772
      %v789 = vunpack.c.l.b16 %v773
      %v790 = vpack.c.b16 %v783, %v782
      %v791 = vpack.c.b16 %v785, %v784
      %v792 = vpack.c.b16 %v787, %v786
      %v793 = vpack.c.b16 %v789, %v788
      %798 = vmatprep.subr.bf16.mxu0 0
      %799 = vmatpush1.bf16.msra.mxu0 0
      %800 = vmatprep.subr.bf16.mxu0 0
      %801 = vmatpush1.bf16.msra.mxu0 0
      %802 = vmatprep.subr.bf16.mxu0 0
      %803 = vmatpush1.bf16.msra.mxu0 0
      %804 = vmatprep.subr.bf16.mxu0 0
      %805 = vmatpush1.bf16.msra.mxu0 0
      %806 = vmatprep.subr.bf16.mxu0 0
      %807 = vmatpush1.bf16.msra.mxu0 %v793
      %808 = vmatprep.subr.bf16.mxu0 0
      %809 = vmatpush1.bf16.msra.mxu0 %v792
      %810 = vmatprep.subr.bf16.mxu0 0
      %811 = vmatpush1.bf16.msra.mxu0 %v791
      %812 = vmatprep.subr.bf16.mxu0 0
      %813 = vmatpush1.bf16.msra.mxu0 %v790
      %814 = vmatprep.subr.bf16.mxu0 0
      %815 = vmatpush2.bf16.msra.mxu0 0
      %816 = vmatprep.subr.bf16.mxu0 0
      %817 = vmatpush2.bf16.msra.mxu0 0
      %818 = vmatprep.subr.bf16.mxu0 0
      %819 = vmatpush2.bf16.msra.mxu0 0
      %820 = vmatprep.subr.bf16.mxu0 0
      %821 = vmatpush2.bf16.msra.mxu0 0
      %822 = vmatprep.subr.bf16.mxu0 0
      %823 = vmatpush2.bf16.msra.mxu0 0
      %824 = vmatprep.subr.bf16.mxu0 0
      %825 = vmatpush2.bf16.msra.mxu0 0
      %826 = vmatprep.subr.bf16.mxu0 0
      %827 = vmatpush2.bf16.msra.mxu0 0
      %828 = vmatprep.subr.bf16.mxu0 0
      %829 = vmatpush2.bf16.msra.mxu0 0
      %830 = vmatprep.mubr.bf16.mxu0 0
      %831 = vmatmul.mubr.bf16.gmra.mxu0 %v713
      %v832 = vpop.f32.mrf.mxu0
      %v833 = vadd.f32 0.0, %v832
      %v834 = vpop.f32.mrf.mxu0
      %v835 = vpop.f32.mrf.mxu0
      %v836 = vadd.f32 0.0, %v835
      %v837 = vpop.f32.mrf.mxu0
      %838 = vdwg.mxu0
      %v839 = vrot.slane %v750, 7
      %v840 = vrot.slane %v753, 7
      %v841 = vlaneseq
      %v842 = vshrl.u32 %v841, 7
      %vm843 = vcmp.lt.s32.totalorder %v842, 1
      %v844 = vsel %vm843, %v839, %v840
      %v845 = vsel %vm843, %v840, %v839
      %v846 = vmul.f32 %v845, %v662
      %v847 = vmul.f32 %v844, %v663
      %v848 = vrot.slane %v833, 1
      %v849 = vrot.slane %v836, 1
      %vm850 = vcmp.lt.s32.totalorder %v842, 7
      %v851 = vsel %vm850, %v848, %v849
      %v852 = vsel %vm850, %v849, %v848
      %v853 = vmul.f32 %v851, %v665
      %v854 = vmul.f32 %v852, %v666
      %v863 = vunpack.c.l.b16 %v757
      %v864 = vunpack.c.l.b16 %v758
      %v865 = vunpack.c.l.b16 %v759
      %v866 = vunpack.c.l.b16 %v760
      %v867 = vunpack.c.l.b16 %v761
      %v868 = vunpack.c.l.b16 %v762
      %v869 = vunpack.c.l.b16 %v763
      %v870 = vunpack.c.l.b16 %v764
      %v871 = vpack.c.b16 %v864, %v863
      %v872 = vpack.c.b16 %v866, %v865
      %v873 = vpack.c.b16 %v868, %v867
      %v874 = vpack.c.b16 %v870, %v869
      %879 = vmatprep.subr.bf16.mxu0 0
      %880 = vmatpush1.bf16.msra.mxu0 0
      %881 = vmatprep.subr.bf16.mxu0 0
      %882 = vmatpush1.bf16.msra.mxu0 0
      %883 = vmatprep.subr.bf16.mxu0 0
      %884 = vmatpush1.bf16.msra.mxu0 0
      %885 = vmatprep.subr.bf16.mxu0 0
      %886 = vmatpush1.bf16.msra.mxu0 0
      %887 = vmatprep.subr.bf16.mxu0 0
      %888 = vmatpush1.bf16.msra.mxu0 %v874
      %889 = vmatprep.subr.bf16.mxu0 0
      %890 = vmatpush1.bf16.msra.mxu0 %v873
      %891 = vmatprep.subr.bf16.mxu0 0
      %892 = vmatpush1.bf16.msra.mxu0 %v872
      %893 = vmatprep.subr.bf16.mxu0 0
      %894 = vmatpush1.bf16.msra.mxu0 %v871
      %895 = vmatprep.subr.bf16.mxu0 0
      %896 = vmatpush2.bf16.msra.mxu0 0
      %897 = vmatprep.subr.bf16.mxu0 0
      %898 = vmatpush2.bf16.msra.mxu0 0
      %899 = vmatprep.subr.bf16.mxu0 0
      %900 = vmatpush2.bf16.msra.mxu0 0
      %901 = vmatprep.subr.bf16.mxu0 0
      %902 = vmatpush2.bf16.msra.mxu0 0
      %903 = vmatprep.subr.bf16.mxu0 0
      %904 = vmatpush2.bf16.msra.mxu0 0
      %905 = vmatprep.subr.bf16.mxu0 0
      %906 = vmatpush2.bf16.msra.mxu0 0
      %907 = vmatprep.subr.bf16.mxu0 0
      %908 = vmatpush2.bf16.msra.mxu0 0
      %909 = vmatprep.subr.bf16.mxu0 0
      %910 = vmatpush2.bf16.msra.mxu0 0
      %911 = vmatprep.mubr.bf16.mxu0 0
      %912 = vmatmul.mubr.bf16.gmra.mxu0 %v713
      %v913 = vpop.f32.mrf.mxu0
      %v914 = vadd.f32 %v846, %v913
      %v915 = vpop.f32.mrf.mxu0
      %v916 = vpop.f32.mrf.mxu0
      %v917 = vadd.f32 %v847, %v916
      %v918 = vpop.f32.mrf.mxu0
      %919 = vdwg.mxu0
      %v920 = vadd.f32 %v914, %v853
      %v921 = vadd.f32 %v917, %v854
      %v922 = vlaneseq
      %v923 = vshrl.u32 %v922, 7
      %v924 = vsub.s32 0, %v923
      %v925 = vrot.slane %v660, %v924
      %v926 = vadd.f32 %v920, %v925
      %v927 = vadd.f32 %v921, %v925
      %v928 = vsel %vm711, %v926, 0.0
      %v929 = vrot.slane %v928, 4
      %v930 = vadd.f32 %v928, %v929
      %v931 = vrot.slane %v930, 2
      %v932 = vadd.f32 %v930, %v931
      %v933 = vrot.slane %v932, 1
      %v934 = vadd.f32 %v932, %v933
      %v935 = vsel %vm711, %v927, 0.0
      %v936 = vrot.slane %v935, 4
      %v937 = vadd.f32 %v935, %v936
      %v938 = vrot.slane %v937, 2
      %v939 = vadd.f32 %v937, %v938
      %v940 = vrot.slane %v939, 1
      %v941 = vadd.f32 %v939, %v940
      %v942 = vmul.f32 %v926, %v926
      %v943 = vmul.f32 %v927, %v927
      %v944 = vsel %vm711, %v942, 0.0
      %v945 = vrot.slane %v944, 4
      %v946 = vadd.f32 %v944, %v945
      %v947 = vrot.slane %v946, 2
      %v948 = vadd.f32 %v946, %v947
      %v949 = vrot.slane %v948, 1
      %v950 = vadd.f32 %v948, %v949
      %v951 = vsel %vm711, %v943, 0.0
      %v952 = vrot.slane %v951, 4
      %v953 = vadd.f32 %v951, %v952
      %v954 = vrot.slane %v953, 2
      %v955 = vadd.f32 %v953, %v954
      %v956 = vrot.slane %v955, 1
      %v957 = vadd.f32 %v955, %v956
      %vm960 = vcmask 1041409
      %v961 = vsel %vm960, %v941, %v934
      %vm965 = vcmask 1043459
      %v966 = vsel %vm965, %v957, %v950
      %vm968 = vcmask 1041408
      %v969 = vsel %vm968, %v961, %v966
      %v970 = vld [vmem:[%s5] sm:$0xff]
      %v971 = vld [vmem:[%s5 + $0x8] sm:$0xff]
      %v972 = vld [vmem:[%s5 + $0x10] sm:$0xff]
      %v973 = vld [vmem:[%s5 + $0x18] sm:$0xff]
      %v974 = vld [vmem:[%s5 + $0x20] sm:$0xff]
      %v975 = vld [vmem:[%s5 + $0x28] sm:$0xff]
      %v976 = vld [vmem:[%s5 + $0x30] sm:$0xff]
      %v977 = vld [vmem:[%s5 + $0x38] sm:$0xff]
      %v979 = vsel %vm711, %v969, 0
      %981 = vmatprep.subr.mxu0 0.0
      %982 = vmatpush1.msra.mxu0 0.0
      %983 = vmatprep.subr.mxu0 0.0
      %984 = vmatpush1.msra.mxu0 0.0
      %985 = vmatprep.subr.mxu0 0.0
      %986 = vmatpush1.msra.mxu0 0.0
      %987 = vmatprep.subr.mxu0 0.0
      %988 = vmatpush1.msra.mxu0 0.0
      %989 = vmatprep.subr.mxu0 0.0
      %990 = vmatpush1.msra.mxu0 0.0
      %991 = vmatprep.subr.mxu0 0.0
      %992 = vmatpush1.msra.mxu0 0.0
      %993 = vmatprep.subr.mxu0 0.0
      %994 = vmatpush1.msra.mxu0 0.0
      %995 = vmatprep.subr.mxu0 0.0
      %996 = vmatpush1.msra.mxu0 0.0
      %997 = vmatprep.subr.mxu0 0.0
      %998 = vmatpush1.msra.mxu0 %v977
      %999 = vmatprep.subr.mxu0 0.0
      %1000 = vmatpush1.msra.mxu0 %v976
      %1001 = vmatprep.subr.mxu0 0.0
      %1002 = vmatpush1.msra.mxu0 %v975
      %1003 = vmatprep.subr.mxu0 0.0
      %1004 = vmatpush1.msra.mxu0 %v974
      %1005 = vmatprep.subr.mxu0 0.0
      %1006 = vmatpush1.msra.mxu0 %v973
      %1007 = vmatprep.subr.mxu0 0.0
      %1008 = vmatpush1.msra.mxu0 %v972
      %1009 = vmatprep.subr.mxu0 0.0
      %1010 = vmatpush1.msra.mxu0 %v971
      %1011 = vmatprep.subr.mxu0 0.0
      %1012 = vmatpush1.msra.mxu0 %v970
      %1013 = vmatprep.subr.mxu0 0.0
      %1014 = vmatpush2.msra.mxu0 0.0
      %1015 = vmatprep.subr.mxu0 0.0
      %1016 = vmatpush2.msra.mxu0 0.0
      %1017 = vmatprep.subr.mxu0 0.0
      %1018 = vmatpush2.msra.mxu0 0.0
      %1019 = vmatprep.subr.mxu0 0.0
      %1020 = vmatpush2.msra.mxu0 0.0
      %1021 = vmatprep.subr.mxu0 0.0
      %1022 = vmatpush2.msra.mxu0 0.0
      %1023 = vmatprep.subr.mxu0 0.0
      %1024 = vmatpush2.msra.mxu0 0.0
      %1025 = vmatprep.subr.mxu0 0.0
      %1026 = vmatpush2.msra.mxu0 0.0
      %1027 = vmatprep.subr.mxu0 0.0
      %1028 = vmatpush2.msra.mxu0 0.0
      %1029 = vmatprep.subr.mxu0 0.0
      %1030 = vmatpush2.msra.mxu0 0.0
      %1031 = vmatprep.subr.mxu0 0.0
      %1032 = vmatpush2.msra.mxu0 0.0
      %1033 = vmatprep.subr.mxu0 0.0
      %1034 = vmatpush2.msra.mxu0 0.0
      %1035 = vmatprep.subr.mxu0 0.0
      %1036 = vmatpush2.msra.mxu0 0.0
      %1037 = vmatprep.subr.mxu0 0.0
      %1038 = vmatpush2.msra.mxu0 0.0
      %1039 = vmatprep.subr.mxu0 0.0
      %1040 = vmatpush2.msra.mxu0 0.0
      %1041 = vmatprep.subr.mxu0 0.0
      %1042 = vmatpush2.msra.mxu0 0.0
      %1043 = vmatprep.subr.mxu0 0.0
      %1044 = vmatpush2.msra.mxu0 0.0
      %1045 = vmatprep.mubr.f32.mxu0 0.0
      %1046 = vmatmul.mubr.f32.gmra.mxu0 %v979
      %v1047 = vpop.f32.mrf.mxu0
      %v1048 = vadd.f32 0.0, %v1047
      %v1049 = vpop.f32.mrf.mxu0
      %1050 = vdwg.mxu0
      %v1051 = vmul.f32 %v1048, %v1048
      %v1053 = vrot.slane %v1051, 6
      %v1055 = vsub.f32 %v1048, %v1053
      %v1056 = vmax.f32 %v1055, 0.0
      %v1057 = vadd.f32 %v1056, 1e-05
      %v1058 = vrsqrt.pop %v1057
      %v1059 = vlaneseq
      %v1060 = vshrl.u32 %v1059, 7
      %v1061 = vsub.s32 1, %v1060
      %v1062 = vrot.slane %v660, %v1061
      %v1063 = vmul.f32 %v1058, %v1062
      %v1065 = vrot.slane %v1063, 2
      %v1067 = vmul.f32 %v1048, %v1065
      %v1068 = vlaneseq
      %v1069 = vshrl.u32 %v1068, 7
      %v1070 = vsub.s32 2, %v1069
      %v1071 = vrot.slane %v660, %v1070
      %v1072 = vsub.f32 %v1071, %v1067
      %v1074 = vunpack.c.l.s4 1966171168
      %v1075 = vunpack.c.0.s8 %v1074
      %v1076 = vlaneseq
      %v1077 = vshrl.u32 %v1076, 7
      %v1078 = vsub.s32 %v1075, %v1077
      %v1079 = vrot.slane %v1063, %v1078
      %v1080 = vcombine.high %v1079, %v1079
      %v1082 = vunpack.c.l.s4 1966171168
      %v1083 = vunpack.c.0.s8 %v1082
      %v1084 = vlaneseq
      %v1085 = vshrl.u32 %v1084, 7
      %v1086 = vsub.s32 %v1083, %v1085
      %v1087 = vrot.slane %v1079, %v1086
      %v1089 = vunpack.c.l.s4 1966171168
      %v1090 = vunpack.c.0.s8 %v1089
      %v1091 = vlaneseq
      %v1092 = vshrl.u32 %v1091, 7
      %v1093 = vsub.s32 %v1090, %v1092
      %v1094 = vrot.slane %v1080, %v1093
      %v1095 = vcombine.high %v1087, %v1087
      %v1096 = vcombine.high %v1094, %v1094
      %v1097 = vlaneseq
      %v1098 = vshrl.u32 %v1097, 7
      %v1099 = vsub.s32 0, %v1098
      %v1100 = vrot.slane %v1095, %v1099
      %v1101 = vlaneseq
      %v1102 = vshrl.u32 %v1101, 7
      %v1103 = vsub.s32 0, %v1102
      %v1104 = vrot.slane %v1096, %v1103
      %v1107 = vmul.f32 %v926, %v1100
      %v1108 = vmul.f32 %v927, %v1104
      %v1111 = vunpack.c.l.s4 1966171168
      %v1112 = vunpack.c.0.s8 %v1111
      %v1113 = vlaneseq
      %v1114 = vshrl.u32 %v1113, 7
      %v1115 = vsub.s32 %v1112, %v1114
      %v1116 = vrot.slane %v1072, %v1115
      %v1117 = vcombine.high %v1116, %v1116
      %v1119 = vunpack.c.l.s4 1966171168
      %v1120 = vunpack.c.0.s8 %v1119
      %v1121 = vlaneseq
      %v1122 = vshrl.u32 %v1121, 7
      %v1123 = vsub.s32 %v1120, %v1122
      %v1124 = vrot.slane %v1116, %v1123
      %v1126 = vunpack.c.l.s4 1966171168
      %v1127 = vunpack.c.0.s8 %v1126
      %v1128 = vlaneseq
      %v1129 = vshrl.u32 %v1128, 7
      %v1130 = vsub.s32 %v1127, %v1129
      %v1131 = vrot.slane %v1117, %v1130
      %v1132 = vlaneseq
      %v1133 = vshrl.u32 %v1132, 7
      %v1134 = vsub.s32 0, %v1133
      %v1135 = vrot.slane %v1124, %v1134
      %v1136 = vlaneseq
      %v1137 = vshrl.u32 %v1136, 7
      %v1138 = vsub.s32 0, %v1137
      %v1139 = vrot.slane %v1131, %v1138
      %v1142 = vadd.f32 %v1107, %v1135
      %v1143 = vadd.f32 %v1108, %v1139
      %v1144 = vmax.f32 %v1142, 0.0
      %v1145 = vmax.f32 %v1143, 0.0
      %v1146 = vpack.c.bf16 %v1145, %v1144
      %v1147 = vld [vmem:[%s7] sm:$0xf]
      %v1148 = vld [vmem:[%s7 + $0x4] sm:$0xf]
      %v1149 = vld [vmem:[%s7 + $0x8] sm:$0xf]
      %v1150 = vld [vmem:[%s7 + $0xc] sm:$0xf]
      %v1151 = vld [vmem:[%s7 + $0x10] sm:$0xf]
      %v1152 = vld [vmem:[%s7 + $0x14] sm:$0xf]
      %v1153 = vld [vmem:[%s7 + $0x18] sm:$0xf]
      %v1154 = vld [vmem:[%s7 + $0x1c] sm:$0xf]
      %v1163 = vunpack.c.l.b16 %v1147
      %v1164 = vunpack.c.l.b16 %v1148
      %v1165 = vunpack.c.l.b16 %v1149
      %v1166 = vunpack.c.l.b16 %v1150
      %v1167 = vunpack.c.l.b16 %v1151
      %v1168 = vunpack.c.l.b16 %v1152
      %v1169 = vunpack.c.l.b16 %v1153
      %v1170 = vunpack.c.l.b16 %v1154
      %v1171 = vpack.c.b16 %v1164, %v1163
      %v1172 = vpack.c.b16 %v1166, %v1165
      %v1173 = vpack.c.b16 %v1168, %v1167
      %v1174 = vpack.c.b16 %v1170, %v1169
      %v1180 = vsel %vm711, %v1146, 0
      %1182 = vmatprep.subr.bf16.mxu0 0
      %1183 = vmatpush1.bf16.msra.mxu0 0
      %1184 = vmatprep.subr.bf16.mxu0 0
      %1185 = vmatpush1.bf16.msra.mxu0 0
      %1186 = vmatprep.subr.bf16.mxu0 0
      %1187 = vmatpush1.bf16.msra.mxu0 0
      %1188 = vmatprep.subr.bf16.mxu0 0
      %1189 = vmatpush1.bf16.msra.mxu0 0
      %1190 = vmatprep.subr.bf16.mxu0 0
      %1191 = vmatpush1.bf16.msra.mxu0 %v1174
      %1192 = vmatprep.subr.bf16.mxu0 0
      %1193 = vmatpush1.bf16.msra.mxu0 %v1173
      %1194 = vmatprep.subr.bf16.mxu0 0
      %1195 = vmatpush1.bf16.msra.mxu0 %v1172
      %1196 = vmatprep.subr.bf16.mxu0 0
      %1197 = vmatpush1.bf16.msra.mxu0 %v1171
      %1198 = vmatprep.subr.bf16.mxu0 0
      %1199 = vmatpush2.bf16.msra.mxu0 0
      %1200 = vmatprep.subr.bf16.mxu0 0
      %1201 = vmatpush2.bf16.msra.mxu0 0
      %1202 = vmatprep.subr.bf16.mxu0 0
      %1203 = vmatpush2.bf16.msra.mxu0 0
      %1204 = vmatprep.subr.bf16.mxu0 0
      %1205 = vmatpush2.bf16.msra.mxu0 0
      %1206 = vmatprep.subr.bf16.mxu0 0
      %1207 = vmatpush2.bf16.msra.mxu0 0
      %1208 = vmatprep.subr.bf16.mxu0 0
      %1209 = vmatpush2.bf16.msra.mxu0 0
      %1210 = vmatprep.subr.bf16.mxu0 0
      %1211 = vmatpush2.bf16.msra.mxu0 0
      %1212 = vmatprep.subr.bf16.mxu0 0
      %1213 = vmatpush2.bf16.msra.mxu0 0
      %1214 = vmatprep.mubr.bf16.mxu0 0
      %1215 = vmatmul.mubr.bf16.gmra.mxu0 %v1180
      %v1216 = vpop.f32.mrf.mxu0
      %v1217 = vadd.f32 0.0, %v1216
      %v1218 = vpop.f32.mrf.mxu0
      %v1219 = vpop.f32.mrf.mxu0
      %v1220 = vadd.f32 0.0, %v1219
      %v1221 = vpop.f32.mrf.mxu0
      %1222 = vdwg.mxu0
      %v1223 = vld [vmem:[%s6] sm:$0xf]
      %v1224 = vld [vmem:[%s6 + $0x4] sm:$0xf]
      %v1225 = vld [vmem:[%s6 + $0x8] sm:$0xf]
      %v1226 = vld [vmem:[%s6 + $0xc] sm:$0xf]
      %v1227 = vpack.c.bf16 %v1220, %v1217
      %v1232 = vunpack.c.l.b16 %v1223
      %v1233 = vunpack.c.l.b16 %v1224
      %v1234 = vunpack.c.l.b16 %v1225
      %v1235 = vunpack.c.l.b16 %v1226
      %v1236 = vpack.c.b16 %v1233, %v1232
      %v1237 = vpack.c.b16 %v1235, %v1234
      %vm1238 = vcmask 130048
      %v1240 = vsel %vm1238, %v1236, 0
      %v1243 = vsel %vm1238, %v1237, 0
      %1245 = vmatprep.subr.bf16.mxu0 0
      %1246 = vmatpush1.bf16.msra.mxu0 0
      %1247 = vmatprep.subr.bf16.mxu0 0
      %1248 = vmatpush1.bf16.msra.mxu0 0
      %1249 = vmatprep.subr.bf16.mxu0 0
      %1250 = vmatpush1.bf16.msra.mxu0 0
      %1251 = vmatprep.subr.bf16.mxu0 0
      %1252 = vmatpush1.bf16.msra.mxu0 0
      %1253 = vmatprep.subr.bf16.mxu0 0
      %1254 = vmatpush1.bf16.msra.mxu0 0
      %1255 = vmatprep.subr.bf16.mxu0 0
      %1256 = vmatpush1.bf16.msra.mxu0 0
      %1257 = vmatprep.subr.bf16.mxu0 0
      %1258 = vmatpush1.bf16.msra.mxu0 0
      %1259 = vmatprep.subr.bf16.mxu0 0
      %1260 = vmatpush1.bf16.msra.mxu0 %v1227
      %1261 = vmatprep.subr.bf16.mxu0 0
      %1262 = vmatpush2.bf16.msra.mxu0 0
      %1263 = vmatprep.subr.bf16.mxu0 0
      %1264 = vmatpush2.bf16.msra.mxu0 0
      %1265 = vmatprep.subr.bf16.mxu0 0
      %1266 = vmatpush2.bf16.msra.mxu0 0
      %1267 = vmatprep.subr.bf16.mxu0 0
      %1268 = vmatpush2.bf16.msra.mxu0 0
      %1269 = vmatprep.subr.bf16.mxu0 0
      %1270 = vmatpush2.bf16.msra.mxu0 0
      %1271 = vmatprep.subr.bf16.mxu0 0
      %1272 = vmatpush2.bf16.msra.mxu0 0
      %1273 = vmatprep.subr.bf16.mxu0 0
      %1274 = vmatpush2.bf16.msra.mxu0 0
      %1275 = vmatprep.subr.bf16.mxu0 0
      %1276 = vmatpush2.bf16.msra.mxu0 0
      %1277 = vmatprep.mubr.bf16.mxu0 0
      %1278 = vmatmul.mubr.bf16.gmra.mxu0 %v1240
      %v1279 = vpop.f32.mrf.mxu0
      %v1280 = vadd.f32 0.0, %v1279
      %v1281 = vpop.f32.mrf.mxu0
      %v1282 = vpop.f32.mrf.mxu0
      %v1283 = vadd.f32 0.0, %v1282
      %v1284 = vpop.f32.mrf.mxu0
      %1285 = vmatprep.mubr.bf16.mxu0 0
      %1286 = vmatmul.mubr.bf16.gmra.mxu0 %v1243
      %v1287 = vpop.f32.mrf.mxu0
      %v1288 = vadd.f32 0.0, %v1287
      %v1289 = vpop.f32.mrf.mxu0
      %v1290 = vpop.f32.mrf.mxu0
      %v1291 = vadd.f32 0.0, %v1290
      %v1292 = vpop.f32.mrf.mxu0
      %1293 = vdwg.mxu0
      %v1294 = vld [vmem:[%s624] sm:$0xff]
      %v1295 = vld [vmem:[%s624 + $0x8] sm:$0xff]
      %v1296 = vld [vmem:[%s624 + $0x10] sm:$0xff]
      %v1297 = vld [vmem:[%s624 + $0x18] sm:$0xff]
      %v1298 = vsub.f32 %v1294, %v1280
      %v1299 = vsub.f32 %v1295, %v1283
      %v1300 = vsub.f32 %v1296, %v1288
      %v1301 = vsub.f32 %v1297, %v1291
      %v1302 = vpack.c.bf16 %v1299, %v1298
      %v1303 = vpack.c.bf16 %v1301, %v1300
      %v1304 = vld [vmem:[%s8] sm:$0xf]
      %v1305 = vld [vmem:[%s8 + $0x4] sm:$0xf]
      %v1306 = vld [vmem:[%s8 + $0x8] sm:$0xf]
      %v1307 = vld [vmem:[%s8 + $0xc] sm:$0xf]
      %v1308 = vld [vmem:[%s8 + $0x10] sm:$0xf]
      %v1309 = vld [vmem:[%s8 + $0x14] sm:$0xf]
      %v1310 = vld [vmem:[%s8 + $0x18] sm:$0xf]
      %v1311 = vld [vmem:[%s8 + $0x1c] sm:$0xf]
      %v1312 = vld [vmem:[%s8 + $0x20] sm:$0xf]
      %v1313 = vld [vmem:[%s8 + $0x24] sm:$0xf]
      %v1314 = vld [vmem:[%s8 + $0x28] sm:$0xf]
      %v1315 = vld [vmem:[%s8 + $0x2c] sm:$0xf]
      %v1316 = vld [vmem:[%s8 + $0x30] sm:$0xf]
      %v1317 = vld [vmem:[%s8 + $0x34] sm:$0xf]
      %v1318 = vld [vmem:[%s8 + $0x38] sm:$0xf]
      %v1319 = vld [vmem:[%s8 + $0x3c] sm:$0xf]
      %v1336 = vunpack.c.l.b16 %v1304
      %v1337 = vunpack.c.l.b16 %v1305
      %v1338 = vunpack.c.l.b16 %v1306
      %v1339 = vunpack.c.l.b16 %v1307
      %v1340 = vunpack.c.l.b16 %v1308
      %v1341 = vunpack.c.l.b16 %v1309
      %v1342 = vunpack.c.l.b16 %v1310
      %v1343 = vunpack.c.l.b16 %v1311
      %v1344 = vunpack.c.l.b16 %v1312
      %v1345 = vunpack.c.l.b16 %v1313
      %v1346 = vunpack.c.l.b16 %v1314
      %v1347 = vunpack.c.l.b16 %v1315
      %v1348 = vunpack.c.l.b16 %v1316
      %v1349 = vunpack.c.l.b16 %v1317
      %v1350 = vunpack.c.l.b16 %v1318
      %v1351 = vunpack.c.l.b16 %v1319
      %v1352 = vpack.c.b16 %v1337, %v1336
      %v1353 = vpack.c.b16 %v1339, %v1338
      %v1354 = vpack.c.b16 %v1341, %v1340
      %v1355 = vpack.c.b16 %v1343, %v1342
      %v1356 = vpack.c.b16 %v1345, %v1344
      %v1357 = vpack.c.b16 %v1347, %v1346
      %v1358 = vpack.c.b16 %v1349, %v1348
      %v1359 = vpack.c.b16 %v1351, %v1350
      %1368 = vmatprep.subr.bf16.mxu0 0
      %1369 = vmatpush1.bf16.msra.mxu0 %v1359
      %1370 = vmatprep.subr.bf16.mxu0 0
      %1371 = vmatpush1.bf16.msra.mxu0 %v1358
      %1372 = vmatprep.subr.bf16.mxu0 0
      %1373 = vmatpush1.bf16.msra.mxu0 %v1357
      %1374 = vmatprep.subr.bf16.mxu0 0
      %1375 = vmatpush1.bf16.msra.mxu0 %v1356
      %1376 = vmatprep.subr.bf16.mxu0 0
      %1377 = vmatpush1.bf16.msra.mxu0 %v1355
      %1378 = vmatprep.subr.bf16.mxu0 0
      %1379 = vmatpush1.bf16.msra.mxu0 %v1354
      %1380 = vmatprep.subr.bf16.mxu0 0
      %1381 = vmatpush1.bf16.msra.mxu0 %v1353
      %1382 = vmatprep.subr.bf16.mxu0 0
      %1383 = vmatpush1.bf16.msra.mxu0 %v1352
      %1384 = vmatprep.subr.bf16.mxu0 0
      %1385 = vmatpush2.bf16.msra.mxu0 0
      %1386 = vmatprep.subr.bf16.mxu0 0
      %1387 = vmatpush2.bf16.msra.mxu0 0
      %1388 = vmatprep.subr.bf16.mxu0 0
      %1389 = vmatpush2.bf16.msra.mxu0 0
      %1390 = vmatprep.subr.bf16.mxu0 0
      %1391 = vmatpush2.bf16.msra.mxu0 0
      %1392 = vmatprep.subr.bf16.mxu0 0
      %1393 = vmatpush2.bf16.msra.mxu0 0
      %1394 = vmatprep.subr.bf16.mxu0 0
      %1395 = vmatpush2.bf16.msra.mxu0 0
      %1396 = vmatprep.subr.bf16.mxu0 0
      %1397 = vmatpush2.bf16.msra.mxu0 0
      %1398 = vmatprep.subr.bf16.mxu0 0
      %1399 = vmatpush2.bf16.msra.mxu0 0
      %1400 = vmatprep.mubr.bf16.mxu0 0
      %1401 = vmatmul.mubr.bf16.gmra.mxu0 %v1302
      %v1402 = vpop.f32.mrf.mxu0
      %v1403 = vadd.f32 0.0, %v1402
      %v1404 = vpop.f32.mrf.mxu0
      %v1405 = vpop.f32.mrf.mxu0
      %v1406 = vadd.f32 0.0, %v1405
      %v1407 = vpop.f32.mrf.mxu0
      %1408 = vmatprep.mubr.bf16.mxu0 0
      %1409 = vmatmul.mubr.bf16.gmra.mxu0 %v1303
      %v1410 = vpop.f32.mrf.mxu0
      %v1411 = vadd.f32 0.0, %v1410
      %v1412 = vpop.f32.mrf.mxu0
      %v1413 = vpop.f32.mrf.mxu0
      %v1414 = vadd.f32 0.0, %v1413
      %v1415 = vpop.f32.mrf.mxu0
      %1416 = vdwg.mxu0
      %s1417 = scalar_lea.vmem %s8, 64
      %v1418 = vld [vmem:[%s1417] sm:$0xf]
      %v1419 = vld [vmem:[%s1417 + $0x4] sm:$0xf]
      %v1420 = vld [vmem:[%s1417 + $0x8] sm:$0xf]
      %v1421 = vld [vmem:[%s1417 + $0xc] sm:$0xf]
      %v1422 = vld [vmem:[%s1417 + $0x10] sm:$0xf]
      %v1423 = vld [vmem:[%s1417 + $0x14] sm:$0xf]
      %v1424 = vld [vmem:[%s1417 + $0x18] sm:$0xf]
      %v1425 = vld [vmem:[%s1417 + $0x1c] sm:$0xf]
      %v1426 = vld [vmem:[%s1417 + $0x20] sm:$0xf]
      %v1427 = vld [vmem:[%s1417 + $0x24] sm:$0xf]
      %v1428 = vld [vmem:[%s1417 + $0x28] sm:$0xf]
      %v1429 = vld [vmem:[%s1417 + $0x2c] sm:$0xf]
      %v1430 = vld [vmem:[%s1417 + $0x30] sm:$0xf]
      %v1431 = vld [vmem:[%s1417 + $0x34] sm:$0xf]
      %v1432 = vld [vmem:[%s1417 + $0x38] sm:$0xf]
      %v1433 = vld [vmem:[%s1417 + $0x3c] sm:$0xf]
      %s1434 = scalar_lea.vmem %s8, 128
      %v1435 = vld [vmem:[%s1434] sm:$0xf]
      %v1436 = vld [vmem:[%s1434 + $0x4] sm:$0xf]
      %v1437 = vld [vmem:[%s1434 + $0x8] sm:$0xf]
      %v1438 = vld [vmem:[%s1434 + $0xc] sm:$0xf]
      %v1439 = vld [vmem:[%s1434 + $0x10] sm:$0xf]
      %v1440 = vld [vmem:[%s1434 + $0x14] sm:$0xf]
      %v1441 = vld [vmem:[%s1434 + $0x18] sm:$0xf]
      %v1442 = vld [vmem:[%s1434 + $0x1c] sm:$0xf]
      %v1443 = vld [vmem:[%s1434 + $0x20] sm:$0xf]
      %v1444 = vld [vmem:[%s1434 + $0x24] sm:$0xf]
      %v1445 = vld [vmem:[%s1434 + $0x28] sm:$0xf]
      %v1446 = vld [vmem:[%s1434 + $0x2c] sm:$0xf]
      %v1447 = vld [vmem:[%s1434 + $0x30] sm:$0xf]
      %v1448 = vld [vmem:[%s1434 + $0x34] sm:$0xf]
      %v1449 = vld [vmem:[%s1434 + $0x38] sm:$0xf]
      %v1450 = vld [vmem:[%s1434 + $0x3c] sm:$0xf]
      %v1467 = vunpack.c.l.b16 %v1435
      %v1468 = vunpack.c.l.b16 %v1436
      %v1469 = vunpack.c.l.b16 %v1437
      %v1470 = vunpack.c.l.b16 %v1438
      %v1471 = vunpack.c.l.b16 %v1439
      %v1472 = vunpack.c.l.b16 %v1440
      %v1473 = vunpack.c.l.b16 %v1441
      %v1474 = vunpack.c.l.b16 %v1442
      %v1475 = vunpack.c.l.b16 %v1443
      %v1476 = vunpack.c.l.b16 %v1444
      %v1477 = vunpack.c.l.b16 %v1445
      %v1478 = vunpack.c.l.b16 %v1446
      %v1479 = vunpack.c.l.b16 %v1447
      %v1480 = vunpack.c.l.b16 %v1448
      %v1481 = vunpack.c.l.b16 %v1449
      %v1482 = vunpack.c.l.b16 %v1450
      %v1483 = vpack.c.b16 %v1468, %v1467
      %v1484 = vpack.c.b16 %v1470, %v1469
      %v1485 = vpack.c.b16 %v1472, %v1471
      %v1486 = vpack.c.b16 %v1474, %v1473
      %v1487 = vpack.c.b16 %v1476, %v1475
      %v1488 = vpack.c.b16 %v1478, %v1477
      %v1489 = vpack.c.b16 %v1480, %v1479
      %v1490 = vpack.c.b16 %v1482, %v1481
      %1499 = vmatprep.subr.bf16.mxu0 0
      %1500 = vmatpush1.bf16.msra.mxu0 %v1490
      %1501 = vmatprep.subr.bf16.mxu0 0
      %1502 = vmatpush1.bf16.msra.mxu0 %v1489
      %1503 = vmatprep.subr.bf16.mxu0 0
      %1504 = vmatpush1.bf16.msra.mxu0 %v1488
      %1505 = vmatprep.subr.bf16.mxu0 0
      %1506 = vmatpush1.bf16.msra.mxu0 %v1487
      %1507 = vmatprep.subr.bf16.mxu0 0
      %1508 = vmatpush1.bf16.msra.mxu0 %v1486
      %1509 = vmatprep.subr.bf16.mxu0 0
      %1510 = vmatpush1.bf16.msra.mxu0 %v1485
      %1511 = vmatprep.subr.bf16.mxu0 0
      %1512 = vmatpush1.bf16.msra.mxu0 %v1484
      %1513 = vmatprep.subr.bf16.mxu0 0
      %1514 = vmatpush1.bf16.msra.mxu0 %v1483
      %1515 = vmatprep.subr.bf16.mxu0 0
      %1516 = vmatpush2.bf16.msra.mxu0 0
      %1517 = vmatprep.subr.bf16.mxu0 0
      %1518 = vmatpush2.bf16.msra.mxu0 0
      %1519 = vmatprep.subr.bf16.mxu0 0
      %1520 = vmatpush2.bf16.msra.mxu0 0
      %1521 = vmatprep.subr.bf16.mxu0 0
      %1522 = vmatpush2.bf16.msra.mxu0 0
      %1523 = vmatprep.subr.bf16.mxu0 0
      %1524 = vmatpush2.bf16.msra.mxu0 0
      %1525 = vmatprep.subr.bf16.mxu0 0
      %1526 = vmatpush2.bf16.msra.mxu0 0
      %1527 = vmatprep.subr.bf16.mxu0 0
      %1528 = vmatpush2.bf16.msra.mxu0 0
      %1529 = vmatprep.subr.bf16.mxu0 0
      %1530 = vmatpush2.bf16.msra.mxu0 0
      %1531 = vmatprep.mubr.bf16.mxu0 0
      %1532 = vmatmul.mubr.bf16.gmra.mxu0 %v1302
      %v1533 = vpop.f32.mrf.mxu0
      %v1534 = vadd.f32 0.0, %v1533
      %v1535 = vpop.f32.mrf.mxu0
      %v1536 = vpop.f32.mrf.mxu0
      %v1537 = vadd.f32 0.0, %v1536
      %v1538 = vpop.f32.mrf.mxu0
      %1539 = vmatprep.mubr.bf16.mxu0 0
      %1540 = vmatmul.mubr.bf16.gmra.mxu0 %v1303
      %v1541 = vpop.f32.mrf.mxu0
      %v1542 = vadd.f32 0.0, %v1541
      %v1543 = vpop.f32.mrf.mxu0
      %v1544 = vpop.f32.mrf.mxu0
      %v1545 = vadd.f32 0.0, %v1544
      %v1546 = vpop.f32.mrf.mxu0
      %1547 = vdwg.mxu0
      %v1548 = vrot.slane %v1403, 7
      %v1549 = vrot.slane %v1406, 7
      %v1550 = vrot.slane %v1411, 7
      %v1551 = vrot.slane %v1414, 7
      %v1552 = vsel %vm843, %v1550, %v1551
      %v1553 = vsel %vm843, %v1549, %v1550
      %v1554 = vsel %vm843, %v1548, %v1549
      %v1555 = vsel %vm843, %v1551, %v1548
      %v1556 = vmul.f32 %v1555, %v667
      %v1557 = vmul.f32 %v1554, %v668
      %v1558 = vmul.f32 %v1553, %v669
      %v1559 = vmul.f32 %v1552, %v670
      %v1560 = vrot.slane %v1534, 1
      %v1561 = vrot.slane %v1537, 1
      %v1562 = vrot.slane %v1542, 1
      %v1563 = vrot.slane %v1545, 1
      %v1564 = vsel %vm850, %v1562, %v1563
      %v1565 = vsel %vm850, %v1561, %v1562
      %v1566 = vsel %vm850, %v1560, %v1561
      %v1567 = vsel %vm850, %v1563, %v1560
      %v1568 = vmul.f32 %v1566, %v672
      %v1569 = vmul.f32 %v1565, %v673
      %v1570 = vmul.f32 %v1564, %v674
      %v1571 = vmul.f32 %v1567, %v675
      %v1588 = vunpack.c.l.b16 %v1418
      %v1589 = vunpack.c.l.b16 %v1419
      %v1590 = vunpack.c.l.b16 %v1420
      %v1591 = vunpack.c.l.b16 %v1421
      %v1592 = vunpack.c.l.b16 %v1422
      %v1593 = vunpack.c.l.b16 %v1423
      %v1594 = vunpack.c.l.b16 %v1424
      %v1595 = vunpack.c.l.b16 %v1425
      %v1596 = vunpack.c.l.b16 %v1426
      %v1597 = vunpack.c.l.b16 %v1427
      %v1598 = vunpack.c.l.b16 %v1428
      %v1599 = vunpack.c.l.b16 %v1429
      %v1600 = vunpack.c.l.b16 %v1430
      %v1601 = vunpack.c.l.b16 %v1431
      %v1602 = vunpack.c.l.b16 %v1432
      %v1603 = vunpack.c.l.b16 %v1433
      %v1604 = vpack.c.b16 %v1589, %v1588
      %v1605 = vpack.c.b16 %v1591, %v1590
      %v1606 = vpack.c.b16 %v1593, %v1592
      %v1607 = vpack.c.b16 %v1595, %v1594
      %v1608 = vpack.c.b16 %v1597, %v1596
      %v1609 = vpack.c.b16 %v1599, %v1598
      %v1610 = vpack.c.b16 %v1601, %v1600
      %v1611 = vpack.c.b16 %v1603, %v1602
      %1620 = vmatprep.subr.bf16.mxu0 0
      %1621 = vmatpush1.bf16.msra.mxu0 %v1611
      %1622 = vmatprep.subr.bf16.mxu0 0
      %1623 = vmatpush1.bf16.msra.mxu0 %v1610
      %1624 = vmatprep.subr.bf16.mxu0 0
      %1625 = vmatpush1.bf16.msra.mxu0 %v1609
      %1626 = vmatprep.subr.bf16.mxu0 0
      %1627 = vmatpush1.bf16.msra.mxu0 %v1608
      %1628 = vmatprep.subr.bf16.mxu0 0
      %1629 = vmatpush1.bf16.msra.mxu0 %v1607
      %1630 = vmatprep.subr.bf16.mxu0 0
      %1631 = vmatpush1.bf16.msra.mxu0 %v1606
      %1632 = vmatprep.subr.bf16.mxu0 0
      %1633 = vmatpush1.bf16.msra.mxu0 %v1605
      %1634 = vmatprep.subr.bf16.mxu0 0
      %1635 = vmatpush1.bf16.msra.mxu0 %v1604
      %1636 = vmatprep.subr.bf16.mxu0 0
      %1637 = vmatpush2.bf16.msra.mxu0 0
      %1638 = vmatprep.subr.bf16.mxu0 0
      %1639 = vmatpush2.bf16.msra.mxu0 0
      %1640 = vmatprep.subr.bf16.mxu0 0
      %1641 = vmatpush2.bf16.msra.mxu0 0
      %1642 = vmatprep.subr.bf16.mxu0 0
      %1643 = vmatpush2.bf16.msra.mxu0 0
      %1644 = vmatprep.subr.bf16.mxu0 0
      %1645 = vmatpush2.bf16.msra.mxu0 0
      %1646 = vmatprep.subr.bf16.mxu0 0
      %1647 = vmatpush2.bf16.msra.mxu0 0
      %1648 = vmatprep.subr.bf16.mxu0 0
      %1649 = vmatpush2.bf16.msra.mxu0 0
      %1650 = vmatprep.subr.bf16.mxu0 0
      %1651 = vmatpush2.bf16.msra.mxu0 0
      %1652 = vmatprep.mubr.bf16.mxu0 0
      %1653 = vmatmul.mubr.bf16.gmra.mxu0 %v1302
      %v1654 = vpop.f32.mrf.mxu0
      %v1655 = vadd.f32 %v1556, %v1654
      %v1656 = vpop.f32.mrf.mxu0
      %v1657 = vpop.f32.mrf.mxu0
      %v1658 = vadd.f32 %v1557, %v1657
      %v1659 = vpop.f32.mrf.mxu0
      %1660 = vmatprep.mubr.bf16.mxu0 0
      %1661 = vmatmul.mubr.bf16.gmra.mxu0 %v1303
      %v1662 = vpop.f32.mrf.mxu0
      %v1663 = vadd.f32 %v1558, %v1662
      %v1664 = vpop.f32.mrf.mxu0
      %v1665 = vpop.f32.mrf.mxu0
      %v1666 = vadd.f32 %v1559, %v1665
      %v1667 = vpop.f32.mrf.mxu0
      %1668 = vdwg.mxu0
      %v1669 = vadd.f32 %v1655, %v1568
      %v1670 = vadd.f32 %v1658, %v1569
      %v1671 = vadd.f32 %v1663, %v1570
      %v1672 = vadd.f32 %v1666, %v1571
      %v1673 = vlaneseq
      %v1674 = vshrl.u32 %v1673, 7
      %v1675 = vsub.s32 0, %v1674
      %v1676 = vrot.slane %v661, %v1675
      %v1677 = vadd.f32 %v1669, %v1676
      %v1678 = vadd.f32 %v1670, %v1676
      %v1679 = vadd.f32 %v1671, %v1676
      %v1680 = vadd.f32 %v1672, %v1676
      %v1681 = vsub.f32 0.0, %v1677
      %v1682 = vsub.f32 0.0, %v1678
      %v1683 = vsub.f32 0.0, %v1679
      %v1684 = vsub.f32 0.0, %v1680
      %v1685 = vmul.f32 %v1681, 1.442695
      %v1686 = vpow.pop %v1685
      %v1687 = vmul.f32 %v1682, 1.442695
      %v1688 = vpow.pop %v1687
      %v1689 = vmul.f32 %v1683, 1.442695
      %v1690 = vpow.pop %v1689
      %v1691 = vmul.f32 %v1684, 1.442695
      %v1692 = vpow.pop %v1691
      %v1693 = vadd.f32 %v1686, 1.0
      %v1694 = vadd.f32 %v1688, 1.0
      %v1695 = vadd.f32 %v1690, 1.0
      %v1696 = vadd.f32 %v1692, 1.0
      %v1697 = vrcp.pop %v1693
      %v1698 = vrcp.pop %v1694
      %v1699 = vrcp.pop %v1695
      %v1700 = vrcp.pop %v1696
      %v1701 = vmul.f32 %v1294, %v1697
      %v1702 = vmul.f32 %v1295, %v1698
      %v1703 = vmul.f32 %v1296, %v1699
      %v1704 = vmul.f32 %v1297, %v1700
      %1705 = vst [vmem:[%s650] sm:$0xff] %v1697
      %1706 = vst [vmem:[%s650 + $0x8] sm:$0xff] %v1698
      %1707 = vst [vmem:[%s650 + $0x10] sm:$0xff] %v1699
      %1708 = vst [vmem:[%s650 + $0x18] sm:$0xff] %v1700
      %v1709 = vld [vmem:[%s630] sm:$0xff]
      %v1710 = vld [vmem:[%s630 + $0x8] sm:$0xff]
      %v1711 = vpack.c.bf16 %v1710, %v1709
      %v1712 = vld [vmem:[%s11] sm:$0xf]
      %v1713 = vld [vmem:[%s11 + $0x4] sm:$0xf]
      %v1714 = vld [vmem:[%s11 + $0x8] sm:$0xf]
      %v1715 = vld [vmem:[%s11 + $0xc] sm:$0xf]
      %v1716 = vld [vmem:[%s11 + $0x10] sm:$0xf]
      %v1717 = vld [vmem:[%s11 + $0x14] sm:$0xf]
      %v1718 = vld [vmem:[%s11 + $0x18] sm:$0xf]
      %v1719 = vld [vmem:[%s11 + $0x1c] sm:$0xf]
      %v1728 = vunpack.c.l.b16 %v1712
      %v1729 = vunpack.c.l.b16 %v1713
      %v1730 = vunpack.c.l.b16 %v1714
      %v1731 = vunpack.c.l.b16 %v1715
      %v1732 = vunpack.c.l.b16 %v1716
      %v1733 = vunpack.c.l.b16 %v1717
      %v1734 = vunpack.c.l.b16 %v1718
      %v1735 = vunpack.c.l.b16 %v1719
      %v1736 = vpack.c.b16 %v1729, %v1728
      %v1737 = vpack.c.b16 %v1731, %v1730
      %v1738 = vpack.c.b16 %v1733, %v1732
      %v1739 = vpack.c.b16 %v1735, %v1734
      %v1745 = vsel %vm711, %v1711, 0
      %1747 = vmatprep.subr.bf16.mxu0 0
      %1748 = vmatpush1.bf16.msra.mxu0 0
      %1749 = vmatprep.subr.bf16.mxu0 0
      %1750 = vmatpush1.bf16.msra.mxu0 0
      %1751 = vmatprep.subr.bf16.mxu0 0
      %1752 = vmatpush1.bf16.msra.mxu0 0
      %1753 = vmatprep.subr.bf16.mxu0 0
      %1754 = vmatpush1.bf16.msra.mxu0 0
      %1755 = vmatprep.subr.bf16.mxu0 0
      %1756 = vmatpush1.bf16.msra.mxu0 %v1739
      %1757 = vmatprep.subr.bf16.mxu0 0
      %1758 = vmatpush1.bf16.msra.mxu0 %v1738
      %1759 = vmatprep.subr.bf16.mxu0 0
      %1760 = vmatpush1.bf16.msra.mxu0 %v1737
      %1761 = vmatprep.subr.bf16.mxu0 0
      %1762 = vmatpush1.bf16.msra.mxu0 %v1736
      %1763 = vmatprep.subr.bf16.mxu0 0
      %1764 = vmatpush2.bf16.msra.mxu0 0
      %1765 = vmatprep.subr.bf16.mxu0 0
      %1766 = vmatpush2.bf16.msra.mxu0 0
      %1767 = vmatprep.subr.bf16.mxu0 0
      %1768 = vmatpush2.bf16.msra.mxu0 0
      %1769 = vmatprep.subr.bf16.mxu0 0
      %1770 = vmatpush2.bf16.msra.mxu0 0
      %1771 = vmatprep.subr.bf16.mxu0 0
      %1772 = vmatpush2.bf16.msra.mxu0 0
      %1773 = vmatprep.subr.bf16.mxu0 0
      %1774 = vmatpush2.bf16.msra.mxu0 0
      %1775 = vmatprep.subr.bf16.mxu0 0
      %1776 = vmatpush2.bf16.msra.mxu0 0
      %1777 = vmatprep.subr.bf16.mxu0 0
      %1778 = vmatpush2.bf16.msra.mxu0 0
      %1779 = vmatprep.mubr.bf16.mxu0 0
      %1780 = vmatmul.mubr.bf16.gmra.mxu0 %v1745
      %v1781 = vpop.f32.mrf.mxu0
      %v1782 = vadd.f32 0.0, %v1781
      %v1783 = vpop.f32.mrf.mxu0
      %v1784 = vpop.f32.mrf.mxu0
      %v1785 = vadd.f32 0.0, %v1784
      %v1786 = vpop.f32.mrf.mxu0
      %1787 = vdwg.mxu0
      %v1788 = vld [vmem:[%s10] sm:$0xf]
      %v1789 = vld [vmem:[%s10 + $0x4] sm:$0xf]
      %v1790 = vld [vmem:[%s10 + $0x8] sm:$0xf]
      %v1791 = vld [vmem:[%s10 + $0xc] sm:$0xf]
      %v1792 = vpack.c.bf16 %v1785, %v1782
      %v1797 = vunpack.c.l.b16 %v1788
      %v1798 = vunpack.c.l.b16 %v1789
      %v1799 = vunpack.c.l.b16 %v1790
      %v1800 = vunpack.c.l.b16 %v1791
      %v1801 = vpack.c.b16 %v1798, %v1797
      %v1802 = vpack.c.b16 %v1800, %v1799
      %v1804 = vsel %vm1238, %v1801, 0
      %v1807 = vsel %vm1238, %v1802, 0
      %1809 = vmatprep.subr.bf16.mxu0 0
      %1810 = vmatpush1.bf16.msra.mxu0 0
      %1811 = vmatprep.subr.bf16.mxu0 0
      %1812 = vmatpush1.bf16.msra.mxu0 0
      %1813 = vmatprep.subr.bf16.mxu0 0
      %1814 = vmatpush1.bf16.msra.mxu0 0
      %1815 = vmatprep.subr.bf16.mxu0 0
      %1816 = vmatpush1.bf16.msra.mxu0 0
      %1817 = vmatprep.subr.bf16.mxu0 0
      %1818 = vmatpush1.bf16.msra.mxu0 0
      %1819 = vmatprep.subr.bf16.mxu0 0
      %1820 = vmatpush1.bf16.msra.mxu0 0
      %1821 = vmatprep.subr.bf16.mxu0 0
      %1822 = vmatpush1.bf16.msra.mxu0 0
      %1823 = vmatprep.subr.bf16.mxu0 0
      %1824 = vmatpush1.bf16.msra.mxu0 %v1792
      %1825 = vmatprep.subr.bf16.mxu0 0
      %1826 = vmatpush2.bf16.msra.mxu0 0
      %1827 = vmatprep.subr.bf16.mxu0 0
      %1828 = vmatpush2.bf16.msra.mxu0 0
      %1829 = vmatprep.subr.bf16.mxu0 0
      %1830 = vmatpush2.bf16.msra.mxu0 0
      %1831 = vmatprep.subr.bf16.mxu0 0
      %1832 = vmatpush2.bf16.msra.mxu0 0
      %1833 = vmatprep.subr.bf16.mxu0 0
      %1834 = vmatpush2.bf16.msra.mxu0 0
      %1835 = vmatprep.subr.bf16.mxu0 0
      %1836 = vmatpush2.bf16.msra.mxu0 0
      %1837 = vmatprep.subr.bf16.mxu0 0
      %1838 = vmatpush2.bf16.msra.mxu0 0
      %1839 = vmatprep.subr.bf16.mxu0 0
      %1840 = vmatpush2.bf16.msra.mxu0 0
      %1841 = vmatprep.mubr.bf16.mxu0 0
      %1842 = vmatmul.mubr.bf16.gmra.mxu0 %v1804
      %v1843 = vpop.f32.mrf.mxu0
      %v1844 = vadd.f32 0.0, %v1843
      %v1845 = vpop.f32.mrf.mxu0
      %v1846 = vpop.f32.mrf.mxu0
      %v1847 = vadd.f32 0.0, %v1846
      %v1848 = vpop.f32.mrf.mxu0
      %1849 = vmatprep.mubr.bf16.mxu0 0
      %1850 = vmatmul.mubr.bf16.gmra.mxu0 %v1807
      %v1851 = vpop.f32.mrf.mxu0
      %v1852 = vadd.f32 0.0, %v1851
      %v1853 = vpop.f32.mrf.mxu0
      %v1854 = vpop.f32.mrf.mxu0
      %v1855 = vadd.f32 0.0, %v1854
      %v1856 = vpop.f32.mrf.mxu0
      %1857 = vdwg.mxu0
      %v1858 = vsub.f32 %v1844, %v1280
      %v1859 = vsub.f32 %v1847, %v1283
      %v1860 = vsub.f32 %v1852, %v1288
      %v1861 = vsub.f32 %v1855, %v1291
      %v1862 = vpack.c.bf16 %v1859, %v1858
      %v1863 = vpack.c.bf16 %v1861, %v1860
      %v1864 = vld [vmem:[%s9] sm:$0xf]
      %v1865 = vld [vmem:[%s9 + $0x4] sm:$0xf]
      %v1866 = vld [vmem:[%s9 + $0x8] sm:$0xf]
      %v1867 = vld [vmem:[%s9 + $0xc] sm:$0xf]
      %v1868 = vld [vmem:[%s9 + $0x10] sm:$0xf]
      %v1869 = vld [vmem:[%s9 + $0x14] sm:$0xf]
      %v1870 = vld [vmem:[%s9 + $0x18] sm:$0xf]
      %v1871 = vld [vmem:[%s9 + $0x1c] sm:$0xf]
      %v1872 = vld [vmem:[%s9 + $0x20] sm:$0xf]
      %v1873 = vld [vmem:[%s9 + $0x24] sm:$0xf]
      %v1874 = vld [vmem:[%s9 + $0x28] sm:$0xf]
      %v1875 = vld [vmem:[%s9 + $0x2c] sm:$0xf]
      %v1876 = vld [vmem:[%s9 + $0x30] sm:$0xf]
      %v1877 = vld [vmem:[%s9 + $0x34] sm:$0xf]
      %v1878 = vld [vmem:[%s9 + $0x38] sm:$0xf]
      %v1879 = vld [vmem:[%s9 + $0x3c] sm:$0xf]
      %v1896 = vunpack.c.l.b16 %v1864
      %v1897 = vunpack.c.l.b16 %v1865
      %v1898 = vunpack.c.l.b16 %v1866
      %v1899 = vunpack.c.l.b16 %v1867
      %v1900 = vunpack.c.l.b16 %v1868
      %v1901 = vunpack.c.l.b16 %v1869
      %v1902 = vunpack.c.l.b16 %v1870
      %v1903 = vunpack.c.l.b16 %v1871
      %v1904 = vunpack.c.l.b16 %v1872
      %v1905 = vunpack.c.l.b16 %v1873
      %v1906 = vunpack.c.l.b16 %v1874
      %v1907 = vunpack.c.l.b16 %v1875
      %v1908 = vunpack.c.l.b16 %v1876
      %v1909 = vunpack.c.l.b16 %v1877
      %v1910 = vunpack.c.l.b16 %v1878
      %v1911 = vunpack.c.l.b16 %v1879
      %v1912 = vpack.c.b16 %v1897, %v1896
      %v1913 = vpack.c.b16 %v1899, %v1898
      %v1914 = vpack.c.b16 %v1901, %v1900
      %v1915 = vpack.c.b16 %v1903, %v1902
      %v1916 = vpack.c.b16 %v1905, %v1904
      %v1917 = vpack.c.b16 %v1907, %v1906
      %v1918 = vpack.c.b16 %v1909, %v1908
      %v1919 = vpack.c.b16 %v1911, %v1910
      %1928 = vmatprep.subr.bf16.mxu0 0
      %1929 = vmatpush1.bf16.msra.mxu0 %v1919
      %1930 = vmatprep.subr.bf16.mxu0 0
      %1931 = vmatpush1.bf16.msra.mxu0 %v1918
      %1932 = vmatprep.subr.bf16.mxu0 0
      %1933 = vmatpush1.bf16.msra.mxu0 %v1917
      %1934 = vmatprep.subr.bf16.mxu0 0
      %1935 = vmatpush1.bf16.msra.mxu0 %v1916
      %1936 = vmatprep.subr.bf16.mxu0 0
      %1937 = vmatpush1.bf16.msra.mxu0 %v1915
      %1938 = vmatprep.subr.bf16.mxu0 0
      %1939 = vmatpush1.bf16.msra.mxu0 %v1914
      %1940 = vmatprep.subr.bf16.mxu0 0
      %1941 = vmatpush1.bf16.msra.mxu0 %v1913
      %1942 = vmatprep.subr.bf16.mxu0 0
      %1943 = vmatpush1.bf16.msra.mxu0 %v1912
      %1944 = vmatprep.subr.bf16.mxu0 0
      %1945 = vmatpush2.bf16.msra.mxu0 0
      %1946 = vmatprep.subr.bf16.mxu0 0
      %1947 = vmatpush2.bf16.msra.mxu0 0
      %1948 = vmatprep.subr.bf16.mxu0 0
      %1949 = vmatpush2.bf16.msra.mxu0 0
      %1950 = vmatprep.subr.bf16.mxu0 0
      %1951 = vmatpush2.bf16.msra.mxu0 0
      %1952 = vmatprep.subr.bf16.mxu0 0
      %1953 = vmatpush2.bf16.msra.mxu0 0
      %1954 = vmatprep.subr.bf16.mxu0 0
      %1955 = vmatpush2.bf16.msra.mxu0 0
      %1956 = vmatprep.subr.bf16.mxu0 0
      %1957 = vmatpush2.bf16.msra.mxu0 0
      %1958 = vmatprep.subr.bf16.mxu0 0
      %1959 = vmatpush2.bf16.msra.mxu0 0
      %1960 = vmatprep.mubr.bf16.mxu0 0
      %1961 = vmatmul.mubr.bf16.gmra.mxu0 %v1862
      %v1962 = vpop.f32.mrf.mxu0
      %v1963 = vadd.f32 0.0, %v1962
      %v1964 = vpop.f32.mrf.mxu0
      %v1965 = vpop.f32.mrf.mxu0
      %v1966 = vadd.f32 0.0, %v1965
      %v1967 = vpop.f32.mrf.mxu0
      %1968 = vmatprep.mubr.bf16.mxu0 0
      %1969 = vmatmul.mubr.bf16.gmra.mxu0 %v1863
      %v1970 = vpop.f32.mrf.mxu0
      %v1971 = vadd.f32 0.0, %v1970
      %v1972 = vpop.f32.mrf.mxu0
      %v1973 = vpop.f32.mrf.mxu0
      %v1974 = vadd.f32 0.0, %v1973
      %v1975 = vpop.f32.mrf.mxu0
      %1976 = vdwg.mxu0
      %s1977 = scalar_lea.vmem %s9, 64
      %v1978 = vld [vmem:[%s1977] sm:$0xf]
      %v1979 = vld [vmem:[%s1977 + $0x4] sm:$0xf]
      %v1980 = vld [vmem:[%s1977 + $0x8] sm:$0xf]
      %v1981 = vld [vmem:[%s1977 + $0xc] sm:$0xf]
      %v1982 = vld [vmem:[%s1977 + $0x10] sm:$0xf]
      %v1983 = vld [vmem:[%s1977 + $0x14] sm:$0xf]
      %v1984 = vld [vmem:[%s1977 + $0x18] sm:$0xf]
      %v1985 = vld [vmem:[%s1977 + $0x1c] sm:$0xf]
      %v1986 = vld [vmem:[%s1977 + $0x20] sm:$0xf]
      %v1987 = vld [vmem:[%s1977 + $0x24] sm:$0xf]
      %v1988 = vld [vmem:[%s1977 + $0x28] sm:$0xf]
      %v1989 = vld [vmem:[%s1977 + $0x2c] sm:$0xf]
      %v1990 = vld [vmem:[%s1977 + $0x30] sm:$0xf]
      %v1991 = vld [vmem:[%s1977 + $0x34] sm:$0xf]
      %v1992 = vld [vmem:[%s1977 + $0x38] sm:$0xf]
      %v1993 = vld [vmem:[%s1977 + $0x3c] sm:$0xf]
      %s1994 = scalar_lea.vmem %s9, 128
      %v1995 = vld [vmem:[%s1994] sm:$0xf]
      %v1996 = vld [vmem:[%s1994 + $0x4] sm:$0xf]
      %v1997 = vld [vmem:[%s1994 + $0x8] sm:$0xf]
      %v1998 = vld [vmem:[%s1994 + $0xc] sm:$0xf]
      %v1999 = vld [vmem:[%s1994 + $0x10] sm:$0xf]
      %v2000 = vld [vmem:[%s1994 + $0x14] sm:$0xf]
      %v2001 = vld [vmem:[%s1994 + $0x18] sm:$0xf]
      %v2002 = vld [vmem:[%s1994 + $0x1c] sm:$0xf]
      %v2003 = vld [vmem:[%s1994 + $0x20] sm:$0xf]
      %v2004 = vld [vmem:[%s1994 + $0x24] sm:$0xf]
      %v2005 = vld [vmem:[%s1994 + $0x28] sm:$0xf]
      %v2006 = vld [vmem:[%s1994 + $0x2c] sm:$0xf]
      %v2007 = vld [vmem:[%s1994 + $0x30] sm:$0xf]
      %v2008 = vld [vmem:[%s1994 + $0x34] sm:$0xf]
      %v2009 = vld [vmem:[%s1994 + $0x38] sm:$0xf]
      %v2010 = vld [vmem:[%s1994 + $0x3c] sm:$0xf]
      %v2027 = vunpack.c.l.b16 %v1995
      %v2028 = vunpack.c.l.b16 %v1996
      %v2029 = vunpack.c.l.b16 %v1997
      %v2030 = vunpack.c.l.b16 %v1998
      %v2031 = vunpack.c.l.b16 %v1999
      %v2032 = vunpack.c.l.b16 %v2000
      %v2033 = vunpack.c.l.b16 %v2001
      %v2034 = vunpack.c.l.b16 %v2002
      %v2035 = vunpack.c.l.b16 %v2003
      %v2036 = vunpack.c.l.b16 %v2004
      %v2037 = vunpack.c.l.b16 %v2005
      %v2038 = vunpack.c.l.b16 %v2006
      %v2039 = vunpack.c.l.b16 %v2007
      %v2040 = vunpack.c.l.b16 %v2008
      %v2041 = vunpack.c.l.b16 %v2009
      %v2042 = vunpack.c.l.b16 %v2010
      %v2043 = vpack.c.b16 %v2028, %v2027
      %v2044 = vpack.c.b16 %v2030, %v2029
      %v2045 = vpack.c.b16 %v2032, %v2031
      %v2046 = vpack.c.b16 %v2034, %v2033
      %v2047 = vpack.c.b16 %v2036, %v2035
      %v2048 = vpack.c.b16 %v2038, %v2037
      %v2049 = vpack.c.b16 %v2040, %v2039
      %v2050 = vpack.c.b16 %v2042, %v2041
      %2059 = vmatprep.subr.bf16.mxu0 0
      %2060 = vmatpush1.bf16.msra.mxu0 %v2050
      %2061 = vmatprep.subr.bf16.mxu0 0
      %2062 = vmatpush1.bf16.msra.mxu0 %v2049
      %2063 = vmatprep.subr.bf16.mxu0 0
      %2064 = vmatpush1.bf16.msra.mxu0 %v2048
      %2065 = vmatprep.subr.bf16.mxu0 0
      %2066 = vmatpush1.bf16.msra.mxu0 %v2047
      %2067 = vmatprep.subr.bf16.mxu0 0
      %2068 = vmatpush1.bf16.msra.mxu0 %v2046
      %2069 = vmatprep.subr.bf16.mxu0 0
      %2070 = vmatpush1.bf16.msra.mxu0 %v2045
      %2071 = vmatprep.subr.bf16.mxu0 0
      %2072 = vmatpush1.bf16.msra.mxu0 %v2044
      %2073 = vmatprep.subr.bf16.mxu0 0
      %2074 = vmatpush1.bf16.msra.mxu0 %v2043
      %2075 = vmatprep.subr.bf16.mxu0 0
      %2076 = vmatpush2.bf16.msra.mxu0 0
      %2077 = vmatprep.subr.bf16.mxu0 0
      %2078 = vmatpush2.bf16.msra.mxu0 0
      %2079 = vmatprep.subr.bf16.mxu0 0
      %2080 = vmatpush2.bf16.msra.mxu0 0
      %2081 = vmatprep.subr.bf16.mxu0 0
      %2082 = vmatpush2.bf16.msra.mxu0 0
      %2083 = vmatprep.subr.bf16.mxu0 0
      %2084 = vmatpush2.bf16.msra.mxu0 0
      %2085 = vmatprep.subr.bf16.mxu0 0
      %2086 = vmatpush2.bf16.msra.mxu0 0
      %2087 = vmatprep.subr.bf16.mxu0 0
      %2088 = vmatpush2.bf16.msra.mxu0 0
      %2089 = vmatprep.subr.bf16.mxu0 0
      %2090 = vmatpush2.bf16.msra.mxu0 0
      %2091 = vmatprep.mubr.bf16.mxu0 0
      %2092 = vmatmul.mubr.bf16.gmra.mxu0 %v1862
      %v2093 = vpop.f32.mrf.mxu0
      %v2094 = vadd.f32 0.0, %v2093
      %v2095 = vpop.f32.mrf.mxu0
      %v2096 = vpop.f32.mrf.mxu0
      %v2097 = vadd.f32 0.0, %v2096
      %v2098 = vpop.f32.mrf.mxu0
      %2099 = vmatprep.mubr.bf16.mxu0 0
      %2100 = vmatmul.mubr.bf16.gmra.mxu0 %v1863
      %v2101 = vpop.f32.mrf.mxu0
      %v2102 = vadd.f32 0.0, %v2101
      %v2103 = vpop.f32.mrf.mxu0
      %v2104 = vpop.f32.mrf.mxu0
      %v2105 = vadd.f32 0.0, %v2104
      %v2106 = vpop.f32.mrf.mxu0
      %2107 = vdwg.mxu0
      %v2108 = vrot.slane %v1963, 7
      %v2109 = vrot.slane %v1966, 7
      %v2110 = vrot.slane %v1971, 7
      %v2111 = vrot.slane %v1974, 7
      %v2112 = vsel %vm843, %v2110, %v2111
      %v2113 = vsel %vm843, %v2109, %v2110
      %v2114 = vsel %vm843, %v2108, %v2109
      %v2115 = vsel %vm843, %v2111, %v2108
      %v2116 = vmul.f32 %v2115, %v667
      %v2117 = vmul.f32 %v2114, %v668
      %v2118 = vmul.f32 %v2113, %v669
      %v2119 = vmul.f32 %v2112, %v670
      %v2120 = vrot.slane %v2094, 1
      %v2121 = vrot.slane %v2097, 1
      %v2122 = vrot.slane %v2102, 1
      %v2123 = vrot.slane %v2105, 1
      %v2124 = vsel %vm850, %v2122, %v2123
      %v2125 = vsel %vm850, %v2121, %v2122
      %v2126 = vsel %vm850, %v2120, %v2121
      %v2127 = vsel %vm850, %v2123, %v2120
      %v2128 = vmul.f32 %v2126, %v672
      %v2129 = vmul.f32 %v2125, %v673
      %v2130 = vmul.f32 %v2124, %v674
      %v2131 = vmul.f32 %v2127, %v675
      %v2148 = vunpack.c.l.b16 %v1978
      %v2149 = vunpack.c.l.b16 %v1979
      %v2150 = vunpack.c.l.b16 %v1980
      %v2151 = vunpack.c.l.b16 %v1981
      %v2152 = vunpack.c.l.b16 %v1982
      %v2153 = vunpack.c.l.b16 %v1983
      %v2154 = vunpack.c.l.b16 %v1984
      %v2155 = vunpack.c.l.b16 %v1985
      %v2156 = vunpack.c.l.b16 %v1986
      %v2157 = vunpack.c.l.b16 %v1987
      %v2158 = vunpack.c.l.b16 %v1988
      %v2159 = vunpack.c.l.b16 %v1989
      %v2160 = vunpack.c.l.b16 %v1990
      %v2161 = vunpack.c.l.b16 %v1991
      %v2162 = vunpack.c.l.b16 %v1992
      %v2163 = vunpack.c.l.b16 %v1993
      %v2164 = vpack.c.b16 %v2149, %v2148
      %v2165 = vpack.c.b16 %v2151, %v2150
      %v2166 = vpack.c.b16 %v2153, %v2152
      %v2167 = vpack.c.b16 %v2155, %v2154
      %v2168 = vpack.c.b16 %v2157, %v2156
      %v2169 = vpack.c.b16 %v2159, %v2158
      %v2170 = vpack.c.b16 %v2161, %v2160
      %v2171 = vpack.c.b16 %v2163, %v2162
      %2180 = vmatprep.subr.bf16.mxu0 0
      %2181 = vmatpush1.bf16.msra.mxu0 %v2171
      %2182 = vmatprep.subr.bf16.mxu0 0
      %2183 = vmatpush1.bf16.msra.mxu0 %v2170
      %2184 = vmatprep.subr.bf16.mxu0 0
      %2185 = vmatpush1.bf16.msra.mxu0 %v2169
      %2186 = vmatprep.subr.bf16.mxu0 0
      %2187 = vmatpush1.bf16.msra.mxu0 %v2168
      %2188 = vmatprep.subr.bf16.mxu0 0
      %2189 = vmatpush1.bf16.msra.mxu0 %v2167
      %2190 = vmatprep.subr.bf16.mxu0 0
      %2191 = vmatpush1.bf16.msra.mxu0 %v2166
      %2192 = vmatprep.subr.bf16.mxu0 0
      %2193 = vmatpush1.bf16.msra.mxu0 %v2165
      %2194 = vmatprep.subr.bf16.mxu0 0
      %2195 = vmatpush1.bf16.msra.mxu0 %v2164
      %2196 = vmatprep.subr.bf16.mxu0 0
      %2197 = vmatpush2.bf16.msra.mxu0 0
      %2198 = vmatprep.subr.bf16.mxu0 0
      %2199 = vmatpush2.bf16.msra.mxu0 0
      %2200 = vmatprep.subr.bf16.mxu0 0
      %2201 = vmatpush2.bf16.msra.mxu0 0
      %2202 = vmatprep.subr.bf16.mxu0 0
      %2203 = vmatpush2.bf16.msra.mxu0 0
      %2204 = vmatprep.subr.bf16.mxu0 0
      %2205 = vmatpush2.bf16.msra.mxu0 0
      %2206 = vmatprep.subr.bf16.mxu0 0
      %2207 = vmatpush2.bf16.msra.mxu0 0
      %2208 = vmatprep.subr.bf16.mxu0 0
      %2209 = vmatpush2.bf16.msra.mxu0 0
      %2210 = vmatprep.subr.bf16.mxu0 0
      %2211 = vmatpush2.bf16.msra.mxu0 0
      %2212 = vmatprep.mubr.bf16.mxu0 0
      %2213 = vmatmul.mubr.bf16.gmra.mxu0 %v1862
      %v2214 = vpop.f32.mrf.mxu0
      %v2215 = vadd.f32 %v2116, %v2214
      %v2216 = vpop.f32.mrf.mxu0
      %v2217 = vpop.f32.mrf.mxu0
      %v2218 = vadd.f32 %v2117, %v2217
      %v2219 = vpop.f32.mrf.mxu0
      %2220 = vmatprep.mubr.bf16.mxu0 0
      %2221 = vmatmul.mubr.bf16.gmra.mxu0 %v1863
      %v2222 = vpop.f32.mrf.mxu0
      %v2223 = vadd.f32 %v2118, %v2222
      %v2224 = vpop.f32.mrf.mxu0
      %v2225 = vpop.f32.mrf.mxu0
      %v2226 = vadd.f32 %v2119, %v2225
      %v2227 = vpop.f32.mrf.mxu0
      %2228 = vdwg.mxu0
      %v2229 = vadd.f32 %v2215, %v2128
      %v2230 = vadd.f32 %v2218, %v2129
      %v2231 = vadd.f32 %v2223, %v2130
      %v2232 = vadd.f32 %v2226, %v2131
      %v2233 = vlaneseq
      %v2234 = vshrl.u32 %v2233, 7
      %v2235 = vsub.s32 1, %v2234
      %v2236 = vrot.slane %v661, %v2235
      %v2237 = vadd.f32 %v2229, %v2236
      %v2238 = vadd.f32 %v2230, %v2236
      %v2239 = vadd.f32 %v2231, %v2236
      %v2240 = vadd.f32 %v2232, %v2236
      %v2241 = vsub.f32 0.0, %v2237
      %v2242 = vsub.f32 0.0, %v2238
      %v2243 = vsub.f32 0.0, %v2239
      %v2244 = vsub.f32 0.0, %v2240
      %v2245 = vmul.f32 %v2241, 1.442695
      %v2246 = vpow.pop %v2245
      %v2247 = vmul.f32 %v2242, 1.442695
      %v2248 = vpow.pop %v2247
      %v2249 = vmul.f32 %v2243, 1.442695
      %v2250 = vpow.pop %v2249
      %v2251 = vmul.f32 %v2244, 1.442695
      %v2252 = vpow.pop %v2251
      %v2253 = vadd.f32 %v2246, 1.0
      %v2254 = vadd.f32 %v2248, 1.0
      %v2255 = vadd.f32 %v2250, 1.0
      %v2256 = vadd.f32 %v2252, 1.0
      %v2257 = vrcp.pop %v2253
      %v2258 = vrcp.pop %v2254
      %v2259 = vrcp.pop %v2255
      %v2260 = vrcp.pop %v2256
      %v2261 = vmul.f32 %v1844, %v2257
      %v2262 = vmul.f32 %v1847, %v2258
      %v2263 = vmul.f32 %v1852, %v2259
      %v2264 = vmul.f32 %v1855, %v2260
      %2265 = vst [vmem:[%s657] sm:$0xff] %v2257
      %2266 = vst [vmem:[%s657 + $0x8] sm:$0xff] %v2258
      %2267 = vst [vmem:[%s657 + $0x10] sm:$0xff] %v2259
      %2268 = vst [vmem:[%s657 + $0x18] sm:$0xff] %v2260
      %v2269 = vpack.c.bf16 %v1702, %v1701
      %v2270 = vpack.c.bf16 %v2262, %v2261
      %v2271 = vpack.c.bf16 %v1283, %v1280
      %v2272 = vpack.c.bf16 %v1704, %v1703
      %v2273 = vpack.c.bf16 %v2264, %v2263
      %v2274 = vpack.c.bf16 %v1291, %v1288
      %v2275 = vld [vmem:[%s12] sm:$0xf]
      %v2276 = vld [vmem:[%s12 + $0x4] sm:$0xf]
      %v2277 = vld [vmem:[%s12 + $0x8] sm:$0xf]
      %v2278 = vld [vmem:[%s12 + $0xc] sm:$0xf]
      %v2279 = vld [vmem:[%s12 + $0x10] sm:$0xf]
      %v2280 = vld [vmem:[%s12 + $0x14] sm:$0xf]
      %v2281 = vld [vmem:[%s12 + $0x18] sm:$0xf]
      %v2282 = vld [vmem:[%s12 + $0x1c] sm:$0xf]
      %v2283 = vld [vmem:[%s12 + $0x20] sm:$0xf]
      %v2284 = vld [vmem:[%s12 + $0x24] sm:$0xf]
      %v2285 = vld [vmem:[%s12 + $0x28] sm:$0xf]
      %v2286 = vld [vmem:[%s12 + $0x2c] sm:$0xf]
      %v2287 = vld [vmem:[%s12 + $0x30] sm:$0xf]
      %v2288 = vld [vmem:[%s12 + $0x34] sm:$0xf]
      %v2289 = vld [vmem:[%s12 + $0x38] sm:$0xf]
      %v2290 = vld [vmem:[%s12 + $0x3c] sm:$0xf]
      %v2291 = vld [vmem:[%s12 + $0x40] sm:$0xf]
      %v2292 = vld [vmem:[%s12 + $0x44] sm:$0xf]
      %v2293 = vld [vmem:[%s12 + $0x48] sm:$0xf]
      %v2294 = vld [vmem:[%s12 + $0x4c] sm:$0xf]
      %v2295 = vld [vmem:[%s12 + $0x50] sm:$0xf]
      %v2296 = vld [vmem:[%s12 + $0x54] sm:$0xf]
      %v2297 = vld [vmem:[%s12 + $0x58] sm:$0xf]
      %v2298 = vld [vmem:[%s12 + $0x5c] sm:$0xf]
      %v2299 = vld [vmem:[%s12 + $0x60] sm:$0xf]
      %v2300 = vld [vmem:[%s12 + $0x64] sm:$0xf]
      %v2301 = vld [vmem:[%s12 + $0x68] sm:$0xf]
      %v2302 = vld [vmem:[%s12 + $0x6c] sm:$0xf]
      %v2303 = vld [vmem:[%s12 + $0x70] sm:$0xf]
      %v2304 = vld [vmem:[%s12 + $0x74] sm:$0xf]
      %v2305 = vld [vmem:[%s12 + $0x78] sm:$0xf]
      %v2306 = vld [vmem:[%s12 + $0x7c] sm:$0xf]
      %v2307 = vld [vmem:[%s12 + $0x80] sm:$0xf]
      %v2308 = vld [vmem:[%s12 + $0x84] sm:$0xf]
      %v2309 = vld [vmem:[%s12 + $0x88] sm:$0xf]
      %v2310 = vld [vmem:[%s12 + $0x8c] sm:$0xf]
      %v2311 = vld [vmem:[%s12 + $0x90] sm:$0xf]
      %v2312 = vld [vmem:[%s12 + $0x94] sm:$0xf]
      %v2313 = vld [vmem:[%s12 + $0x98] sm:$0xf]
      %v2314 = vld [vmem:[%s12 + $0x9c] sm:$0xf]
      %v2315 = vld [vmem:[%s12 + $0xa0] sm:$0xf]
      %v2316 = vld [vmem:[%s12 + $0xa4] sm:$0xf]
      %v2317 = vld [vmem:[%s12 + $0xa8] sm:$0xf]
      %v2318 = vld [vmem:[%s12 + $0xac] sm:$0xf]
      %v2319 = vld [vmem:[%s12 + $0xb0] sm:$0xf]
      %v2320 = vld [vmem:[%s12 + $0xb4] sm:$0xf]
      %v2321 = vld [vmem:[%s12 + $0xb8] sm:$0xf]
      %v2322 = vld [vmem:[%s12 + $0xbc] sm:$0xf]
      %v2371 = vunpack.c.l.b16 %v2275
      %v2372 = vunpack.c.l.b16 %v2276
      %v2373 = vunpack.c.l.b16 %v2277
      %v2374 = vunpack.c.l.b16 %v2278
      %v2375 = vunpack.c.l.b16 %v2279
      %v2376 = vunpack.c.l.b16 %v2280
      %v2377 = vunpack.c.l.b16 %v2281
      %v2378 = vunpack.c.l.b16 %v2282
      %v2379 = vunpack.c.l.b16 %v2283
      %v2380 = vunpack.c.l.b16 %v2284
      %v2381 = vunpack.c.l.b16 %v2285
      %v2382 = vunpack.c.l.b16 %v2286
      %v2383 = vunpack.c.l.b16 %v2287
      %v2384 = vunpack.c.l.b16 %v2288
      %v2385 = vunpack.c.l.b16 %v2289
      %v2386 = vunpack.c.l.b16 %v2290
      %v2387 = vunpack.c.l.b16 %v2291
      %v2388 = vunpack.c.l.b16 %v2292
      %v2389 = vunpack.c.l.b16 %v2293
      %v2390 = vunpack.c.l.b16 %v2294
      %v2391 = vunpack.c.l.b16 %v2295
      %v2392 = vunpack.c.l.b16 %v2296
      %v2393 = vunpack.c.l.b16 %v2297
      %v2394 = vunpack.c.l.b16 %v2298
      %v2395 = vunpack.c.l.b16 %v2299
      %v2396 = vunpack.c.l.b16 %v2300
      %v2397 = vunpack.c.l.b16 %v2301
      %v2398 = vunpack.c.l.b16 %v2302
      %v2399 = vunpack.c.l.b16 %v2303
      %v2400 = vunpack.c.l.b16 %v2304
      %v2401 = vunpack.c.l.b16 %v2305
      %v2402 = vunpack.c.l.b16 %v2306
      %v2403 = vunpack.c.l.b16 %v2307
      %v2404 = vunpack.c.l.b16 %v2308
      %v2405 = vunpack.c.l.b16 %v2309
      %v2406 = vunpack.c.l.b16 %v2310
      %v2407 = vunpack.c.l.b16 %v2311
      %v2408 = vunpack.c.l.b16 %v2312
      %v2409 = vunpack.c.l.b16 %v2313
      %v2410 = vunpack.c.l.b16 %v2314
      %v2411 = vunpack.c.l.b16 %v2315
      %v2412 = vunpack.c.l.b16 %v2316
      %v2413 = vunpack.c.l.b16 %v2317
      %v2414 = vunpack.c.l.b16 %v2318
      %v2415 = vunpack.c.l.b16 %v2319
      %v2416 = vunpack.c.l.b16 %v2320
      %v2417 = vunpack.c.l.b16 %v2321
      %v2418 = vunpack.c.l.b16 %v2322
      %v2419 = vpack.c.b16 %v2372, %v2371
      %v2420 = vpack.c.b16 %v2374, %v2373
      %v2421 = vpack.c.b16 %v2376, %v2375
      %v2422 = vpack.c.b16 %v2378, %v2377
      %v2423 = vpack.c.b16 %v2380, %v2379
      %v2424 = vpack.c.b16 %v2382, %v2381
      %v2425 = vpack.c.b16 %v2384, %v2383
      %v2426 = vpack.c.b16 %v2386, %v2385
      %v2427 = vpack.c.b16 %v2388, %v2387
      %v2428 = vpack.c.b16 %v2390, %v2389
      %v2429 = vpack.c.b16 %v2392, %v2391
      %v2430 = vpack.c.b16 %v2394, %v2393
      %v2431 = vpack.c.b16 %v2396, %v2395
      %v2432 = vpack.c.b16 %v2398, %v2397
      %v2433 = vpack.c.b16 %v2400, %v2399
      %v2434 = vpack.c.b16 %v2402, %v2401
      %v2435 = vpack.c.b16 %v2404, %v2403
      %v2436 = vpack.c.b16 %v2406, %v2405
      %v2437 = vpack.c.b16 %v2408, %v2407
      %v2438 = vpack.c.b16 %v2410, %v2409
      %v2439 = vpack.c.b16 %v2412, %v2411
      %v2440 = vpack.c.b16 %v2414, %v2413
      %v2441 = vpack.c.b16 %v2416, %v2415
      %v2442 = vpack.c.b16 %v2418, %v2417
      %2467 = vmatprep.subr.bf16.mxu0 0
      %2468 = vmatpush1.bf16.msra.mxu0 %v2426
      %2469 = vmatprep.subr.bf16.mxu0 0
      %2470 = vmatpush1.bf16.msra.mxu0 %v2425
      %2471 = vmatprep.subr.bf16.mxu0 0
      %2472 = vmatpush1.bf16.msra.mxu0 %v2424
      %2473 = vmatprep.subr.bf16.mxu0 0
      %2474 = vmatpush1.bf16.msra.mxu0 %v2423
      %2475 = vmatprep.subr.bf16.mxu0 0
      %2476 = vmatpush1.bf16.msra.mxu0 %v2422
      %2477 = vmatprep.subr.bf16.mxu0 0
      %2478 = vmatpush1.bf16.msra.mxu0 %v2421
      %2479 = vmatprep.subr.bf16.mxu0 0
      %2480 = vmatpush1.bf16.msra.mxu0 %v2420
      %2481 = vmatprep.subr.bf16.mxu0 0
      %2482 = vmatpush1.bf16.msra.mxu0 %v2419
      %2483 = vmatprep.subr.bf16.mxu0 0
      %2484 = vmatpush2.bf16.msra.mxu0 %v2434
      %2485 = vmatprep.subr.bf16.mxu0 0
      %2486 = vmatpush2.bf16.msra.mxu0 %v2433
      %2487 = vmatprep.subr.bf16.mxu0 0
      %2488 = vmatpush2.bf16.msra.mxu0 %v2432
      %2489 = vmatprep.subr.bf16.mxu0 0
      %2490 = vmatpush2.bf16.msra.mxu0 %v2431
      %2491 = vmatprep.subr.bf16.mxu0 0
      %2492 = vmatpush2.bf16.msra.mxu0 %v2430
      %2493 = vmatprep.subr.bf16.mxu0 0
      %2494 = vmatpush2.bf16.msra.mxu0 %v2429
      %2495 = vmatprep.subr.bf16.mxu0 0
      %2496 = vmatpush2.bf16.msra.mxu0 %v2428
      %2497 = vmatprep.subr.bf16.mxu0 0
      %2498 = vmatpush2.bf16.msra.mxu0 %v2427
      %2499 = vmatprep.mubr.bf16.mxu0 %v2270
      %2500 = vmatmul.mubr.bf16.gmra.mxu0 %v2269
      %v2501 = vpop.f32.mrf.mxu0
      %v2502 = vadd.f32 0.0, %v2501
      %v2503 = vpop.f32.mrf.mxu0
      %v2504 = vpop.f32.mrf.mxu0
      %v2505 = vadd.f32 0.0, %v2504
      %v2506 = vpop.f32.mrf.mxu0
      %2507 = vmatprep.mubr.bf16.mxu0 %v2273
      %2508 = vmatmul.mubr.bf16.gmra.mxu0 %v2272
      %v2509 = vpop.f32.mrf.mxu0
      %v2510 = vadd.f32 0.0, %v2509
      %v2511 = vpop.f32.mrf.mxu0
      %v2512 = vpop.f32.mrf.mxu0
      %v2513 = vadd.f32 0.0, %v2512
      %v2514 = vpop.f32.mrf.mxu0
      %2515 = vdwg.mxu0
      %2516 = vmatprep.subr.bf16.mxu0 0
      %2517 = vmatpush1.bf16.msra.mxu0 %v2442
      %2518 = vmatprep.subr.bf16.mxu0 0
      %2519 = vmatpush1.bf16.msra.mxu0 %v2441
      %2520 = vmatprep.subr.bf16.mxu0 0
      %2521 = vmatpush1.bf16.msra.mxu0 %v2440
      %2522 = vmatprep.subr.bf16.mxu0 0
      %2523 = vmatpush1.bf16.msra.mxu0 %v2439
      %2524 = vmatprep.subr.bf16.mxu0 0
      %2525 = vmatpush1.bf16.msra.mxu0 %v2438
      %2526 = vmatprep.subr.bf16.mxu0 0
      %2527 = vmatpush1.bf16.msra.mxu0 %v2437
      %2528 = vmatprep.subr.bf16.mxu0 0
      %2529 = vmatpush1.bf16.msra.mxu0 %v2436
      %2530 = vmatprep.subr.bf16.mxu0 0
      %2531 = vmatpush1.bf16.msra.mxu0 %v2435
      %2532 = vmatprep.subr.bf16.mxu0 0
      %2533 = vmatpush2.bf16.msra.mxu0 0
      %2534 = vmatprep.subr.bf16.mxu0 0
      %2535 = vmatpush2.bf16.msra.mxu0 0
      %2536 = vmatprep.subr.bf16.mxu0 0
      %2537 = vmatpush2.bf16.msra.mxu0 0
      %2538 = vmatprep.subr.bf16.mxu0 0
      %2539 = vmatpush2.bf16.msra.mxu0 0
      %2540 = vmatprep.subr.bf16.mxu0 0
      %2541 = vmatpush2.bf16.msra.mxu0 0
      %2542 = vmatprep.subr.bf16.mxu0 0
      %2543 = vmatpush2.bf16.msra.mxu0 0
      %2544 = vmatprep.subr.bf16.mxu0 0
      %2545 = vmatpush2.bf16.msra.mxu0 0
      %2546 = vmatprep.subr.bf16.mxu0 0
      %2547 = vmatpush2.bf16.msra.mxu0 0
      %2548 = vmatprep.mubr.bf16.mxu0 0
      %2549 = vmatmul.mubr.bf16.gmra.mxu0 %v2271
      %v2550 = vpop.f32.mrf.mxu0
      %v2551 = vadd.f32 %v2502, %v2550
      %v2552 = vpop.f32.mrf.mxu0
      %v2553 = vpop.f32.mrf.mxu0
      %v2554 = vadd.f32 %v2505, %v2553
      %v2555 = vpop.f32.mrf.mxu0
      %2556 = vmatprep.mubr.bf16.mxu0 0
      %2557 = vmatmul.mubr.bf16.gmra.mxu0 %v2274
      %v2558 = vpop.f32.mrf.mxu0
      %v2559 = vadd.f32 %v2510, %v2558
      %v2560 = vpop.f32.mrf.mxu0
      %v2561 = vpop.f32.mrf.mxu0
      %v2562 = vadd.f32 %v2513, %v2561
      %v2563 = vpop.f32.mrf.mxu0
      %2564 = vdwg.mxu0
      %s2565 = scalar_lea.vmem %s12, 192
      %v2566 = vld [vmem:[%s2565] sm:$0xf]
      %v2567 = vld [vmem:[%s2565 + $0x4] sm:$0xf]
      %v2568 = vld [vmem:[%s2565 + $0x8] sm:$0xf]
      %v2569 = vld [vmem:[%s2565 + $0xc] sm:$0xf]
      %v2570 = vld [vmem:[%s2565 + $0x10] sm:$0xf]
      %v2571 = vld [vmem:[%s2565 + $0x14] sm:$0xf]
      %v2572 = vld [vmem:[%s2565 + $0x18] sm:$0xf]
      %v2573 = vld [vmem:[%s2565 + $0x1c] sm:$0xf]
      %v2574 = vld [vmem:[%s2565 + $0x20] sm:$0xf]
      %v2575 = vld [vmem:[%s2565 + $0x24] sm:$0xf]
      %v2576 = vld [vmem:[%s2565 + $0x28] sm:$0xf]
      %v2577 = vld [vmem:[%s2565 + $0x2c] sm:$0xf]
      %v2578 = vld [vmem:[%s2565 + $0x30] sm:$0xf]
      %v2579 = vld [vmem:[%s2565 + $0x34] sm:$0xf]
      %v2580 = vld [vmem:[%s2565 + $0x38] sm:$0xf]
      %v2581 = vld [vmem:[%s2565 + $0x3c] sm:$0xf]
      %v2582 = vld [vmem:[%s2565 + $0x40] sm:$0xf]
      %v2583 = vld [vmem:[%s2565 + $0x44] sm:$0xf]
      %v2584 = vld [vmem:[%s2565 + $0x48] sm:$0xf]
      %v2585 = vld [vmem:[%s2565 + $0x4c] sm:$0xf]
      %v2586 = vld [vmem:[%s2565 + $0x50] sm:$0xf]
      %v2587 = vld [vmem:[%s2565 + $0x54] sm:$0xf]
      %v2588 = vld [vmem:[%s2565 + $0x58] sm:$0xf]
      %v2589 = vld [vmem:[%s2565 + $0x5c] sm:$0xf]
      %v2590 = vld [vmem:[%s2565 + $0x60] sm:$0xf]
      %v2591 = vld [vmem:[%s2565 + $0x64] sm:$0xf]
      %v2592 = vld [vmem:[%s2565 + $0x68] sm:$0xf]
      %v2593 = vld [vmem:[%s2565 + $0x6c] sm:$0xf]
      %v2594 = vld [vmem:[%s2565 + $0x70] sm:$0xf]
      %v2595 = vld [vmem:[%s2565 + $0x74] sm:$0xf]
      %v2596 = vld [vmem:[%s2565 + $0x78] sm:$0xf]
      %v2597 = vld [vmem:[%s2565 + $0x7c] sm:$0xf]
      %v2598 = vld [vmem:[%s2565 + $0x80] sm:$0xf]
      %v2599 = vld [vmem:[%s2565 + $0x84] sm:$0xf]
      %v2600 = vld [vmem:[%s2565 + $0x88] sm:$0xf]
      %v2601 = vld [vmem:[%s2565 + $0x8c] sm:$0xf]
      %v2602 = vld [vmem:[%s2565 + $0x90] sm:$0xf]
      %v2603 = vld [vmem:[%s2565 + $0x94] sm:$0xf]
      %v2604 = vld [vmem:[%s2565 + $0x98] sm:$0xf]
      %v2605 = vld [vmem:[%s2565 + $0x9c] sm:$0xf]
      %v2606 = vld [vmem:[%s2565 + $0xa0] sm:$0xf]
      %v2607 = vld [vmem:[%s2565 + $0xa4] sm:$0xf]
      %v2608 = vld [vmem:[%s2565 + $0xa8] sm:$0xf]
      %v2609 = vld [vmem:[%s2565 + $0xac] sm:$0xf]
      %v2610 = vld [vmem:[%s2565 + $0xb0] sm:$0xf]
      %v2611 = vld [vmem:[%s2565 + $0xb4] sm:$0xf]
      %v2612 = vld [vmem:[%s2565 + $0xb8] sm:$0xf]
      %v2613 = vld [vmem:[%s2565 + $0xbc] sm:$0xf]
      %s2614 = scalar_lea.vmem %s12, 384
      %v2615 = vld [vmem:[%s2614] sm:$0xf]
      %v2616 = vld [vmem:[%s2614 + $0x4] sm:$0xf]
      %v2617 = vld [vmem:[%s2614 + $0x8] sm:$0xf]
      %v2618 = vld [vmem:[%s2614 + $0xc] sm:$0xf]
      %v2619 = vld [vmem:[%s2614 + $0x10] sm:$0xf]
      %v2620 = vld [vmem:[%s2614 + $0x14] sm:$0xf]
      %v2621 = vld [vmem:[%s2614 + $0x18] sm:$0xf]
      %v2622 = vld [vmem:[%s2614 + $0x1c] sm:$0xf]
      %v2623 = vld [vmem:[%s2614 + $0x20] sm:$0xf]
      %v2624 = vld [vmem:[%s2614 + $0x24] sm:$0xf]
      %v2625 = vld [vmem:[%s2614 + $0x28] sm:$0xf]
      %v2626 = vld [vmem:[%s2614 + $0x2c] sm:$0xf]
      %v2627 = vld [vmem:[%s2614 + $0x30] sm:$0xf]
      %v2628 = vld [vmem:[%s2614 + $0x34] sm:$0xf]
      %v2629 = vld [vmem:[%s2614 + $0x38] sm:$0xf]
      %v2630 = vld [vmem:[%s2614 + $0x3c] sm:$0xf]
      %v2631 = vld [vmem:[%s2614 + $0x40] sm:$0xf]
      %v2632 = vld [vmem:[%s2614 + $0x44] sm:$0xf]
      %v2633 = vld [vmem:[%s2614 + $0x48] sm:$0xf]
      %v2634 = vld [vmem:[%s2614 + $0x4c] sm:$0xf]
      %v2635 = vld [vmem:[%s2614 + $0x50] sm:$0xf]
      %v2636 = vld [vmem:[%s2614 + $0x54] sm:$0xf]
      %v2637 = vld [vmem:[%s2614 + $0x58] sm:$0xf]
      %v2638 = vld [vmem:[%s2614 + $0x5c] sm:$0xf]
      %v2639 = vld [vmem:[%s2614 + $0x60] sm:$0xf]
      %v2640 = vld [vmem:[%s2614 + $0x64] sm:$0xf]
      %v2641 = vld [vmem:[%s2614 + $0x68] sm:$0xf]
      %v2642 = vld [vmem:[%s2614 + $0x6c] sm:$0xf]
      %v2643 = vld [vmem:[%s2614 + $0x70] sm:$0xf]
      %v2644 = vld [vmem:[%s2614 + $0x74] sm:$0xf]
      %v2645 = vld [vmem:[%s2614 + $0x78] sm:$0xf]
      %v2646 = vld [vmem:[%s2614 + $0x7c] sm:$0xf]
      %v2647 = vld [vmem:[%s2614 + $0x80] sm:$0xf]
      %v2648 = vld [vmem:[%s2614 + $0x84] sm:$0xf]
      %v2649 = vld [vmem:[%s2614 + $0x88] sm:$0xf]
      %v2650 = vld [vmem:[%s2614 + $0x8c] sm:$0xf]
      %v2651 = vld [vmem:[%s2614 + $0x90] sm:$0xf]
      %v2652 = vld [vmem:[%s2614 + $0x94] sm:$0xf]
      %v2653 = vld [vmem:[%s2614 + $0x98] sm:$0xf]
      %v2654 = vld [vmem:[%s2614 + $0x9c] sm:$0xf]
      %v2655 = vld [vmem:[%s2614 + $0xa0] sm:$0xf]
      %v2656 = vld [vmem:[%s2614 + $0xa4] sm:$0xf]
      %v2657 = vld [vmem:[%s2614 + $0xa8] sm:$0xf]
      %v2658 = vld [vmem:[%s2614 + $0xac] sm:$0xf]
      %v2659 = vld [vmem:[%s2614 + $0xb0] sm:$0xf]
      %v2660 = vld [vmem:[%s2614 + $0xb4] sm:$0xf]
      %v2661 = vld [vmem:[%s2614 + $0xb8] sm:$0xf]
      %v2662 = vld [vmem:[%s2614 + $0xbc] sm:$0xf]
      %v2711 = vunpack.c.l.b16 %v2615
      %v2712 = vunpack.c.l.b16 %v2616
      %v2713 = vunpack.c.l.b16 %v2617
      %v2714 = vunpack.c.l.b16 %v2618
      %v2715 = vunpack.c.l.b16 %v2619
      %v2716 = vunpack.c.l.b16 %v2620
      %v2717 = vunpack.c.l.b16 %v2621
      %v2718 = vunpack.c.l.b16 %v2622
      %v2719 = vunpack.c.l.b16 %v2623
      %v2720 = vunpack.c.l.b16 %v2624
      %v2721 = vunpack.c.l.b16 %v2625
      %v2722 = vunpack.c.l.b16 %v2626
      %v2723 = vunpack.c.l.b16 %v2627
      %v2724 = vunpack.c.l.b16 %v2628
      %v2725 = vunpack.c.l.b16 %v2629
      %v2726 = vunpack.c.l.b16 %v2630
      %v2727 = vunpack.c.l.b16 %v2631
      %v2728 = vunpack.c.l.b16 %v2632
      %v2729 = vunpack.c.l.b16 %v2633
      %v2730 = vunpack.c.l.b16 %v2634
      %v2731 = vunpack.c.l.b16 %v2635
      %v2732 = vunpack.c.l.b16 %v2636
      %v2733 = vunpack.c.l.b16 %v2637
      %v2734 = vunpack.c.l.b16 %v2638
      %v2735 = vunpack.c.l.b16 %v2639
      %v2736 = vunpack.c.l.b16 %v2640
      %v2737 = vunpack.c.l.b16 %v2641
      %v2738 = vunpack.c.l.b16 %v2642
      %v2739 = vunpack.c.l.b16 %v2643
      %v2740 = vunpack.c.l.b16 %v2644
      %v2741 = vunpack.c.l.b16 %v2645
      %v2742 = vunpack.c.l.b16 %v2646
      %v2743 = vunpack.c.l.b16 %v2647
      %v2744 = vunpack.c.l.b16 %v2648
      %v2745 = vunpack.c.l.b16 %v2649
      %v2746 = vunpack.c.l.b16 %v2650
      %v2747 = vunpack.c.l.b16 %v2651
      %v2748 = vunpack.c.l.b16 %v2652
      %v2749 = vunpack.c.l.b16 %v2653
      %v2750 = vunpack.c.l.b16 %v2654
      %v2751 = vunpack.c.l.b16 %v2655
      %v2752 = vunpack.c.l.b16 %v2656
      %v2753 = vunpack.c.l.b16 %v2657
      %v2754 = vunpack.c.l.b16 %v2658
      %v2755 = vunpack.c.l.b16 %v2659
      %v2756 = vunpack.c.l.b16 %v2660
      %v2757 = vunpack.c.l.b16 %v2661
      %v2758 = vunpack.c.l.b16 %v2662
      %v2759 = vpack.c.b16 %v2712, %v2711
      %v2760 = vpack.c.b16 %v2714, %v2713
      %v2761 = vpack.c.b16 %v2716, %v2715
      %v2762 = vpack.c.b16 %v2718, %v2717
      %v2763 = vpack.c.b16 %v2720, %v2719
      %v2764 = vpack.c.b16 %v2722, %v2721
      %v2765 = vpack.c.b16 %v2724, %v2723
      %v2766 = vpack.c.b16 %v2726, %v2725
      %v2767 = vpack.c.b16 %v2728, %v2727
      %v2768 = vpack.c.b16 %v2730, %v2729
      %v2769 = vpack.c.b16 %v2732, %v2731
      %v2770 = vpack.c.b16 %v2734, %v2733
      %v2771 = vpack.c.b16 %v2736, %v2735
      %v2772 = vpack.c.b16 %v2738, %v2737
      %v2773 = vpack.c.b16 %v2740, %v2739
      %v2774 = vpack.c.b16 %v2742, %v2741
      %v2775 = vpack.c.b16 %v2744, %v2743
      %v2776 = vpack.c.b16 %v2746, %v2745
      %v2777 = vpack.c.b16 %v2748, %v2747
      %v2778 = vpack.c.b16 %v2750, %v2749
      %v2779 = vpack.c.b16 %v2752, %v2751
      %v2780 = vpack.c.b16 %v2754, %v2753
      %v2781 = vpack.c.b16 %v2756, %v2755
      %v2782 = vpack.c.b16 %v2758, %v2757
      %2807 = vmatprep.subr.bf16.mxu0 0
      %2808 = vmatpush1.bf16.msra.mxu0 %v2766
      %2809 = vmatprep.subr.bf16.mxu0 0
      %2810 = vmatpush1.bf16.msra.mxu0 %v2765
      %2811 = vmatprep.subr.bf16.mxu0 0
      %2812 = vmatpush1.bf16.msra.mxu0 %v2764
      %2813 = vmatprep.subr.bf16.mxu0 0
      %2814 = vmatpush1.bf16.msra.mxu0 %v2763
      %2815 = vmatprep.subr.bf16.mxu0 0
      %2816 = vmatpush1.bf16.msra.mxu0 %v2762
      %2817 = vmatprep.subr.bf16.mxu0 0
      %2818 = vmatpush1.bf16.msra.mxu0 %v2761
      %2819 = vmatprep.subr.bf16.mxu0 0
      %2820 = vmatpush1.bf16.msra.mxu0 %v2760
      %2821 = vmatprep.subr.bf16.mxu0 0
      %2822 = vmatpush1.bf16.msra.mxu0 %v2759
      %2823 = vmatprep.subr.bf16.mxu0 0
      %2824 = vmatpush2.bf16.msra.mxu0 %v2774
      %2825 = vmatprep.subr.bf16.mxu0 0
      %2826 = vmatpush2.bf16.msra.mxu0 %v2773
      %2827 = vmatprep.subr.bf16.mxu0 0
      %2828 = vmatpush2.bf16.msra.mxu0 %v2772
      %2829 = vmatprep.subr.bf16.mxu0 0
      %2830 = vmatpush2.bf16.msra.mxu0 %v2771
      %2831 = vmatprep.subr.bf16.mxu0 0
      %2832 = vmatpush2.bf16.msra.mxu0 %v2770
      %2833 = vmatprep.subr.bf16.mxu0 0
      %2834 = vmatpush2.bf16.msra.mxu0 %v2769
      %2835 = vmatprep.subr.bf16.mxu0 0
      %2836 = vmatpush2.bf16.msra.mxu0 %v2768
      %2837 = vmatprep.subr.bf16.mxu0 0
      %2838 = vmatpush2.bf16.msra.mxu0 %v2767
      %2839 = vmatprep.mubr.bf16.mxu0 %v2270
      %2840 = vmatmul.mubr.bf16.gmra.mxu0 %v2269
      %v2841 = vpop.f32.mrf.mxu0
      %v2842 = vadd.f32 0.0, %v2841
      %v2843 = vpop.f32.mrf.mxu0
      %v2844 = vpop.f32.mrf.mxu0
      %v2845 = vadd.f32 0.0, %v2844
      %v2846 = vpop.f32.mrf.mxu0
      %2847 = vmatprep.mubr.bf16.mxu0 %v2273
      %2848 = vmatmul.mubr.bf16.gmra.mxu0 %v2272
      %v2849 = vpop.f32.mrf.mxu0
      %v2850 = vadd.f32 0.0, %v2849
      %v2851 = vpop.f32.mrf.mxu0
      %v2852 = vpop.f32.mrf.mxu0
      %v2853 = vadd.f32 0.0, %v2852
      %v2854 = vpop.f32.mrf.mxu0
      %2855 = vdwg.mxu0
      %2856 = vmatprep.subr.bf16.mxu0 0
      %2857 = vmatpush1.bf16.msra.mxu0 %v2782
      %2858 = vmatprep.subr.bf16.mxu0 0
      %2859 = vmatpush1.bf16.msra.mxu0 %v2781
      %2860 = vmatprep.subr.bf16.mxu0 0
      %2861 = vmatpush1.bf16.msra.mxu0 %v2780
      %2862 = vmatprep.subr.bf16.mxu0 0
      %2863 = vmatpush1.bf16.msra.mxu0 %v2779
      %2864 = vmatprep.subr.bf16.mxu0 0
      %2865 = vmatpush1.bf16.msra.mxu0 %v2778
      %2866 = vmatprep.subr.bf16.mxu0 0
      %2867 = vmatpush1.bf16.msra.mxu0 %v2777
      %2868 = vmatprep.subr.bf16.mxu0 0
      %2869 = vmatpush1.bf16.msra.mxu0 %v2776
      %2870 = vmatprep.subr.bf16.mxu0 0
      %2871 = vmatpush1.bf16.msra.mxu0 %v2775
      %2872 = vmatprep.subr.bf16.mxu0 0
      %2873 = vmatpush2.bf16.msra.mxu0 0
      %2874 = vmatprep.subr.bf16.mxu0 0
      %2875 = vmatpush2.bf16.msra.mxu0 0
      %2876 = vmatprep.subr.bf16.mxu0 0
      %2877 = vmatpush2.bf16.msra.mxu0 0
      %2878 = vmatprep.subr.bf16.mxu0 0
      %2879 = vmatpush2.bf16.msra.mxu0 0
      %2880 = vmatprep.subr.bf16.mxu0 0
      %2881 = vmatpush2.bf16.msra.mxu0 0
      %2882 = vmatprep.subr.bf16.mxu0 0
      %2883 = vmatpush2.bf16.msra.mxu0 0
      %2884 = vmatprep.subr.bf16.mxu0 0
      %2885 = vmatpush2.bf16.msra.mxu0 0
      %2886 = vmatprep.subr.bf16.mxu0 0
      %2887 = vmatpush2.bf16.msra.mxu0 0
      %2888 = vmatprep.mubr.bf16.mxu0 0
      %2889 = vmatmul.mubr.bf16.gmra.mxu0 %v2271
      %v2890 = vpop.f32.mrf.mxu0
      %v2891 = vadd.f32 %v2842, %v2890
      %v2892 = vpop.f32.mrf.mxu0
      %v2893 = vpop.f32.mrf.mxu0
      %v2894 = vadd.f32 %v2845, %v2893
      %v2895 = vpop.f32.mrf.mxu0
      %2896 = vmatprep.mubr.bf16.mxu0 0
      %2897 = vmatmul.mubr.bf16.gmra.mxu0 %v2274
      %v2898 = vpop.f32.mrf.mxu0
      %v2899 = vadd.f32 %v2850, %v2898
      %v2900 = vpop.f32.mrf.mxu0
      %v2901 = vpop.f32.mrf.mxu0
      %v2902 = vadd.f32 %v2853, %v2901
      %v2903 = vpop.f32.mrf.mxu0
      %2904 = vdwg.mxu0
      %v2905 = vrot.slane %v2551, 7
      %v2906 = vrot.slane %v2554, 7
      %v2907 = vrot.slane %v2559, 7
      %v2908 = vrot.slane %v2562, 7
      %v2909 = vsel %vm843, %v2907, %v2908
      %v2910 = vsel %vm843, %v2906, %v2907
      %v2911 = vsel %vm843, %v2905, %v2906
      %v2912 = vsel %vm843, %v2908, %v2905
      %v2913 = vmul.f32 %v2912, %v667
      %v2914 = vmul.f32 %v2911, %v668
      %v2915 = vmul.f32 %v2910, %v669
      %v2916 = vmul.f32 %v2909, %v670
      %v2917 = vrot.slane %v2891, 1
      %v2918 = vrot.slane %v2894, 1
      %v2919 = vrot.slane %v2899, 1
      %v2920 = vrot.slane %v2902, 1
      %v2921 = vsel %vm850, %v2919, %v2920
      %v2922 = vsel %vm850, %v2918, %v2919
      %v2923 = vsel %vm850, %v2917, %v2918
      %v2924 = vsel %vm850, %v2920, %v2917
      %v2925 = vmul.f32 %v2923, %v672
      %v2926 = vmul.f32 %v2922, %v673
      %v2927 = vmul.f32 %v2921, %v674
      %v2928 = vmul.f32 %v2924, %v675
      %v2977 = vunpack.c.l.b16 %v2566
      %v2978 = vunpack.c.l.b16 %v2567
      %v2979 = vunpack.c.l.b16 %v2568
      %v2980 = vunpack.c.l.b16 %v2569
      %v2981 = vunpack.c.l.b16 %v2570
      %v2982 = vunpack.c.l.b16 %v2571
      %v2983 = vunpack.c.l.b16 %v2572
      %v2984 = vunpack.c.l.b16 %v2573
      %v2985 = vunpack.c.l.b16 %v2574
      %v2986 = vunpack.c.l.b16 %v2575
      %v2987 = vunpack.c.l.b16 %v2576
      %v2988 = vunpack.c.l.b16 %v2577
      %v2989 = vunpack.c.l.b16 %v2578
      %v2990 = vunpack.c.l.b16 %v2579
      %v2991 = vunpack.c.l.b16 %v2580
      %v2992 = vunpack.c.l.b16 %v2581
      %v2993 = vunpack.c.l.b16 %v2582
      %v2994 = vunpack.c.l.b16 %v2583
      %v2995 = vunpack.c.l.b16 %v2584
      %v2996 = vunpack.c.l.b16 %v2585
      %v2997 = vunpack.c.l.b16 %v2586
      %v2998 = vunpack.c.l.b16 %v2587
      %v2999 = vunpack.c.l.b16 %v2588
      %v3000 = vunpack.c.l.b16 %v2589
      %v3001 = vunpack.c.l.b16 %v2590
      %v3002 = vunpack.c.l.b16 %v2591
      %v3003 = vunpack.c.l.b16 %v2592
      %v3004 = vunpack.c.l.b16 %v2593
      %v3005 = vunpack.c.l.b16 %v2594
      %v3006 = vunpack.c.l.b16 %v2595
      %v3007 = vunpack.c.l.b16 %v2596
      %v3008 = vunpack.c.l.b16 %v2597
      %v3009 = vunpack.c.l.b16 %v2598
      %v3010 = vunpack.c.l.b16 %v2599
      %v3011 = vunpack.c.l.b16 %v2600
      %v3012 = vunpack.c.l.b16 %v2601
      %v3013 = vunpack.c.l.b16 %v2602
      %v3014 = vunpack.c.l.b16 %v2603
      %v3015 = vunpack.c.l.b16 %v2604
      %v3016 = vunpack.c.l.b16 %v2605
      %v3017 = vunpack.c.l.b16 %v2606
      %v3018 = vunpack.c.l.b16 %v2607
      %v3019 = vunpack.c.l.b16 %v2608
      %v3020 = vunpack.c.l.b16 %v2609
      %v3021 = vunpack.c.l.b16 %v2610
      %v3022 = vunpack.c.l.b16 %v2611
      %v3023 = vunpack.c.l.b16 %v2612
      %v3024 = vunpack.c.l.b16 %v2613
      %v3025 = vpack.c.b16 %v2978, %v2977
      %v3026 = vpack.c.b16 %v2980, %v2979
      %v3027 = vpack.c.b16 %v2982, %v2981
      %v3028 = vpack.c.b16 %v2984, %v2983
      %v3029 = vpack.c.b16 %v2986, %v2985
      %v3030 = vpack.c.b16 %v2988, %v2987
      %v3031 = vpack.c.b16 %v2990, %v2989
      %v3032 = vpack.c.b16 %v2992, %v2991
      %v3033 = vpack.c.b16 %v2994, %v2993
      %v3034 = vpack.c.b16 %v2996, %v2995
      %v3035 = vpack.c.b16 %v2998, %v2997
      %v3036 = vpack.c.b16 %v3000, %v2999
      %v3037 = vpack.c.b16 %v3002, %v3001
      %v3038 = vpack.c.b16 %v3004, %v3003
      %v3039 = vpack.c.b16 %v3006, %v3005
      %v3040 = vpack.c.b16 %v3008, %v3007
      %v3041 = vpack.c.b16 %v3010, %v3009
      %v3042 = vpack.c.b16 %v3012, %v3011
      %v3043 = vpack.c.b16 %v3014, %v3013
      %v3044 = vpack.c.b16 %v3016, %v3015
      %v3045 = vpack.c.b16 %v3018, %v3017
      %v3046 = vpack.c.b16 %v3020, %v3019
      %v3047 = vpack.c.b16 %v3022, %v3021
      %v3048 = vpack.c.b16 %v3024, %v3023
      %3073 = vmatprep.subr.bf16.mxu0 0
      %3074 = vmatpush1.bf16.msra.mxu0 %v3032
      %3075 = vmatprep.subr.bf16.mxu0 0
      %3076 = vmatpush1.bf16.msra.mxu0 %v3031
      %3077 = vmatprep.subr.bf16.mxu0 0
      %3078 = vmatpush1.bf16.msra.mxu0 %v3030
      %3079 = vmatprep.subr.bf16.mxu0 0
      %3080 = vmatpush1.bf16.msra.mxu0 %v3029
      %3081 = vmatprep.subr.bf16.mxu0 0
      %3082 = vmatpush1.bf16.msra.mxu0 %v3028
      %3083 = vmatprep.subr.bf16.mxu0 0
      %3084 = vmatpush1.bf16.msra.mxu0 %v3027
      %3085 = vmatprep.subr.bf16.mxu0 0
      %3086 = vmatpush1.bf16.msra.mxu0 %v3026
      %3087 = vmatprep.subr.bf16.mxu0 0
      %3088 = vmatpush1.bf16.msra.mxu0 %v3025
      %3089 = vmatprep.subr.bf16.mxu0 0
      %3090 = vmatpush2.bf16.msra.mxu0 %v3040
      %3091 = vmatprep.subr.bf16.mxu0 0
      %3092 = vmatpush2.bf16.msra.mxu0 %v3039
      %3093 = vmatprep.subr.bf16.mxu0 0
      %3094 = vmatpush2.bf16.msra.mxu0 %v3038
      %3095 = vmatprep.subr.bf16.mxu0 0
      %3096 = vmatpush2.bf16.msra.mxu0 %v3037
      %3097 = vmatprep.subr.bf16.mxu0 0
      %3098 = vmatpush2.bf16.msra.mxu0 %v3036
      %3099 = vmatprep.subr.bf16.mxu0 0
      %3100 = vmatpush2.bf16.msra.mxu0 %v3035
      %3101 = vmatprep.subr.bf16.mxu0 0
      %3102 = vmatpush2.bf16.msra.mxu0 %v3034
      %3103 = vmatprep.subr.bf16.mxu0 0
      %3104 = vmatpush2.bf16.msra.mxu0 %v3033
      %3105 = vmatprep.mubr.bf16.mxu0 %v2270
      %3106 = vmatmul.mubr.bf16.gmra.mxu0 %v2269
      %v3107 = vpop.f32.mrf.mxu0
      %v3108 = vadd.f32 %v2913, %v3107
      %v3109 = vpop.f32.mrf.mxu0
      %v3110 = vpop.f32.mrf.mxu0
      %v3111 = vadd.f32 %v2914, %v3110
      %v3112 = vpop.f32.mrf.mxu0
      %3113 = vmatprep.mubr.bf16.mxu0 %v2273
      %3114 = vmatmul.mubr.bf16.gmra.mxu0 %v2272
      %v3115 = vpop.f32.mrf.mxu0
      %v3116 = vadd.f32 %v2915, %v3115
      %v3117 = vpop.f32.mrf.mxu0
      %v3118 = vpop.f32.mrf.mxu0
      %v3119 = vadd.f32 %v2916, %v3118
      %v3120 = vpop.f32.mrf.mxu0
      %3121 = vdwg.mxu0
      %3122 = vmatprep.subr.bf16.mxu0 0
      %3123 = vmatpush1.bf16.msra.mxu0 %v3048
      %3124 = vmatprep.subr.bf16.mxu0 0
      %3125 = vmatpush1.bf16.msra.mxu0 %v3047
      %3126 = vmatprep.subr.bf16.mxu0 0
      %3127 = vmatpush1.bf16.msra.mxu0 %v3046
      %3128 = vmatprep.subr.bf16.mxu0 0
      %3129 = vmatpush1.bf16.msra.mxu0 %v3045
      %3130 = vmatprep.subr.bf16.mxu0 0
      %3131 = vmatpush1.bf16.msra.mxu0 %v3044
      %3132 = vmatprep.subr.bf16.mxu0 0
      %3133 = vmatpush1.bf16.msra.mxu0 %v3043
      %3134 = vmatprep.subr.bf16.mxu0 0
      %3135 = vmatpush1.bf16.msra.mxu0 %v3042
      %3136 = vmatprep.subr.bf16.mxu0 0
      %3137 = vmatpush1.bf16.msra.mxu0 %v3041
      %3138 = vmatprep.subr.bf16.mxu0 0
      %3139 = vmatpush2.bf16.msra.mxu0 0
      %3140 = vmatprep.subr.bf16.mxu0 0
      %3141 = vmatpush2.bf16.msra.mxu0 0
      %3142 = vmatprep.subr.bf16.mxu0 0
      %3143 = vmatpush2.bf16.msra.mxu0 0
      %3144 = vmatprep.subr.bf16.mxu0 0
      %3145 = vmatpush2.bf16.msra.mxu0 0
      %3146 = vmatprep.subr.bf16.mxu0 0
      %3147 = vmatpush2.bf16.msra.mxu0 0
      %3148 = vmatprep.subr.bf16.mxu0 0
      %3149 = vmatpush2.bf16.msra.mxu0 0
      %3150 = vmatprep.subr.bf16.mxu0 0
      %3151 = vmatpush2.bf16.msra.mxu0 0
      %3152 = vmatprep.subr.bf16.mxu0 0
      %3153 = vmatpush2.bf16.msra.mxu0 0
      %3154 = vmatprep.mubr.bf16.mxu0 0
      %3155 = vmatmul.mubr.bf16.gmra.mxu0 %v2271
      %v3156 = vpop.f32.mrf.mxu0
      %v3157 = vadd.f32 %v3108, %v3156
      %v3158 = vpop.f32.mrf.mxu0
      %v3159 = vpop.f32.mrf.mxu0
      %v3160 = vadd.f32 %v3111, %v3159
      %v3161 = vpop.f32.mrf.mxu0
      %3162 = vmatprep.mubr.bf16.mxu0 0
      %3163 = vmatmul.mubr.bf16.gmra.mxu0 %v2274
      %v3164 = vpop.f32.mrf.mxu0
      %v3165 = vadd.f32 %v3116, %v3164
      %v3166 = vpop.f32.mrf.mxu0
      %v3167 = vpop.f32.mrf.mxu0
      %v3168 = vadd.f32 %v3119, %v3167
      %v3169 = vpop.f32.mrf.mxu0
      %3170 = vdwg.mxu0
      %v3171 = vadd.f32 %v3157, %v2925
      %v3172 = vadd.f32 %v3160, %v2926
      %v3173 = vadd.f32 %v3165, %v2927
      %v3174 = vadd.f32 %v3168, %v2928
      %v3175 = vlaneseq
      %v3176 = vshrl.u32 %v3175, 7
      %v3177 = vsub.s32 2, %v3176
      %v3178 = vrot.slane %v661, %v3177
      %v3179 = vadd.f32 %v3171, %v3178
      %v3180 = vadd.f32 %v3172, %v3178
      %v3181 = vadd.f32 %v3173, %v3178
      %v3182 = vadd.f32 %v3174, %v3178
      %3183 = vst [vmem:[%s643] sm:$0xff] %v3179
      %3184 = vst [vmem:[%s643 + $0x8] sm:$0xff] %v3180
      %3185 = vst [vmem:[%s643 + $0x10] sm:$0xff] %v3181
      %3186 = vst [vmem:[%s643 + $0x18] sm:$0xff] %v3182
      %s3187 = smul.u32 2, %s30
      %p3188 = scmp.lt.s32.totalorder %s3187, 3
      %s3189 = scalar_select %p3188, %s3187, 3
      %s3190 = smul.addr %s3189, 2
      %s3191 = smul.addr %s3190, 8
      %s3192 = scalar_lea.vmem %s16, %s3191
      %s3193 = smul.u32 2, %s30
      %p3194 = scmp.lt.s32.totalorder %s3193, 3
      %s3195 = scalar_select %p3194, %s3193, 3
      %s3196 = smul.addr %s3195, 2
      %s3197 = smul.addr %s3196, 8
      %s3198 = scalar_lea.vmem %s17, %s3197
      %s3199 = smul.u32 2, %s30
      %p3200 = scmp.lt.s32.totalorder %s3199, 3
      %s3201 = scalar_select %p3200, %s3199, 3
      %s3202 = smul.addr %s3201, 2
      %s3203 = smul.addr %s3202, 8
      %s3204 = scalar_lea.vmem %s18, %s3203
      // Predicated region
      $region85: #{info_block_forward.1} parent=83 // pred_check
        %p3205 = pneg %p399
      $region86: #{info_block_forward.1} parent=83 // pred_check_branch
        %3207 = sbr.rel (%p3205) target = $region88
      $region87: #{info_block_forward.1} parent=83 // pred_region
        %s3208 = smul.u32 2, %s30
      $region88: #{info_block_forward.1} parent=83 // pred_fallthru
        _
      // Predicated region
      $region89: #{info_block_forward.1} parent=83 // pred_check
        %p3209 = pneg %p425
      $region90: #{info_block_forward.1} parent=83 // pred_check_branch
        %3211 = sbr.rel (%p3209) target = $region92
      $region91: #{info_block_forward.1} parent=83 // pred_region
        %s3212 = smul.u32 2, %s30
      $region92: #{info_block_forward.1} parent=83 // pred_fallthru
        _
      // Predicated region
      $region93: #{info_block_forward.1} parent=83 // pred_check
        %p3213 = pneg %p451
      $region94: #{info_block_forward.1} parent=83 // pred_check_branch
        %3215 = sbr.rel (%p3213) target = $region96
      $region95: #{info_block_forward.1} parent=83 // pred_region
        %s3216 = smul.u32 2, %s30
      $region96: #{info_block_forward.1} parent=83 // pred_fallthru
        _
    $region84: #{info_block_forward.1} parent=5 // pred_fallthru
      _
    %p3217 = scmp.le.s32.totalorder 2, %s25
    // Predicated region
    $region97: #{info_block_forward.1} parent=5 // pred_check
      %p3218 = pneg %p3217
    $region98: #{info_block_forward.1} parent=5 // pred_check_branch
      %3220 = sbr.rel (%p3218) target = $region100
    $region99: #{info_block_forward.1} parent=5 // pred_region
      %s3221 = ssub.s32 %s25, 2
      // Predicated region
      $region101: #{info_block_forward.1} parent=99 // pred_check
        %p3222 = pneg %p405
      $region102: #{info_block_forward.1} parent=99 // pred_check_branch
        %3224 = sbr.rel (%p3222) target = $region104
      $region103: #{info_block_forward.1} parent=99 // pred_region
        %s3225 = smul.u32 2, %s31
        %p3226 = scmp.lt.s32.totalorder %s3225, 3
        %s3227 = scalar_select %p3226, %s3225, 3
        %s3228 = smul.addr %s3227, 2
        %s3229 = smul.addr %s3228, 8
        %s3230 = scalar_lea.vmem %s16, %s3229
      $region104: #{info_block_forward.1} parent=99 // pred_fallthru
        _
      // Predicated region
      $region105: #{info_block_forward.1} parent=99 // pred_check
        %p3231 = pneg %p431
      $region106: #{info_block_forward.1} parent=99 // pred_check_branch
        %3233 = sbr.rel (%p3231) target = $region108
      $region107: #{info_block_forward.1} parent=99 // pred_region
        %s3234 = smul.u32 2, %s31
        %p3235 = scmp.lt.s32.totalorder %s3234, 3
        %s3236 = scalar_select %p3235, %s3234, 3
        %s3237 = smul.addr %s3236, 2
        %s3238 = smul.addr %s3237, 8
        %s3239 = scalar_lea.vmem %s17, %s3238
      $region108: #{info_block_forward.1} parent=99 // pred_fallthru
        _
      // Predicated region
      $region109: #{info_block_forward.1} parent=99 // pred_check
        %p3240 = pneg %p457
      $region110: #{info_block_forward.1} parent=99 // pred_check_branch
        %3242 = sbr.rel (%p3240) target = $region112
      $region111: #{info_block_forward.1} parent=99 // pred_region
        %s3243 = smul.u32 2, %s31
        %p3244 = scmp.lt.s32.totalorder %s3243, 3
        %s3245 = scalar_select %p3244, %s3243, 3
        %s3246 = smul.addr %s3245, 2
        %s3247 = smul.addr %s3246, 8
        %s3248 = scalar_lea.vmem %s18, %s3247
      $region112: #{info_block_forward.1} parent=99 // pred_fallthru
        _
    $region100: #{info_block_forward.1} parent=5 // pred_fallthru
      _
  $region6: #{info_block_forward.1} parent=0 // loop_footer
    %s29 = sadd.s32 1, %s25
  $region7: #{info_block_forward.1} parent=0 // loop_footer_branch
    %24 = sbr.rel target = $region3
  $region8: #{info_block_forward.1} parent=0 // loop_exit
    _

</llo_original>
